<compile_context>
chip_gen: v5e
topology: v5e:2x2
jax: 0.10.0
libtpu: 0.0.40
codegen_flags: <defaults>
</compile_context>

<pallas_src>
from functools import partial

import numpy as np
import jax
import jax.numpy as jnp
from jax import lax
from jax.experimental import pallas as pl
from jax.experimental.pallas import tpu as pltpu


# ---------------------------------------------------------------------------
# Fused kernel: whole TutorialNet forward for B images per grid step.
# ---------------------------------------------------------------------------
def tutorialnet_kernel(x_ref, t1_ref, bc1_ref, t2_ref, bc2_ref,
                       w1_ref, b1_ref, w2_ref, b2_ref, w3_ref, b3_ref,
                       o_ref, acc1_ref, acc2_ref, p1_ref):
    """Per-grid-step shapes (B = images per step, multiple of 8):
      x_ref   : (32, B, 128)   input rows; lane = c*32 + w (lanes >= 96 zero)
      t1_ref  : (5, 128, 256)  conv1 Toeplitz RHS per kh tap; out lane =
                               (ow//2)*6 + co, odd ow in the upper 128 lanes
      bc1_ref : (1, 128)       conv1 bias tiled over pooled w (lanes >= 84 zero)
      t2_ref  : (5, 128, 256)  conv2 Toeplitz RHS per kh tap (rows = w*6 + c)
      bc2_ref : (1, 128)       conv2 bias tiled over pooled w (lanes >= 80 zero)
      w1_ref  : (5, 128, 120)  fc1 weight, rows permuted to the (h, w*16+c) layout
      b1/b2   : (1,120)/(1,84);  w2: (120,84)
      w3_ref  : (84, 128)      fc3 weight zero-padded to 128 output lanes
      b3_ref  : (1, 128)       fc3 bias zero-padded
      o_ref   : (B, 128)       logits in lanes 0..2
      acc1_ref: (14, 2B, 256)  VMEM scratch, conv1 accumulator
      acc2_ref: (5, 2B, 256)   VMEM scratch, conv2 accumulator
      p1_ref  : (14, B, 128)   VMEM scratch, pooled conv1 activation (lane = w*6+c)
    """
    f32 = jnp.float32
    B = x_ref.shape[1]

    # ---- conv1 (5x5 valid, 3->6): 5 matmuls (28*B,128)@(128,256), VMEM accumulate ----
    for kh in range(5):
        lhs = x_ref[kh:kh + 28, :, :].reshape(28 * B, 128)          # rows: oh*B + b
        upd = jnp.dot(lhs, t1_ref[kh],
                      preferred_element_type=f32).reshape(14, 2 * B, 256)
        if kh == 0:
            acc1_ref[...] = upd
        else:
            acc1_ref[...] += upd
    # 2x2 max-pool fused: H-pool over the two row groups, W-pool over lane halves.
    y = jnp.maximum(acc1_ref[:, :B, :], acc1_ref[:, B:, :])         # (14, B, 256)
    y = jnp.maximum(y[..., :128], y[..., 128:])                     # (14, B, 128)
    p1_ref[...] = jnp.maximum(y + bc1_ref[...], 0.0)                # bias + ReLU

    # ---- conv2 (5x5 valid, 6->16): 5 matmuls (10*B,128)@(128,256) ----
    for kh in range(5):
        lhs = p1_ref[kh:kh + 10, :, :].reshape(10 * B, 128)
        upd = jnp.dot(lhs, t2_ref[kh],
                      preferred_element_type=f32).reshape(5, 2 * B, 256)
        if kh == 0:
            acc2_ref[...] = upd
        else:
            acc2_ref[...] += upd
    y = jnp.maximum(acc2_ref[:, :B, :], acc2_ref[:, B:, :])         # (5, B, 256)
    y = jnp.maximum(y[..., :128], y[..., 128:])                     # (5, B, 128)
    p2 = jnp.maximum(y + bc2_ref[...], 0.0)                         # lane = w*16 + c

    # ---- MLP 400 -> 120 -> 84 -> 3 (flatten folded into w1's row permutation) ----
    h = jnp.dot(p2[0], w1_ref[0], preferred_element_type=f32)
    for r in range(1, 5):
        h = h + jnp.dot(p2[r], w1_ref[r], preferred_element_type=f32)
    h = jnp.maximum(h + b1_ref[...], 0.0)
    h = jnp.maximum(jnp.dot(h, w2_ref[...], preferred_element_type=f32)
                    + b2_ref[...], 0.0)
    o_ref[...] = jnp.dot(h, w3_ref[...], preferred_element_type=f32) + b3_ref[...]


# ---------------------------------------------------------------------------
# Wrapper
# ---------------------------------------------------------------------------
@partial(jax.jit, static_argnames=("block_images",))
def tutorialnet_pallas(x_nchw, ops, block_images=8):
    """x_nchw: (N, 3, 32, 32) float32.  block_images must be a multiple of 8
    (8 is a good default everywhere; 16 also works well on v6e/v7x)."""
    t1, bc1, t2, bc2, w1r, b1, w2, b2, w3p, b3p = ops
    n = x_nchw.shape[0]
    B = block_images
    n_pad = ((n + B - 1) // B) * B

    # Pack input: (N,3,32,32) -> (32, n_pad, 128), lane = c*32 + w (zero-pad batch + lanes).
    x = jnp.pad(x_nchw.astype(jnp.float32),
                ((0, n_pad - n), (0, 0), (0, 0), (0, 0)))
    x = jnp.transpose(x, (2, 0, 1, 3)).reshape(32, n_pad, 96)
    x = jnp.pad(x, ((0, 0), (0, 0), (0, 32)))

    out = pl.pallas_call(
        tutorialnet_kernel,
        grid=(n_pad // B,),
        in_specs=[
            pl.BlockSpec((32, B, 128), lambda i: (0, i, 0)),
            pl.BlockSpec(t1.shape, lambda i: (0, 0, 0)),
            pl.BlockSpec(bc1.shape, lambda i: (0, 0)),
            pl.BlockSpec(t2.shape, lambda i: (0, 0, 0)),
            pl.BlockSpec(bc2.shape, lambda i: (0, 0)),
            pl.BlockSpec(w1r.shape, lambda i: (0, 0, 0)),
            pl.BlockSpec(b1.shape, lambda i: (0, 0)),
            pl.BlockSpec(w2.shape, lambda i: (0, 0)),
            pl.BlockSpec(b2.shape, lambda i: (0, 0)),
            pl.BlockSpec(w3p.shape, lambda i: (0, 0)),
            pl.BlockSpec(b3p.shape, lambda i: (0, 0)),
        ],
        out_specs=pl.BlockSpec((B, 128), lambda i: (i, 0)),
        out_shape=jax.ShapeDtypeStruct((n_pad, 128), jnp.float32),
        scratch_shapes=[
            pltpu.VMEM((14, 2 * B, 256), jnp.float32),   # conv1 accumulator
            pltpu.VMEM((5, 2 * B, 256), jnp.float32),    # conv2 accumulator
            pltpu.VMEM((14, B, 128), jnp.float32),       # pooled conv1 activation
        ],
        compiler_params=pltpu.CompilerParams(dimension_semantics=("parallel",)),
    )(x, t1, bc1, t2, bc2, w1r, b1, w2, b2, w3p, b3p)
    return out[:n, :3]


# ---------------------------------------------------------------------------
# One-time host-side parameter preprocessing (Toeplitz RHS, permuted fc1, ...)
# ---------------------------------------------------------------------------
def prepare_params(params):
    (cw1, cb1), (cw2, cb2), (fw1, fb1), (fw2, fb2), (fw3, fb3) = [
        (np.asarray(w, np.float32), np.asarray(b, np.float32)) for (w, b) in params]

    # conv1 Toeplitz: one (128,256) matrix per kh tap; input row index = c*32 + w_in,
    # output lane = (ow//2)*6 + co, odd ow mapped to the upper 128 lanes (W-pool halves).
    co1, ci1, kh1, kw1 = cw1.shape                     # (6, 3, 5, 5)
    OW1 = 32 - kw1 + 1                                 # 28
    t1 = np.zeros((kh1, 128, 256), np.float32)
    for kh in range(kh1):
        for c in range(ci1):
            for ow in range(OW1):
                base = (ow // 2) * co1 + (0 if ow % 2 == 0 else 128)
                for kw in range(kw1):
                    t1[kh, c * 32 + ow + kw, base:base + co1] = cw1[:, c, kh, kw]
    bc1 = np.zeros((1, 128), np.float32)
    bc1[0, :(OW1 // 2) * co1] = np.tile(cb1, OW1 // 2)

    # conv2 Toeplitz: input row index = pooled-conv1 lane (w*6 + c, padded to 128).
    co2, ci2, kh2, kw2 = cw2.shape                     # (16, 6, 5, 5)
    OW2 = 14 - kw2 + 1                                 # 10
    t2 = np.zeros((kh2, 128, 256), np.float32)
    for kh in range(kh2):
        for ow in range(OW2):
            base = (ow // 2) * co2 + (0 if ow % 2 == 0 else 128)
            for kw in range(kw2):
                for c in range(ci2):
                    t2[kh, (ow + kw) * ci2 + c, base:base + co2] = cw2[:, c, kh, kw]
    bc2 = np.zeros((1, 128), np.float32)
    bc2[0, :(OW2 // 2) * co2] = np.tile(cb2, OW2 // 2)

    # fc1: permute rows from PyTorch flatten order (c*25 + h*5 + w) to the kernel's
    # pooled-conv2 layout (h, w*16 + c); pad the lane axis to 128.
    w1r = np.zeros((5, 128, 120), np.float32)
    for h in range(5):
        for w in range(5):
            for c in range(16):
                w1r[h, w * 16 + c, :] = fw1[:, c * 25 + h * 5 + w]

    # fc3: pad output lanes to 128 so the kernel's final store is lane-dense.
    w3p = np.zeros((84, 128), np.float32)
    w3p[:, :3] = fw3.T
    b3p = np.zeros((1, 128), np.float32)
    b3p[0, :3] = fb3

    ops = (t1, bc1, t2, bc2, w1r,
           fb1.reshape(1, -1), fw2.T.copy(), fb2.reshape(1, -1), w3p, b3p)
    return tuple(jnp.asarray(a) for a in ops)


# ---------------------------------------------------------------------------
# Deterministic synthetic parameters (PyTorch layouts) + pure-JAX reference
# ---------------------------------------------------------------------------
def init_params(key):
    ks = jax.random.split(key, 5)

    def conv(k, cout, cin, ksz):
        kw, kb = jax.random.split(k)
        w = jax.random.normal(kw, (cout, cin, ksz, ksz), jnp.float32) / np.sqrt(cin * ksz * ksz)
        b = 0.05 * jax.random.normal(kb, (cout,), jnp.float32)
        return w, b

    def linear(k, cout, cin):
        kw, kb = jax.random.split(k)
        w = jax.random.normal(kw, (cout, cin), jnp.float32) / np.sqrt(cin)
        b = 0.05 * jax.random.normal(kb, (cout,), jnp.float32)
        return w, b

    return [conv(ks[0], 6, 3, 5), conv(ks[1], 16, 6, 5),
            linear(ks[2], 120, 16 * 5 * 5), linear(ks[3], 84, 120),
            linear(ks[4], 3, 84)]


def tutorialnet_reference(x, params):
    (cw1, cb1), (cw2, cb2), (fw1, fb1), (fw2, fb2), (fw3, fb3) = params

    def conv_relu_pool(y, w, b):
        y = lax.conv_general_dilated(y, w, (1, 1), "VALID",
                                     dimension_numbers=("NCHW", "OIHW", "NCHW"),
                                     precision=lax.Precision.HIGHEST)
        y = jnp.maximum(y + b[None, :, None, None], 0.0)
        return lax.reduce_window(y, -jnp.inf, lax.max,
                                 (1, 1, 2, 2), (1, 1, 2, 2), "VALID")

    y = conv_relu_pool(x, cw1, cb1)
    y = conv_relu_pool(y, cw2, cb2)
    y = y.reshape(y.shape[0], -1)                      # PyTorch Flatten: (C,H,W) order
    y = jnp.maximum(y @ fw1.T + fb1, 0.0)
    y = jnp.maximum(y @ fw2.T + fb2, 0.0)
    return y @ fw3.T + fb3


if __name__ == "__main__":
    key = jax.random.PRNGKey(0)
    k_param, k_x = jax.random.split(key)
    params = init_params(k_param)
    ops = prepare_params(params)

    # 3x32x32 input is what the module implies (16*5*5 = 400 after two conv+pool).
    x = jax.random.normal(k_x, (2, 3, 32, 32), jnp.float32)     # NCHW, like PyTorch

    out = jax.block_until_ready(tutorialnet_pallas(x, ops))
    ref = jax.block_until_ready(tutorialnet_reference(x, params))

    assert out.shape == (2, 3), out.shape
    assert bool(jnp.all(jnp.isfinite(out)))
    max_err = float(jnp.max(jnp.abs(out - ref)))
    assert bool(jnp.allclose(out, ref, rtol=2e-2, atol=2e-2)), f"max abs diff {max_err}"
    print("KERNEL_OK")
</pallas_src>

<mosaic_0001>
module attributes {stable_mosaic.version = 11 : i64} {
  func.func @tutorialnet_kernel(%arg0: i32, %arg1: memref<32x8x128xf32, #tpu.memory_space<vmem>>, %arg2: memref<5x128x256xf32, #tpu.memory_space<vmem>>, %arg3: memref<1x128xf32, #tpu.memory_space<vmem>>, %arg4: memref<5x128x256xf32, #tpu.memory_space<vmem>>, %arg5: memref<1x128xf32, #tpu.memory_space<vmem>>, %arg6: memref<5x128x120xf32, #tpu.memory_space<vmem>>, %arg7: memref<1x120xf32, #tpu.memory_space<vmem>>, %arg8: memref<120x84xf32, #tpu.memory_space<vmem>>, %arg9: memref<1x84xf32, #tpu.memory_space<vmem>>, %arg10: memref<84x128xf32, #tpu.memory_space<vmem>>, %arg11: memref<1x128xf32, #tpu.memory_space<vmem>>, %arg12: memref<8x128xf32, #tpu.memory_space<vmem>>, %arg13: memref<14x16x256xf32, #tpu.memory_space<vmem>>, %arg14: memref<5x16x256xf32, #tpu.memory_space<vmem>>, %arg15: memref<14x8x128xf32, #tpu.memory_space<vmem>>) attributes {dimension_semantics = [#tpu.dimension_semantics<parallel>], iteration_bounds = array<i64: 1>, scalar_prefetch = 0 : i64, scratch_operands = 3 : i64, tpu.core_type = #tpu.core_type<tc>, window_params = [{transform_indices = @transform_0, window_bounds = array<i64: 32, 8, 128>}, {pipeline_mode = #tpu.pipeline_mode<synchronous>, transform_indices = @transform_1, window_bounds = array<i64: 5, 128, 256>}, {pipeline_mode = #tpu.pipeline_mode<synchronous>, transform_indices = @transform_2, window_bounds = array<i64: 1, 128>}, {pipeline_mode = #tpu.pipeline_mode<synchronous>, transform_indices = @transform_3, window_bounds = array<i64: 5, 128, 256>}, {pipeline_mode = #tpu.pipeline_mode<synchronous>, transform_indices = @transform_4, window_bounds = array<i64: 1, 128>}, {pipeline_mode = #tpu.pipeline_mode<synchronous>, transform_indices = @transform_5, window_bounds = array<i64: 5, 128, 120>}, {pipeline_mode = #tpu.pipeline_mode<synchronous>, transform_indices = @transform_6, window_bounds = array<i64: 1, 120>}, {pipeline_mode = #tpu.pipeline_mode<synchronous>, transform_indices = @transform_7, window_bounds = array<i64: 120, 84>}, {pipeline_mode = #tpu.pipeline_mode<synchronous>, transform_indices = @transform_8, window_bounds = array<i64: 1, 84>}, {pipeline_mode = #tpu.pipeline_mode<synchronous>, transform_indices = @transform_9, window_bounds = array<i64: 84, 128>}, {pipeline_mode = #tpu.pipeline_mode<synchronous>, transform_indices = @transform_10, window_bounds = array<i64: 1, 128>}, {transform_indices = @transform_11, window_bounds = array<i64: 8, 128>}]} {
    %c0 = arith.constant 0 : index
    %c0_0 = arith.constant 0 : index
    %c0_1 = arith.constant 0 : index
    %0 = vector.load %arg1[%c0, %c0_0, %c0_1] : memref<32x8x128xf32, #tpu.memory_space<vmem>>, vector<28x8x128xf32>
    %1 = vector.shape_cast %0 : vector<28x8x128xf32> to vector<224x128xf32>
    %c0_2 = arith.constant 0 : index
    %c0_3 = arith.constant 0 : index
    %c0_4 = arith.constant 0 : index
    %2 = vector.load %arg2[%c0_2, %c0_3, %c0_4] : memref<5x128x256xf32, #tpu.memory_space<vmem>>, vector<1x128x256xf32>
    %3 = vector.shape_cast %2 : vector<1x128x256xf32> to vector<128x256xf32>
    %cst = arith.constant dense<0.000000e+00> : vector<224x256xf32>
    %4 = tpu.matmul %1, %3, %cst {dimension_numbers = #tpu.dot_dimension_numbers<[1], [0], [0], [1], [0, 0, 1, 1], [], []>} : vector<224x128xf32>, vector<128x256xf32>, vector<224x256xf32> -> vector<224x256xf32>
    %5 = vector.shape_cast %4 : vector<224x256xf32> to vector<14x16x256xf32>
    %c0_5 = arith.constant 0 : index
    %c0_6 = arith.constant 0 : index
    %c0_7 = arith.constant 0 : index
    %6 = vector.load %arg13[%c0_5, %c0_6, %c0_7] : memref<14x16x256xf32, #tpu.memory_space<vmem>>, vector<14x16x256xf32>
    tpu.vector_store %arg13[%c0_5, %c0_6, %c0_7], %5 {strides = array<i32>} : memref<14x16x256xf32, #tpu.memory_space<vmem>>, vector<14x16x256xf32>,
    %c1 = arith.constant 1 : index
    %c0_8 = arith.constant 0 : index
    %c0_9 = arith.constant 0 : index
    %7 = vector.load %arg1[%c1, %c0_8, %c0_9] : memref<32x8x128xf32, #tpu.memory_space<vmem>>, vector<28x8x128xf32>
    %8 = vector.shape_cast %7 : vector<28x8x128xf32> to vector<224x128xf32>
    %c1_10 = arith.constant 1 : index
    %c0_11 = arith.constant 0 : index
    %c0_12 = arith.constant 0 : index
    %9 = vector.load %arg2[%c1_10, %c0_11, %c0_12] : memref<5x128x256xf32, #tpu.memory_space<vmem>>, vector<1x128x256xf32>
    %10 = vector.shape_cast %9 : vector<1x128x256xf32> to vector<128x256xf32>
    %cst_13 = arith.constant dense<0.000000e+00> : vector<224x256xf32>
    %11 = tpu.matmul %8, %10, %cst_13 {dimension_numbers = #tpu.dot_dimension_numbers<[1], [0], [0], [1], [0, 0, 1, 1], [], []>} : vector<224x128xf32>, vector<128x256xf32>, vector<224x256xf32> -> vector<224x256xf32>
    %12 = vector.shape_cast %11 : vector<224x256xf32> to vector<14x16x256xf32>
    %c0_14 = arith.constant 0 : index
    %c0_15 = arith.constant 0 : index
    %c0_16 = arith.constant 0 : index
    %13 = vector.load %arg13[%c0_14, %c0_15, %c0_16] : memref<14x16x256xf32, #tpu.memory_space<vmem>>, vector<14x16x256xf32>
    %14 = arith.addf %13, %12 : vector<14x16x256xf32>
    %c0_17 = arith.constant 0 : index
    %c0_18 = arith.constant 0 : index
    %c0_19 = arith.constant 0 : index
    %15 = vector.load %arg13[%c0_17, %c0_18, %c0_19] : memref<14x16x256xf32, #tpu.memory_space<vmem>>, vector<14x16x256xf32>
    tpu.vector_store %arg13[%c0_17, %c0_18, %c0_19], %14 {strides = array<i32>} : memref<14x16x256xf32, #tpu.memory_space<vmem>>, vector<14x16x256xf32>,
    %c2 = arith.constant 2 : index
    %c0_20 = arith.constant 0 : index
    %c0_21 = arith.constant 0 : index
    %16 = vector.load %arg1[%c2, %c0_20, %c0_21] : memref<32x8x128xf32, #tpu.memory_space<vmem>>, vector<28x8x128xf32>
    %17 = vector.shape_cast %16 : vector<28x8x128xf32> to vector<224x128xf32>
    %c2_22 = arith.constant 2 : index
    %c0_23 = arith.constant 0 : index
    %c0_24 = arith.constant 0 : index
    %18 = vector.load %arg2[%c2_22, %c0_23, %c0_24] : memref<5x128x256xf32, #tpu.memory_space<vmem>>, vector<1x128x256xf32>
    %19 = vector.shape_cast %18 : vector<1x128x256xf32> to vector<128x256xf32>
    %cst_25 = arith.constant dense<0.000000e+00> : vector<224x256xf32>
    %20 = tpu.matmul %17, %19, %cst_25 {dimension_numbers = #tpu.dot_dimension_numbers<[1], [0], [0], [1], [0, 0, 1, 1], [], []>} : vector<224x128xf32>, vector<128x256xf32>, vector<224x256xf32> -> vector<224x256xf32>
    %21 = vector.shape_cast %20 : vector<224x256xf32> to vector<14x16x256xf32>
    %c0_26 = arith.constant 0 : index
    %c0_27 = arith.constant 0 : index
    %c0_28 = arith.constant 0 : index
    %22 = vector.load %arg13[%c0_26, %c0_27, %c0_28] : memref<14x16x256xf32, #tpu.memory_space<vmem>>, vector<14x16x256xf32>
    %23 = arith.addf %22, %21 : vector<14x16x256xf32>
    %c0_29 = arith.constant 0 : index
    %c0_30 = arith.constant 0 : index
    %c0_31 = arith.constant 0 : index
    %24 = vector.load %arg13[%c0_29, %c0_30, %c0_31] : memref<14x16x256xf32, #tpu.memory_space<vmem>>, vector<14x16x256xf32>
    tpu.vector_store %arg13[%c0_29, %c0_30, %c0_31], %23 {strides = array<i32>} : memref<14x16x256xf32, #tpu.memory_space<vmem>>, vector<14x16x256xf32>,
    %c3 = arith.constant 3 : index
    %c0_32 = arith.constant 0 : index
    %c0_33 = arith.constant 0 : index
    %25 = vector.load %arg1[%c3, %c0_32, %c0_33] : memref<32x8x128xf32, #tpu.memory_space<vmem>>, vector<28x8x128xf32>
    %26 = vector.shape_cast %25 : vector<28x8x128xf32> to vector<224x128xf32>
    %c3_34 = arith.constant 3 : index
    %c0_35 = arith.constant 0 : index
    %c0_36 = arith.constant 0 : index
    %27 = vector.load %arg2[%c3_34, %c0_35, %c0_36] : memref<5x128x256xf32, #tpu.memory_space<vmem>>, vector<1x128x256xf32>
    %28 = vector.shape_cast %27 : vector<1x128x256xf32> to vector<128x256xf32>
    %cst_37 = arith.constant dense<0.000000e+00> : vector<224x256xf32>
    %29 = tpu.matmul %26, %28, %cst_37 {dimension_numbers = #tpu.dot_dimension_numbers<[1], [0], [0], [1], [0, 0, 1, 1], [], []>} : vector<224x128xf32>, vector<128x256xf32>, vector<224x256xf32> -> vector<224x256xf32>
    %30 = vector.shape_cast %29 : vector<224x256xf32> to vector<14x16x256xf32>
    %c0_38 = arith.constant 0 : index
    %c0_39 = arith.constant 0 : index
    %c0_40 = arith.constant 0 : index
    %31 = vector.load %arg13[%c0_38, %c0_39, %c0_40] : memref<14x16x256xf32, #tpu.memory_space<vmem>>, vector<14x16x256xf32>
    %32 = arith.addf %31, %30 : vector<14x16x256xf32>
    %c0_41 = arith.constant 0 : index
    %c0_42 = arith.constant 0 : index
    %c0_43 = arith.constant 0 : index
    %33 = vector.load %arg13[%c0_41, %c0_42, %c0_43] : memref<14x16x256xf32, #tpu.memory_space<vmem>>, vector<14x16x256xf32>
    tpu.vector_store %arg13[%c0_41, %c0_42, %c0_43], %32 {strides = array<i32>} : memref<14x16x256xf32, #tpu.memory_space<vmem>>, vector<14x16x256xf32>,
    %c4 = arith.constant 4 : index
    %c0_44 = arith.constant 0 : index
    %c0_45 = arith.constant 0 : index
    %34 = vector.load %arg1[%c4, %c0_44, %c0_45] : memref<32x8x128xf32, #tpu.memory_space<vmem>>, vector<28x8x128xf32>
    %35 = vector.shape_cast %34 : vector<28x8x128xf32> to vector<224x128xf32>
    %c4_46 = arith.constant 4 : index
    %c0_47 = arith.constant 0 : index
    %c0_48 = arith.constant 0 : index
    %36 = vector.load %arg2[%c4_46, %c0_47, %c0_48] : memref<5x128x256xf32, #tpu.memory_space<vmem>>, vector<1x128x256xf32>
    %37 = vector.shape_cast %36 : vector<1x128x256xf32> to vector<128x256xf32>
    %cst_49 = arith.constant dense<0.000000e+00> : vector<224x256xf32>
    %38 = tpu.matmul %35, %37, %cst_49 {dimension_numbers = #tpu.dot_dimension_numbers<[1], [0], [0], [1], [0, 0, 1, 1], [], []>} : vector<224x128xf32>, vector<128x256xf32>, vector<224x256xf32> -> vector<224x256xf32>
    %39 = vector.shape_cast %38 : vector<224x256xf32> to vector<14x16x256xf32>
    %c0_50 = arith.constant 0 : index
    %c0_51 = arith.constant 0 : index
    %c0_52 = arith.constant 0 : index
    %40 = vector.load %arg13[%c0_50, %c0_51, %c0_52] : memref<14x16x256xf32, #tpu.memory_space<vmem>>, vector<14x16x256xf32>
    %41 = arith.addf %40, %39 : vector<14x16x256xf32>
    %c0_53 = arith.constant 0 : index
    %c0_54 = arith.constant 0 : index
    %c0_55 = arith.constant 0 : index
    %42 = vector.load %arg13[%c0_53, %c0_54, %c0_55] : memref<14x16x256xf32, #tpu.memory_space<vmem>>, vector<14x16x256xf32>
    tpu.vector_store %arg13[%c0_53, %c0_54, %c0_55], %41 {strides = array<i32>} : memref<14x16x256xf32, #tpu.memory_space<vmem>>, vector<14x16x256xf32>,
    %c0_56 = arith.constant 0 : index
    %c0_57 = arith.constant 0 : index
    %c0_58 = arith.constant 0 : index
    %43 = vector.load %arg13[%c0_56, %c0_57, %c0_58] : memref<14x16x256xf32, #tpu.memory_space<vmem>>, vector<14x8x256xf32>
    %c0_59 = arith.constant 0 : index
    %c8 = arith.constant 8 : index
    %c0_60 = arith.constant 0 : index
    %44 = vector.load %arg13[%c0_59, %c8, %c0_60] : memref<14x16x256xf32, #tpu.memory_space<vmem>>, vector<14x8x256xf32>
    %45 = arith.maximumf %43, %44 : vector<14x8x256xf32>
    %46 = vector.extract_strided_slice %45 {offsets = [0, 0, 0], sizes = [14, 8, 128], strides = [1, 1, 1]} : vector<14x8x256xf32> to vector<14x8x128xf32>
    %47 = vector.extract_strided_slice %45 {offsets = [0, 0, 128], sizes = [14, 8, 128], strides = [1, 1, 1]} : vector<14x8x256xf32> to vector<14x8x128xf32>
    %48 = arith.maximumf %46, %47 : vector<14x8x128xf32>
    %c0_61 = arith.constant 0 : index
    %c0_62 = arith.constant 0 : index
    %49 = vector.load %arg3[%c0_61, %c0_62] : memref<1x128xf32, #tpu.memory_space<vmem>>, vector<1x128xf32>
    %50 = vector.shape_cast %49 : vector<1x128xf32> to vector<1x1x128xf32>
    %51 = vector.broadcast %50 : vector<1x1x128xf32> to vector<14x8x128xf32>
    %52 = arith.addf %48, %51 : vector<14x8x128xf32>
    %cst_63 = arith.constant 0.000000e+00 : f32
    %53 = vector.broadcast %cst_63 : f32 to vector<14x8x128xf32>
    %54 = arith.maximumf %52, %53 : vector<14x8x128xf32>
    %c0_64 = arith.constant 0 : index
    %c0_65 = arith.constant 0 : index
    %c0_66 = arith.constant 0 : index
    %55 = vector.load %arg15[%c0_64, %c0_65, %c0_66] : memref<14x8x128xf32, #tpu.memory_space<vmem>>, vector<14x8x128xf32>
    tpu.vector_store %arg15[%c0_64, %c0_65, %c0_66], %54 {strides = array<i32>} : memref<14x8x128xf32, #tpu.memory_space<vmem>>, vector<14x8x128xf32>,
    %c0_67 = arith.constant 0 : index
    %c0_68 = arith.constant 0 : index
    %c0_69 = arith.constant 0 : index
    %56 = vector.load %arg15[%c0_67, %c0_68, %c0_69] : memref<14x8x128xf32, #tpu.memory_space<vmem>>, vector<10x8x128xf32>
    %57 = vector.shape_cast %56 : vector<10x8x128xf32> to vector<80x128xf32>
    %c0_70 = arith.constant 0 : index
    %c0_71 = arith.constant 0 : index
    %c0_72 = arith.constant 0 : index
    %58 = vector.load %arg4[%c0_70, %c0_71, %c0_72] : memref<5x128x256xf32, #tpu.memory_space<vmem>>, vector<1x128x256xf32>
    %59 = vector.shape_cast %58 : vector<1x128x256xf32> to vector<128x256xf32>
    %cst_73 = arith.constant dense<0.000000e+00> : vector<80x256xf32>
    %60 = tpu.matmul %57, %59, %cst_73 {dimension_numbers = #tpu.dot_dimension_numbers<[1], [0], [0], [1], [0, 0, 1, 1], [], []>} : vector<80x128xf32>, vector<128x256xf32>, vector<80x256xf32> -> vector<80x256xf32>
    %61 = vector.shape_cast %60 : vector<80x256xf32> to vector<5x16x256xf32>
    %c0_74 = arith.constant 0 : index
    %c0_75 = arith.constant 0 : index
    %c0_76 = arith.constant 0 : index
    %62 = vector.load %arg14[%c0_74, %c0_75, %c0_76] : memref<5x16x256xf32, #tpu.memory_space<vmem>>, vector<5x16x256xf32>
    tpu.vector_store %arg14[%c0_74, %c0_75, %c0_76], %61 {strides = array<i32>} : memref<5x16x256xf32, #tpu.memory_space<vmem>>, vector<5x16x256xf32>,
    %c1_77 = arith.constant 1 : index
    %c0_78 = arith.constant 0 : index
    %c0_79 = arith.constant 0 : index
    %63 = vector.load %arg15[%c1_77, %c0_78, %c0_79] : memref<14x8x128xf32, #tpu.memory_space<vmem>>, vector<10x8x128xf32>
    %64 = vector.shape_cast %63 : vector<10x8x128xf32> to vector<80x128xf32>
    %c1_80 = arith.constant 1 : index
    %c0_81 = arith.constant 0 : index
    %c0_82 = arith.constant 0 : index
    %65 = vector.load %arg4[%c1_80, %c0_81, %c0_82] : memref<5x128x256xf32, #tpu.memory_space<vmem>>, vector<1x128x256xf32>
    %66 = vector.shape_cast %65 : vector<1x128x256xf32> to vector<128x256xf32>
    %cst_83 = arith.constant dense<0.000000e+00> : vector<80x256xf32>
    %67 = tpu.matmul %64, %66, %cst_83 {dimension_numbers = #tpu.dot_dimension_numbers<[1], [0], [0], [1], [0, 0, 1, 1], [], []>} : vector<80x128xf32>, vector<128x256xf32>, vector<80x256xf32> -> vector<80x256xf32>
    %68 = vector.shape_cast %67 : vector<80x256xf32> to vector<5x16x256xf32>
    %c0_84 = arith.constant 0 : index
    %c0_85 = arith.constant 0 : index
    %c0_86 = arith.constant 0 : index
    %69 = vector.load %arg14[%c0_84, %c0_85, %c0_86] : memref<5x16x256xf32, #tpu.memory_space<vmem>>, vector<5x16x256xf32>
    %70 = arith.addf %69, %68 : vector<5x16x256xf32>
    %c0_87 = arith.constant 0 : index
    %c0_88 = arith.constant 0 : index
    %c0_89 = arith.constant 0 : index
    %71 = vector.load %arg14[%c0_87, %c0_88, %c0_89] : memref<5x16x256xf32, #tpu.memory_space<vmem>>, vector<5x16x256xf32>
    tpu.vector_store %arg14[%c0_87, %c0_88, %c0_89], %70 {strides = array<i32>} : memref<5x16x256xf32, #tpu.memory_space<vmem>>, vector<5x16x256xf32>,
    %c2_90 = arith.constant 2 : index
    %c0_91 = arith.constant 0 : index
    %c0_92 = arith.constant 0 : index
    %72 = vector.load %arg15[%c2_90, %c0_91, %c0_92] : memref<14x8x128xf32, #tpu.memory_space<vmem>>, vector<10x8x128xf32>
    %73 = vector.shape_cast %72 : vector<10x8x128xf32> to vector<80x128xf32>
    %c2_93 = arith.constant 2 : index
    %c0_94 = arith.constant 0 : index
    %c0_95 = arith.constant 0 : index
    %74 = vector.load %arg4[%c2_93, %c0_94, %c0_95] : memref<5x128x256xf32, #tpu.memory_space<vmem>>, vector<1x128x256xf32>
    %75 = vector.shape_cast %74 : vector<1x128x256xf32> to vector<128x256xf32>
    %cst_96 = arith.constant dense<0.000000e+00> : vector<80x256xf32>
    %76 = tpu.matmul %73, %75, %cst_96 {dimension_numbers = #tpu.dot_dimension_numbers<[1], [0], [0], [1], [0, 0, 1, 1], [], []>} : vector<80x128xf32>, vector<128x256xf32>, vector<80x256xf32> -> vector<80x256xf32>
    %77 = vector.shape_cast %76 : vector<80x256xf32> to vector<5x16x256xf32>
    %c0_97 = arith.constant 0 : index
    %c0_98 = arith.constant 0 : index
    %c0_99 = arith.constant 0 : index
    %78 = vector.load %arg14[%c0_97, %c0_98, %c0_99] : memref<5x16x256xf32, #tpu.memory_space<vmem>>, vector<5x16x256xf32>
    %79 = arith.addf %78, %77 : vector<5x16x256xf32>
    %c0_100 = arith.constant 0 : index
    %c0_101 = arith.constant 0 : index
    %c0_102 = arith.constant 0 : index
    %80 = vector.load %arg14[%c0_100, %c0_101, %c0_102] : memref<5x16x256xf32, #tpu.memory_space<vmem>>, vector<5x16x256xf32>
    tpu.vector_store %arg14[%c0_100, %c0_101, %c0_102], %79 {strides = array<i32>} : memref<5x16x256xf32, #tpu.memory_space<vmem>>, vector<5x16x256xf32>,
    %c3_103 = arith.constant 3 : index
    %c0_104 = arith.constant 0 : index
    %c0_105 = arith.constant 0 : index
    %81 = vector.load %arg15[%c3_103, %c0_104, %c0_105] : memref<14x8x128xf32, #tpu.memory_space<vmem>>, vector<10x8x128xf32>
    %82 = vector.shape_cast %81 : vector<10x8x128xf32> to vector<80x128xf32>
    %c3_106 = arith.constant 3 : index
    %c0_107 = arith.constant 0 : index
    %c0_108 = arith.constant 0 : index
    %83 = vector.load %arg4[%c3_106, %c0_107, %c0_108] : memref<5x128x256xf32, #tpu.memory_space<vmem>>, vector<1x128x256xf32>
    %84 = vector.shape_cast %83 : vector<1x128x256xf32> to vector<128x256xf32>
    %cst_109 = arith.constant dense<0.000000e+00> : vector<80x256xf32>
    %85 = tpu.matmul %82, %84, %cst_109 {dimension_numbers = #tpu.dot_dimension_numbers<[1], [0], [0], [1], [0, 0, 1, 1], [], []>} : vector<80x128xf32>, vector<128x256xf32>, vector<80x256xf32> -> vector<80x256xf32>
    %86 = vector.shape_cast %85 : vector<80x256xf32> to vector<5x16x256xf32>
    %c0_110 = arith.constant 0 : index
    %c0_111 = arith.constant 0 : index
    %c0_112 = arith.constant 0 : index
    %87 = vector.load %arg14[%c0_110, %c0_111, %c0_112] : memref<5x16x256xf32, #tpu.memory_space<vmem>>, vector<5x16x256xf32>
    %88 = arith.addf %87, %86 : vector<5x16x256xf32>
    %c0_113 = arith.constant 0 : index
    %c0_114 = arith.constant 0 : index
    %c0_115 = arith.constant 0 : index
    %89 = vector.load %arg14[%c0_113, %c0_114, %c0_115] : memref<5x16x256xf32, #tpu.memory_space<vmem>>, vector<5x16x256xf32>
    tpu.vector_store %arg14[%c0_113, %c0_114, %c0_115], %88 {strides = array<i32>} : memref<5x16x256xf32, #tpu.memory_space<vmem>>, vector<5x16x256xf32>,
    %c4_116 = arith.constant 4 : index
    %c0_117 = arith.constant 0 : index
    %c0_118 = arith.constant 0 : index
    %90 = vector.load %arg15[%c4_116, %c0_117, %c0_118] : memref<14x8x128xf32, #tpu.memory_space<vmem>>, vector<10x8x128xf32>
    %91 = vector.shape_cast %90 : vector<10x8x128xf32> to vector<80x128xf32>
    %c4_119 = arith.constant 4 : index
    %c0_120 = arith.constant 0 : index
    %c0_121 = arith.constant 0 : index
    %92 = vector.load %arg4[%c4_119, %c0_120, %c0_121] : memref<5x128x256xf32, #tpu.memory_space<vmem>>, vector<1x128x256xf32>
    %93 = vector.shape_cast %92 : vector<1x128x256xf32> to vector<128x256xf32>
    %cst_122 = arith.constant dense<0.000000e+00> : vector<80x256xf32>
    %94 = tpu.matmul %91, %93, %cst_122 {dimension_numbers = #tpu.dot_dimension_numbers<[1], [0], [0], [1], [0, 0, 1, 1], [], []>} : vector<80x128xf32>, vector<128x256xf32>, vector<80x256xf32> -> vector<80x256xf32>
    %95 = vector.shape_cast %94 : vector<80x256xf32> to vector<5x16x256xf32>
    %c0_123 = arith.constant 0 : index
    %c0_124 = arith.constant 0 : index
    %c0_125 = arith.constant 0 : index
    %96 = vector.load %arg14[%c0_123, %c0_124, %c0_125] : memref<5x16x256xf32, #tpu.memory_space<vmem>>, vector<5x16x256xf32>
    %97 = arith.addf %96, %95 : vector<5x16x256xf32>
    %c0_126 = arith.constant 0 : index
    %c0_127 = arith.constant 0 : index
    %c0_128 = arith.constant 0 : index
    %98 = vector.load %arg14[%c0_126, %c0_127, %c0_128] : memref<5x16x256xf32, #tpu.memory_space<vmem>>, vector<5x16x256xf32>
    tpu.vector_store %arg14[%c0_126, %c0_127, %c0_128], %97 {strides = array<i32>} : memref<5x16x256xf32, #tpu.memory_space<vmem>>, vector<5x16x256xf32>,
    %c0_129 = arith.constant 0 : index
    %c0_130 = arith.constant 0 : index
    %c0_131 = arith.constant 0 : index
    %99 = vector.load %arg14[%c0_129, %c0_130, %c0_131] : memref<5x16x256xf32, #tpu.memory_space<vmem>>, vector<5x8x256xf32>
    %c0_132 = arith.constant 0 : index
    %c8_133 = arith.constant 8 : index
    %c0_134 = arith.constant 0 : index
    %100 = vector.load %arg14[%c0_132, %c8_133, %c0_134] : memref<5x16x256xf32, #tpu.memory_space<vmem>>, vector<5x8x256xf32>
    %101 = arith.maximumf %99, %100 : vector<5x8x256xf32>
    %102 = vector.extract_strided_slice %101 {offsets = [0, 0, 0], sizes = [5, 8, 128], strides = [1, 1, 1]} : vector<5x8x256xf32> to vector<5x8x128xf32>
    %103 = vector.extract_strided_slice %101 {offsets = [0, 0, 128], sizes = [5, 8, 128], strides = [1, 1, 1]} : vector<5x8x256xf32> to vector<5x8x128xf32>
    %104 = arith.maximumf %102, %103 : vector<5x8x128xf32>
    %c0_135 = arith.constant 0 : index
    %c0_136 = arith.constant 0 : index
    %105 = vector.load %arg5[%c0_135, %c0_136] : memref<1x128xf32, #tpu.memory_space<vmem>>, vector<1x128xf32>
    %106 = vector.shape_cast %105 : vector<1x128xf32> to vector<1x1x128xf32>
    %107 = vector.broadcast %106 : vector<1x1x128xf32> to vector<5x8x128xf32>
    %108 = arith.addf %104, %107 : vector<5x8x128xf32>
    %cst_137 = arith.constant 0.000000e+00 : f32
    %109 = vector.broadcast %cst_137 : f32 to vector<5x8x128xf32>
    %110 = arith.maximumf %108, %109 : vector<5x8x128xf32>
    %111 = vector.extract_strided_slice %110 {offsets = [0, 0, 0], sizes = [1, 8, 128], strides = [1, 1, 1]} : vector<5x8x128xf32> to vector<1x8x128xf32>
    %112 = vector.shape_cast %111 : vector<1x8x128xf32> to vector<8x128xf32>
    %c0_138 = arith.constant 0 : index
    %c0_139 = arith.constant 0 : index
    %c0_140 = arith.constant 0 : index
    %113 = vector.load %arg6[%c0_138, %c0_139, %c0_140] : memref<5x128x120xf32, #tpu.memory_space<vmem>>, vector<1x128x120xf32>
    %114 = vector.shape_cast %113 : vector<1x128x120xf32> to vector<128x120xf32>
    %cst_141 = arith.constant dense<0.000000e+00> : vector<8x120xf32>
    %115 = tpu.matmul %112, %114, %cst_141 {dimension_numbers = #tpu.dot_dimension_numbers<[1], [0], [0], [1], [0, 0, 1, 1], [], []>} : vector<8x128xf32>, vector<128x120xf32>, vector<8x120xf32> -> vector<8x120xf32>
    %116 = vector.extract_strided_slice %110 {offsets = [1, 0, 0], sizes = [1, 8, 128], strides = [1, 1, 1]} : vector<5x8x128xf32> to vector<1x8x128xf32>
    %117 = vector.shape_cast %116 : vector<1x8x128xf32> to vector<8x128xf32>
    %c1_142 = arith.constant 1 : index
    %c0_143 = arith.constant 0 : index
    %c0_144 = arith.constant 0 : index
    %118 = vector.load %arg6[%c1_142, %c0_143, %c0_144] : memref<5x128x120xf32, #tpu.memory_space<vmem>>, vector<1x128x120xf32>
    %119 = vector.shape_cast %118 : vector<1x128x120xf32> to vector<128x120xf32>
    %cst_145 = arith.constant dense<0.000000e+00> : vector<8x120xf32>
    %120 = tpu.matmul %117, %119, %cst_145 {dimension_numbers = #tpu.dot_dimension_numbers<[1], [0], [0], [1], [0, 0, 1, 1], [], []>} : vector<8x128xf32>, vector<128x120xf32>, vector<8x120xf32> -> vector<8x120xf32>
    %121 = arith.addf %115, %120 : vector<8x120xf32>
    %122 = vector.extract_strided_slice %110 {offsets = [2, 0, 0], sizes = [1, 8, 128], strides = [1, 1, 1]} : vector<5x8x128xf32> to vector<1x8x128xf32>
    %123 = vector.shape_cast %122 : vector<1x8x128xf32> to vector<8x128xf32>
    %c2_146 = arith.constant 2 : index
    %c0_147 = arith.constant 0 : index
    %c0_148 = arith.constant 0 : index
    %124 = vector.load %arg6[%c2_146, %c0_147, %c0_148] : memref<5x128x120xf32, #tpu.memory_space<vmem>>, vector<1x128x120xf32>
    %125 = vector.shape_cast %124 : vector<1x128x120xf32> to vector<128x120xf32>
    %cst_149 = arith.constant dense<0.000000e+00> : vector<8x120xf32>
    %126 = tpu.matmul %123, %125, %cst_149 {dimension_numbers = #tpu.dot_dimension_numbers<[1], [0], [0], [1], [0, 0, 1, 1], [], []>} : vector<8x128xf32>, vector<128x120xf32>, vector<8x120xf32> -> vector<8x120xf32>
    %127 = arith.addf %121, %126 : vector<8x120xf32>
    %128 = vector.extract_strided_slice %110 {offsets = [3, 0, 0], sizes = [1, 8, 128], strides = [1, 1, 1]} : vector<5x8x128xf32> to vector<1x8x128xf32>
    %129 = vector.shape_cast %128 : vector<1x8x128xf32> to vector<8x128xf32>
    %c3_150 = arith.constant 3 : index
    %c0_151 = arith.constant 0 : index
    %c0_152 = arith.constant 0 : index
    %130 = vector.load %arg6[%c3_150, %c0_151, %c0_152] : memref<5x128x120xf32, #tpu.memory_space<vmem>>, vector<1x128x120xf32>
    %131 = vector.shape_cast %130 : vector<1x128x120xf32> to vector<128x120xf32>
    %cst_153 = arith.constant dense<0.000000e+00> : vector<8x120xf32>
    %132 = tpu.matmul %129, %131, %cst_153 {dimension_numbers = #tpu.dot_dimension_numbers<[1], [0], [0], [1], [0, 0, 1, 1], [], []>} : vector<8x128xf32>, vector<128x120xf32>, vector<8x120xf32> -> vector<8x120xf32>
    %133 = arith.addf %127, %132 : vector<8x120xf32>
    %134 = vector.extract_strided_slice %110 {offsets = [4, 0, 0], sizes = [1, 8, 128], strides = [1, 1, 1]} : vector<5x8x128xf32> to vector<1x8x128xf32>
    %135 = vector.shape_cast %134 : vector<1x8x128xf32> to vector<8x128xf32>
    %c4_154 = arith.constant 4 : index
    %c0_155 = arith.constant 0 : index
    %c0_156 = arith.constant 0 : index
    %136 = vector.load %arg6[%c4_154, %c0_155, %c0_156] : memref<5x128x120xf32, #tpu.memory_space<vmem>>, vector<1x128x120xf32>
    %137 = vector.shape_cast %136 : vector<1x128x120xf32> to vector<128x120xf32>
    %cst_157 = arith.constant dense<0.000000e+00> : vector<8x120xf32>
    %138 = tpu.matmul %135, %137, %cst_157 {dimension_numbers = #tpu.dot_dimension_numbers<[1], [0], [0], [1], [0, 0, 1, 1], [], []>} : vector<8x128xf32>, vector<128x120xf32>, vector<8x120xf32> -> vector<8x120xf32>
    %139 = arith.addf %133, %138 : vector<8x120xf32>
    %c0_158 = arith.constant 0 : index
    %c0_159 = arith.constant 0 : index
    %140 = vector.load %arg7[%c0_158, %c0_159] : memref<1x120xf32, #tpu.memory_space<vmem>>, vector<1x120xf32>
    %141 = vector.broadcast %140 : vector<1x120xf32> to vector<8x120xf32>
    %142 = arith.addf %139, %141 : vector<8x120xf32>
    %cst_160 = arith.constant 0.000000e+00 : f32
    %143 = vector.broadcast %cst_160 : f32 to vector<8x120xf32>
    %144 = arith.maximumf %142, %143 : vector<8x120xf32>
    %c0_161 = arith.constant 0 : index
    %c0_162 = arith.constant 0 : index
    %145 = vector.load %arg8[%c0_161, %c0_162] : memref<120x84xf32, #tpu.memory_space<vmem>>, vector<120x84xf32>
    %cst_163 = arith.constant dense<0.000000e+00> : vector<8x84xf32>
    %146 = tpu.matmul %144, %145, %cst_163 {dimension_numbers = #tpu.dot_dimension_numbers<[1], [0], [0], [1], [0, 0, 1, 1], [], []>} : vector<8x120xf32>, vector<120x84xf32>, vector<8x84xf32> -> vector<8x84xf32>
    %c0_164 = arith.constant 0 : index
    %c0_165 = arith.constant 0 : index
    %147 = vector.load %arg9[%c0_164, %c0_165] : memref<1x84xf32, #tpu.memory_space<vmem>>, vector<1x84xf32>
    %148 = vector.broadcast %147 : vector<1x84xf32> to vector<8x84xf32>
    %149 = arith.addf %146, %148 : vector<8x84xf32>
    %cst_166 = arith.constant 0.000000e+00 : f32
    %150 = vector.broadcast %cst_166 : f32 to vector<8x84xf32>
    %151 = arith.maximumf %149, %150 : vector<8x84xf32>
    %c0_167 = arith.constant 0 : index
    %c0_168 = arith.constant 0 : index
    %152 = vector.load %arg10[%c0_167, %c0_168] : memref<84x128xf32, #tpu.memory_space<vmem>>, vector<84x128xf32>
    %cst_169 = arith.constant dense<0.000000e+00> : vector<8x128xf32>
    %153 = tpu.matmul %151, %152, %cst_169 {dimension_numbers = #tpu.dot_dimension_numbers<[1], [0], [0], [1], [0, 0, 1, 1], [], []>} : vector<8x84xf32>, vector<84x128xf32>, vector<8x128xf32> -> vector<8x128xf32>
    %c0_170 = arith.constant 0 : index
    %c0_171 = arith.constant 0 : index
    %154 = vector.load %arg11[%c0_170, %c0_171] : memref<1x128xf32, #tpu.memory_space<vmem>>, vector<1x128xf32>
    %155 = vector.broadcast %154 : vector<1x128xf32> to vector<8x128xf32>
    %156 = arith.addf %153, %155 : vector<8x128xf32>
    %c0_172 = arith.constant 0 : index
    %c0_173 = arith.constant 0 : index
    %157 = vector.load %arg12[%c0_172, %c0_173] : memref<8x128xf32, #tpu.memory_space<vmem>>, vector<8x128xf32>
    tpu.vector_store %arg12[%c0_172, %c0_173], %156 {strides = array<i32>} : memref<8x128xf32, #tpu.memory_space<vmem>>, vector<8x128xf32>,
    return
  }
  func.func @transform_0(%arg0: i32) -> (i32, i32, i32) {
    %c0_i32 = arith.constant 0 : i32
    %c0_i32_0 = arith.constant 0 : i32
    %c0_i32_1 = arith.constant 0 : i32
    return %c0_i32, %arg0, %c0_i32_0 : i32, i32, i32
  }
  func.func @transform_1(%arg0: i32) -> (i32, i32, i32) {
    %c0_i32 = arith.constant 0 : i32
    %c0_i32_0 = arith.constant 0 : i32
    %c0_i32_1 = arith.constant 0 : i32
    %c0_i32_2 = arith.constant 0 : i32
    return %c0_i32, %c0_i32_0, %c0_i32_1 : i32, i32, i32
  }
  func.func @transform_2(%arg0: i32) -> (i32, i32) {
    %c0_i32 = arith.constant 0 : i32
    %c0_i32_0 = arith.constant 0 : i32
    %c0_i32_1 = arith.constant 0 : i32
    return %c0_i32, %c0_i32_0 : i32, i32
  }
  func.func @transform_3(%arg0: i32) -> (i32, i32, i32) {
    %c0_i32 = arith.constant 0 : i32
    %c0_i32_0 = arith.constant 0 : i32
    %c0_i32_1 = arith.constant 0 : i32
    %c0_i32_2 = arith.constant 0 : i32
    return %c0_i32, %c0_i32_0, %c0_i32_1 : i32, i32, i32
  }
  func.func @transform_4(%arg0: i32) -> (i32, i32) {
    %c0_i32 = arith.constant 0 : i32
    %c0_i32_0 = arith.constant 0 : i32
    %c0_i32_1 = arith.constant 0 : i32
    return %c0_i32, %c0_i32_0 : i32, i32
  }
  func.func @transform_5(%arg0: i32) -> (i32, i32, i32) {
    %c0_i32 = arith.constant 0 : i32
    %c0_i32_0 = arith.constant 0 : i32
    %c0_i32_1 = arith.constant 0 : i32
    %c0_i32_2 = arith.constant 0 : i32
    return %c0_i32, %c0_i32_0, %c0_i32_1 : i32, i32, i32
  }
  func.func @transform_6(%arg0: i32) -> (i32, i32) {
    %c0_i32 = arith.constant 0 : i32
    %c0_i32_0 = arith.constant 0 : i32
    %c0_i32_1 = arith.constant 0 : i32
    return %c0_i32, %c0_i32_0 : i32, i32
  }
  func.func @transform_7(%arg0: i32) -> (i32, i32) {
    %c0_i32 = arith.constant 0 : i32
    %c0_i32_0 = arith.constant 0 : i32
    %c0_i32_1 = arith.constant 0 : i32
    return %c0_i32, %c0_i32_0 : i32, i32
  }
  func.func @transform_8(%arg0: i32) -> (i32, i32) {
    %c0_i32 = arith.constant 0 : i32
    %c0_i32_0 = arith.constant 0 : i32
    %c0_i32_1 = arith.constant 0 : i32
    return %c0_i32, %c0_i32_0 : i32, i32
  }
  func.func @transform_9(%arg0: i32) -> (i32, i32) {
    %c0_i32 = arith.constant 0 : i32
    %c0_i32_0 = arith.constant 0 : i32
    %c0_i32_1 = arith.constant 0 : i32
    return %c0_i32, %c0_i32_0 : i32, i32
  }
  func.func @transform_10(%arg0: i32) -> (i32, i32) {
    %c0_i32 = arith.constant 0 : i32
    %c0_i32_0 = arith.constant 0 : i32
    %c0_i32_1 = arith.constant 0 : i32
    return %c0_i32, %c0_i32_0 : i32, i32
  }
  func.func @transform_11(%arg0: i32) -> (i32, i32) {
    %c0_i32 = arith.constant 0 : i32
    %c0_i32_0 = arith.constant 0 : i32
    return %arg0, %c0_i32 : i32, i32
  }
}

</mosaic_0001>

<llo_original>
// kernel: tutorialnet_pallas.1
$region0: #{tutorialnet_pallas.1}
  #allocation0 [shape = 'u32[]', space=smem, size = 0x4, offset = 0x4, fixed_abs, tag = 'smem constant byte address 0x4 - core index']
  #allocation1 [shape = 'u32[72,128]{1,0:T(1,128)}', space=vmem, size = 0x9000, scoped, tag = 'internal scratch']
  #allocation2 [shape = 'f32[14,16,256]{2,1,0:T(8,128)}', space=vmem, size = 0x38000, scoped, tag = 'scratch operand']
  #allocation3 [shape = 'f32[5,16,256]{2,1,0:T(8,128)}', space=vmem, size = 0x14000, scoped, tag = 'scratch operand']
  #allocation4 [shape = 'f32[14,8,128]{2,1,0:T(8,128)}', space=vmem, size = 0xe000, scoped, tag = 'scratch operand']
  %s0 = inlined_call_operand.vmem [shape: f32[32,8,128], index: 0, kind: input, shape index: {}]
  %s1 = inlined_call_operand.vmem [shape: f32[5,128,256], index: 1, kind: input, shape index: {}]
  %s2 = inlined_call_operand.vmem [shape: f32[1,128], index: 2, kind: input, shape index: {}]
  %s3 = inlined_call_operand.vmem [shape: f32[5,128,256], index: 3, kind: input, shape index: {}]
  %s4 = inlined_call_operand.vmem [shape: f32[1,128], index: 4, kind: input, shape index: {}]
  %s5 = inlined_call_operand.vmem [shape: f32[5,128,120], index: 5, kind: input, shape index: {}]
  %s6 = inlined_call_operand.vmem [shape: f32[1,120], index: 6, kind: input, shape index: {}]
  %s7 = inlined_call_operand.vmem [shape: f32[120,84], index: 7, kind: input, shape index: {}]
  %s8 = inlined_call_operand.vmem [shape: f32[1,84], index: 8, kind: input, shape index: {}]
  %s9 = inlined_call_operand.vmem [shape: f32[84,128], index: 9, kind: input, shape index: {}]
  %s10 = inlined_call_operand.vmem [shape: f32[1,128], index: 10, kind: input, shape index: {}]
  %s11 = inlined_call_operand.vmem [shape: f32[8,128], index: 11, kind: output, shape index: {}]
  %s12 = sld [smem:[#allocation0]]
  $region54: #{tutorialnet_pallas.1} parent=0
    _
  %s14 = ssub.s32 1, %s12
  %s15 = scalar_select 0, %s14, %s12
  // Predicated region
  $region2: #{tutorialnet_pallas.1} parent=0 // pred_check
    _
  $region3: #{tutorialnet_pallas.1} parent=0 // pred_check_branch
    %17 = sbr.rel (0) target = $region5
  $region4: #{tutorialnet_pallas.1} parent=0 // pred_region
    _
  $region5: #{tutorialnet_pallas.1} parent=0 // pred_fallthru
    _
  // Predicated region
  $region6: #{tutorialnet_pallas.1} parent=0 // pred_check
    _
  $region7: #{tutorialnet_pallas.1} parent=0 // pred_check_branch
    %19 = sbr.rel (0) target = $region9
  $region8: #{tutorialnet_pallas.1} parent=0 // pred_region
    _
  $region9: #{tutorialnet_pallas.1} parent=0 // pred_fallthru
    _
  // Predicated region
  $region10: #{tutorialnet_pallas.1} parent=0 // pred_check
    _
  $region11: #{tutorialnet_pallas.1} parent=0 // pred_check_branch
    %21 = sbr.rel (0) target = $region13
  $region12: #{tutorialnet_pallas.1} parent=0 // pred_region
    _
  $region13: #{tutorialnet_pallas.1} parent=0 // pred_fallthru
    _
  // Predicated region
  $region14: #{tutorialnet_pallas.1} parent=0 // pred_check
    _
  $region15: #{tutorialnet_pallas.1} parent=0 // pred_check_branch
    %23 = sbr.rel (0) target = $region17
  $region16: #{tutorialnet_pallas.1} parent=0 // pred_region
    _
  $region17: #{tutorialnet_pallas.1} parent=0 // pred_fallthru
    _
  // Predicated region
  $region18: #{tutorialnet_pallas.1} parent=0 // pred_check
    _
  $region19: #{tutorialnet_pallas.1} parent=0 // pred_check_branch
    %25 = sbr.rel (0) target = $region21
  $region20: #{tutorialnet_pallas.1} parent=0 // pred_region
    _
  $region21: #{tutorialnet_pallas.1} parent=0 // pred_fallthru
    _
  // Predicated region
  $region22: #{tutorialnet_pallas.1} parent=0 // pred_check
    _
  $region23: #{tutorialnet_pallas.1} parent=0 // pred_check_branch
    %27 = sbr.rel (0) target = $region25
  $region24: #{tutorialnet_pallas.1} parent=0 // pred_region
    _
  $region25: #{tutorialnet_pallas.1} parent=0 // pred_fallthru
    _
  // Predicated region
  $region26: #{tutorialnet_pallas.1} parent=0 // pred_check
    _
  $region27: #{tutorialnet_pallas.1} parent=0 // pred_check_branch
    %29 = sbr.rel (0) target = $region29
  $region28: #{tutorialnet_pallas.1} parent=0 // pred_region
    _
  $region29: #{tutorialnet_pallas.1} parent=0 // pred_fallthru
    _
  // Predicated region
  $region30: #{tutorialnet_pallas.1} parent=0 // pred_check
    _
  $region31: #{tutorialnet_pallas.1} parent=0 // pred_check_branch
    %31 = sbr.rel (0) target = $region33
  $region32: #{tutorialnet_pallas.1} parent=0 // pred_region
    _
  $region33: #{tutorialnet_pallas.1} parent=0 // pred_fallthru
    _
  // Predicated region
  $region34: #{tutorialnet_pallas.1} parent=0 // pred_check
    _
  $region35: #{tutorialnet_pallas.1} parent=0 // pred_check_branch
    %33 = sbr.rel (0) target = $region37
  $region36: #{tutorialnet_pallas.1} parent=0 // pred_region
    _
  $region37: #{tutorialnet_pallas.1} parent=0 // pred_fallthru
    _
  // Predicated region
  $region38: #{tutorialnet_pallas.1} parent=0 // pred_check
    _
  $region39: #{tutorialnet_pallas.1} parent=0 // pred_check_branch
    %35 = sbr.rel (0) target = $region41
  $region40: #{tutorialnet_pallas.1} parent=0 // pred_region
    _
  $region41: #{tutorialnet_pallas.1} parent=0 // pred_fallthru
    _
  // Predicated region
  $region42: #{tutorialnet_pallas.1} parent=0 // pred_check
    _
  $region43: #{tutorialnet_pallas.1} parent=0 // pred_check_branch
    %37 = sbr.rel (0) target = $region45
  $region44: #{tutorialnet_pallas.1} parent=0 // pred_region
    _
  $region45: #{tutorialnet_pallas.1} parent=0 // pred_fallthru
    _
  %v38 = vld [vmem:[%s0] sm:$0xff]
  %v39 = vld [vmem:[%s0 + $0x8] sm:$0xff]
  %v40 = vld [vmem:[%s0 + $0x10] sm:$0xff]
  %v41 = vld [vmem:[%s0 + $0x18] sm:$0xff]
  %v42 = vld [vmem:[%s0 + $0x20] sm:$0xff]
  %v43 = vld [vmem:[%s0 + $0x28] sm:$0xff]
  %v44 = vld [vmem:[%s0 + $0x30] sm:$0xff]
  %v45 = vld [vmem:[%s0 + $0x38] sm:$0xff]
  %v46 = vld [vmem:[%s0 + $0x40] sm:$0xff]
  %v47 = vld [vmem:[%s0 + $0x48] sm:$0xff]
  %v48 = vld [vmem:[%s0 + $0x50] sm:$0xff]
  %v49 = vld [vmem:[%s0 + $0x58] sm:$0xff]
  %v50 = vld [vmem:[%s0 + $0x60] sm:$0xff]
  %v51 = vld [vmem:[%s0 + $0x68] sm:$0xff]
  %v52 = vld [vmem:[%s0 + $0x70] sm:$0xff]
  %v53 = vld [vmem:[%s0 + $0x78] sm:$0xff]
  %v54 = vld [vmem:[%s0 + $0x80] sm:$0xff]
  %v55 = vld [vmem:[%s0 + $0x88] sm:$0xff]
  %v56 = vld [vmem:[%s0 + $0x90] sm:$0xff]
  %v57 = vld [vmem:[%s0 + $0x98] sm:$0xff]
  %v58 = vld [vmem:[%s0 + $0xa0] sm:$0xff]
  %v59 = vld [vmem:[%s0 + $0xa8] sm:$0xff]
  %v60 = vld [vmem:[%s0 + $0xb0] sm:$0xff]
  %v61 = vld [vmem:[%s0 + $0xb8] sm:$0xff]
  %v62 = vld [vmem:[%s0 + $0xc0] sm:$0xff]
  %v63 = vld [vmem:[%s0 + $0xc8] sm:$0xff]
  %v64 = vld [vmem:[%s0 + $0xd0] sm:$0xff]
  %v65 = vld [vmem:[%s0 + $0xd8] sm:$0xff]
  %v66 = vld [vmem:[%s1] sm:$0xff]
  %v67 = vld [vmem:[%s1 + $0x8] sm:$0xff]
  %v68 = vld [vmem:[%s1 + $0x10] sm:$0xff]
  %v69 = vld [vmem:[%s1 + $0x18] sm:$0xff]
  %v70 = vld [vmem:[%s1 + $0x20] sm:$0xff]
  %v71 = vld [vmem:[%s1 + $0x28] sm:$0xff]
  %v72 = vld [vmem:[%s1 + $0x30] sm:$0xff]
  %v73 = vld [vmem:[%s1 + $0x38] sm:$0xff]
  %v74 = vld [vmem:[%s1 + $0x40] sm:$0xff]
  %v75 = vld [vmem:[%s1 + $0x48] sm:$0xff]
  %v76 = vld [vmem:[%s1 + $0x50] sm:$0xff]
  %v77 = vld [vmem:[%s1 + $0x58] sm:$0xff]
  %v78 = vld [vmem:[%s1 + $0x60] sm:$0xff]
  %v79 = vld [vmem:[%s1 + $0x68] sm:$0xff]
  %v80 = vld [vmem:[%s1 + $0x70] sm:$0xff]
  %v81 = vld [vmem:[%s1 + $0x78] sm:$0xff]
  %v82 = vld [vmem:[%s1 + $0x80] sm:$0xff]
  %v83 = vld [vmem:[%s1 + $0x88] sm:$0xff]
  %v84 = vld [vmem:[%s1 + $0x90] sm:$0xff]
  %v85 = vld [vmem:[%s1 + $0x98] sm:$0xff]
  %v86 = vld [vmem:[%s1 + $0xa0] sm:$0xff]
  %v87 = vld [vmem:[%s1 + $0xa8] sm:$0xff]
  %v88 = vld [vmem:[%s1 + $0xb0] sm:$0xff]
  %v89 = vld [vmem:[%s1 + $0xb8] sm:$0xff]
  %v90 = vld [vmem:[%s1 + $0xc0] sm:$0xff]
  %v91 = vld [vmem:[%s1 + $0xc8] sm:$0xff]
  %v92 = vld [vmem:[%s1 + $0xd0] sm:$0xff]
  %v93 = vld [vmem:[%s1 + $0xd8] sm:$0xff]
  %v94 = vld [vmem:[%s1 + $0xe0] sm:$0xff]
  %v95 = vld [vmem:[%s1 + $0xe8] sm:$0xff]
  %v96 = vld [vmem:[%s1 + $0xf0] sm:$0xff]
  %v97 = vld [vmem:[%s1 + $0xf8] sm:$0xff]
  %98 = vmatpush.msra.mxu0 %v96
  %99 = vmatpush.msra.mxu0 %v94
  %100 = vmatpush.msra.mxu0 %v92
  %101 = vmatpush.msra.mxu0 %v90
  %102 = vmatpush.msra.mxu0 %v88
  %103 = vmatpush.msra.mxu0 %v86
  %104 = vmatpush.msra.mxu0 %v84
  %105 = vmatpush.msra.mxu0 %v82
  %106 = vmatpush.msra.mxu0 %v80
  %107 = vmatpush.msra.mxu0 %v78
  %108 = vmatpush.msra.mxu0 %v76
  %109 = vmatpush.msra.mxu0 %v74
  %110 = vmatpush.msra.mxu0 %v72
  %111 = vmatpush.msra.mxu0 %v70
  %112 = vmatpush.msra.mxu0 %v68
  %113 = vmatpush.msra.mxu0 %v66
  %114 = vmatmul.f32.gmra.mxu0 %v38
  %v115 = vpop.f32.mrf.mxu0
  %v116 = vadd.f32 0.0, %v115
  %117 = vmatmul.f32.gmra.mxu0 %v39
  %v118 = vpop.f32.mrf.mxu0
  %v119 = vadd.f32 0.0, %v118
  %120 = vmatmul.f32.gmra.mxu0 %v40
  %v121 = vpop.f32.mrf.mxu0
  %v122 = vadd.f32 0.0, %v121
  %123 = vmatmul.f32.gmra.mxu0 %v41
  %v124 = vpop.f32.mrf.mxu0
  %v125 = vadd.f32 0.0, %v124
  %126 = vmatmul.f32.gmra.mxu0 %v42
  %v127 = vpop.f32.mrf.mxu0
  %v128 = vadd.f32 0.0, %v127
  %129 = vmatmul.f32.gmra.mxu0 %v43
  %v130 = vpop.f32.mrf.mxu0
  %v131 = vadd.f32 0.0, %v130
  %132 = vmatmul.f32.gmra.mxu0 %v44
  %v133 = vpop.f32.mrf.mxu0
  %v134 = vadd.f32 0.0, %v133
  %135 = vmatmul.f32.gmra.mxu0 %v45
  %v136 = vpop.f32.mrf.mxu0
  %v137 = vadd.f32 0.0, %v136
  %138 = vmatmul.f32.gmra.mxu0 %v46
  %v139 = vpop.f32.mrf.mxu0
  %v140 = vadd.f32 0.0, %v139
  %141 = vmatmul.f32.gmra.mxu0 %v47
  %v142 = vpop.f32.mrf.mxu0
  %v143 = vadd.f32 0.0, %v142
  %144 = vmatmul.f32.gmra.mxu0 %v48
  %v145 = vpop.f32.mrf.mxu0
  %v146 = vadd.f32 0.0, %v145
  %147 = vmatmul.f32.gmra.mxu0 %v49
  %v148 = vpop.f32.mrf.mxu0
  %v149 = vadd.f32 0.0, %v148
  %150 = vmatmul.f32.gmra.mxu0 %v50
  %v151 = vpop.f32.mrf.mxu0
  %v152 = vadd.f32 0.0, %v151
  %153 = vmatmul.f32.gmra.mxu0 %v51
  %v154 = vpop.f32.mrf.mxu0
  %v155 = vadd.f32 0.0, %v154
  %156 = vmatmul.f32.gmra.mxu0 %v52
  %v157 = vpop.f32.mrf.mxu0
  %v158 = vadd.f32 0.0, %v157
  %159 = vmatmul.f32.gmra.mxu0 %v53
  %v160 = vpop.f32.mrf.mxu0
  %v161 = vadd.f32 0.0, %v160
  %162 = vmatmul.f32.gmra.mxu0 %v54
  %v163 = vpop.f32.mrf.mxu0
  %v164 = vadd.f32 0.0, %v163
  %165 = vmatmul.f32.gmra.mxu0 %v55
  %v166 = vpop.f32.mrf.mxu0
  %v167 = vadd.f32 0.0, %v166
  %168 = vmatmul.f32.gmra.mxu0 %v56
  %v169 = vpop.f32.mrf.mxu0
  %v170 = vadd.f32 0.0, %v169
  %171 = vmatmul.f32.gmra.mxu0 %v57
  %v172 = vpop.f32.mrf.mxu0
  %v173 = vadd.f32 0.0, %v172
  %174 = vmatmul.f32.gmra.mxu0 %v58
  %v175 = vpop.f32.mrf.mxu0
  %v176 = vadd.f32 0.0, %v175
  %177 = vmatmul.f32.gmra.mxu0 %v59
  %v178 = vpop.f32.mrf.mxu0
  %v179 = vadd.f32 0.0, %v178
  %180 = vmatmul.f32.gmra.mxu0 %v60
  %v181 = vpop.f32.mrf.mxu0
  %v182 = vadd.f32 0.0, %v181
  %183 = vmatmul.f32.gmra.mxu0 %v61
  %v184 = vpop.f32.mrf.mxu0
  %v185 = vadd.f32 0.0, %v184
  %186 = vmatmul.f32.gmra.mxu0 %v62
  %v187 = vpop.f32.mrf.mxu0
  %v188 = vadd.f32 0.0, %v187
  %189 = vmatmul.f32.gmra.mxu0 %v63
  %v190 = vpop.f32.mrf.mxu0
  %v191 = vadd.f32 0.0, %v190
  %192 = vmatmul.f32.gmra.mxu0 %v64
  %v193 = vpop.f32.mrf.mxu0
  %v194 = vadd.f32 0.0, %v193
  %195 = vmatmul.f32.gmra.mxu0 %v65
  %v196 = vpop.f32.mrf.mxu0
  %v197 = vadd.f32 0.0, %v196
  %198 = vdwg.mxu0
  %199 = vmatpush.msra.mxu0 %v97
  %200 = vmatpush.msra.mxu0 %v95
  %201 = vmatpush.msra.mxu0 %v93
  %202 = vmatpush.msra.mxu0 %v91
  %203 = vmatpush.msra.mxu0 %v89
  %204 = vmatpush.msra.mxu0 %v87
  %205 = vmatpush.msra.mxu0 %v85
  %206 = vmatpush.msra.mxu0 %v83
  %207 = vmatpush.msra.mxu0 %v81
  %208 = vmatpush.msra.mxu0 %v79
  %209 = vmatpush.msra.mxu0 %v77
  %210 = vmatpush.msra.mxu0 %v75
  %211 = vmatpush.msra.mxu0 %v73
  %212 = vmatpush.msra.mxu0 %v71
  %213 = vmatpush.msra.mxu0 %v69
  %214 = vmatpush.msra.mxu0 %v67
  %215 = vmatmul.f32.gmra.mxu0 %v38
  %v216 = vpop.f32.mrf.mxu0
  %v217 = vadd.f32 0.0, %v216
  %218 = vmatmul.f32.gmra.mxu0 %v39
  %v219 = vpop.f32.mrf.mxu0
  %v220 = vadd.f32 0.0, %v219
  %221 = vmatmul.f32.gmra.mxu0 %v40
  %v222 = vpop.f32.mrf.mxu0
  %v223 = vadd.f32 0.0, %v222
  %224 = vmatmul.f32.gmra.mxu0 %v41
  %v225 = vpop.f32.mrf.mxu0
  %v226 = vadd.f32 0.0, %v225
  %227 = vmatmul.f32.gmra.mxu0 %v42
  %v228 = vpop.f32.mrf.mxu0
  %v229 = vadd.f32 0.0, %v228
  %230 = vmatmul.f32.gmra.mxu0 %v43
  %v231 = vpop.f32.mrf.mxu0
  %v232 = vadd.f32 0.0, %v231
  %233 = vmatmul.f32.gmra.mxu0 %v44
  %v234 = vpop.f32.mrf.mxu0
  %v235 = vadd.f32 0.0, %v234
  %236 = vmatmul.f32.gmra.mxu0 %v45
  %v237 = vpop.f32.mrf.mxu0
  %v238 = vadd.f32 0.0, %v237
  %239 = vmatmul.f32.gmra.mxu0 %v46
  %v240 = vpop.f32.mrf.mxu0
  %v241 = vadd.f32 0.0, %v240
  %242 = vmatmul.f32.gmra.mxu0 %v47
  %v243 = vpop.f32.mrf.mxu0
  %v244 = vadd.f32 0.0, %v243
  %245 = vmatmul.f32.gmra.mxu0 %v48
  %v246 = vpop.f32.mrf.mxu0
  %v247 = vadd.f32 0.0, %v246
  %248 = vmatmul.f32.gmra.mxu0 %v49
  %v249 = vpop.f32.mrf.mxu0
  %v250 = vadd.f32 0.0, %v249
  %251 = vmatmul.f32.gmra.mxu0 %v50
  %v252 = vpop.f32.mrf.mxu0
  %v253 = vadd.f32 0.0, %v252
  %254 = vmatmul.f32.gmra.mxu0 %v51
  %v255 = vpop.f32.mrf.mxu0
  %v256 = vadd.f32 0.0, %v255
  %257 = vmatmul.f32.gmra.mxu0 %v52
  %v258 = vpop.f32.mrf.mxu0
  %v259 = vadd.f32 0.0, %v258
  %260 = vmatmul.f32.gmra.mxu0 %v53
  %v261 = vpop.f32.mrf.mxu0
  %v262 = vadd.f32 0.0, %v261
  %263 = vmatmul.f32.gmra.mxu0 %v54
  %v264 = vpop.f32.mrf.mxu0
  %v265 = vadd.f32 0.0, %v264
  %266 = vmatmul.f32.gmra.mxu0 %v55
  %v267 = vpop.f32.mrf.mxu0
  %v268 = vadd.f32 0.0, %v267
  %269 = vmatmul.f32.gmra.mxu0 %v56
  %v270 = vpop.f32.mrf.mxu0
  %v271 = vadd.f32 0.0, %v270
  %272 = vmatmul.f32.gmra.mxu0 %v57
  %v273 = vpop.f32.mrf.mxu0
  %v274 = vadd.f32 0.0, %v273
  %275 = vmatmul.f32.gmra.mxu0 %v58
  %v276 = vpop.f32.mrf.mxu0
  %v277 = vadd.f32 0.0, %v276
  %278 = vmatmul.f32.gmra.mxu0 %v59
  %v279 = vpop.f32.mrf.mxu0
  %v280 = vadd.f32 0.0, %v279
  %281 = vmatmul.f32.gmra.mxu0 %v60
  %v282 = vpop.f32.mrf.mxu0
  %v283 = vadd.f32 0.0, %v282
  %284 = vmatmul.f32.gmra.mxu0 %v61
  %v285 = vpop.f32.mrf.mxu0
  %v286 = vadd.f32 0.0, %v285
  %287 = vmatmul.f32.gmra.mxu0 %v62
  %v288 = vpop.f32.mrf.mxu0
  %v289 = vadd.f32 0.0, %v288
  %290 = vmatmul.f32.gmra.mxu0 %v63
  %v291 = vpop.f32.mrf.mxu0
  %v292 = vadd.f32 0.0, %v291
  %293 = vmatmul.f32.gmra.mxu0 %v64
  %v294 = vpop.f32.mrf.mxu0
  %v295 = vadd.f32 0.0, %v294
  %296 = vmatmul.f32.gmra.mxu0 %v65
  %v297 = vpop.f32.mrf.mxu0
  %v298 = vadd.f32 0.0, %v297
  %299 = vdwg.mxu0
  %300 = vst [vmem:[#allocation2] sm:$0xff] %v116
  %301 = vst [vmem:[#allocation2 + $0x8] sm:$0xff] %v217
  %302 = vst [vmem:[#allocation2 + $0x10] sm:$0xff] %v119
  %303 = vst [vmem:[#allocation2 + $0x18] sm:$0xff] %v220
  %304 = vst [vmem:[#allocation2 + $0x20] sm:$0xff] %v122
  %305 = vst [vmem:[#allocation2 + $0x28] sm:$0xff] %v223
  %306 = vst [vmem:[#allocation2 + $0x30] sm:$0xff] %v125
  %307 = vst [vmem:[#allocation2 + $0x38] sm:$0xff] %v226
  %308 = vst [vmem:[#allocation2 + $0x40] sm:$0xff] %v128
  %309 = vst [vmem:[#allocation2 + $0x48] sm:$0xff] %v229
  %310 = vst [vmem:[#allocation2 + $0x50] sm:$0xff] %v131
  %311 = vst [vmem:[#allocation2 + $0x58] sm:$0xff] %v232
  %312 = vst [vmem:[#allocation2 + $0x60] sm:$0xff] %v134
  %313 = vst [vmem:[#allocation2 + $0x68] sm:$0xff] %v235
  %314 = vst [vmem:[#allocation2 + $0x70] sm:$0xff] %v137
  %315 = vst [vmem:[#allocation2 + $0x78] sm:$0xff] %v238
  %316 = vst [vmem:[#allocation2 + $0x80] sm:$0xff] %v140
  %317 = vst [vmem:[#allocation2 + $0x88] sm:$0xff] %v241
  %318 = vst [vmem:[#allocation2 + $0x90] sm:$0xff] %v143
  %319 = vst [vmem:[#allocation2 + $0x98] sm:$0xff] %v244
  %320 = vst [vmem:[#allocation2 + $0xa0] sm:$0xff] %v146
  %321 = vst [vmem:[#allocation2 + $0xa8] sm:$0xff] %v247
  %322 = vst [vmem:[#allocation2 + $0xb0] sm:$0xff] %v149
  %323 = vst [vmem:[#allocation2 + $0xb8] sm:$0xff] %v250
  %324 = vst [vmem:[#allocation2 + $0xc0] sm:$0xff] %v152
  %325 = vst [vmem:[#allocation2 + $0xc8] sm:$0xff] %v253
  %326 = vst [vmem:[#allocation2 + $0xd0] sm:$0xff] %v155
  %327 = vst [vmem:[#allocation2 + $0xd8] sm:$0xff] %v256
  %328 = vst [vmem:[#allocation2 + $0xe0] sm:$0xff] %v158
  %329 = vst [vmem:[#allocation2 + $0xe8] sm:$0xff] %v259
  %330 = vst [vmem:[#allocation2 + $0xf0] sm:$0xff] %v161
  %331 = vst [vmem:[#allocation2 + $0xf8] sm:$0xff] %v262
  %332 = vst [vmem:[#allocation2 + $0x100] sm:$0xff] %v164
  %333 = vst [vmem:[#allocation2 + $0x108] sm:$0xff] %v265
  %334 = vst [vmem:[#allocation2 + $0x110] sm:$0xff] %v167
  %335 = vst [vmem:[#allocation2 + $0x118] sm:$0xff] %v268
  %336 = vst [vmem:[#allocation2 + $0x120] sm:$0xff] %v170
  %337 = vst [vmem:[#allocation2 + $0x128] sm:$0xff] %v271
  %338 = vst [vmem:[#allocation2 + $0x130] sm:$0xff] %v173
  %339 = vst [vmem:[#allocation2 + $0x138] sm:$0xff] %v274
  %340 = vst [vmem:[#allocation2 + $0x140] sm:$0xff] %v176
  %341 = vst [vmem:[#allocation2 + $0x148] sm:$0xff] %v277
  %342 = vst [vmem:[#allocation2 + $0x150] sm:$0xff] %v179
  %343 = vst [vmem:[#allocation2 + $0x158] sm:$0xff] %v280
  %344 = vst [vmem:[#allocation2 + $0x160] sm:$0xff] %v182
  %345 = vst [vmem:[#allocation2 + $0x168] sm:$0xff] %v283
  %346 = vst [vmem:[#allocation2 + $0x170] sm:$0xff] %v185
  %347 = vst [vmem:[#allocation2 + $0x178] sm:$0xff] %v286
  %348 = vst [vmem:[#allocation2 + $0x180] sm:$0xff] %v188
  %349 = vst [vmem:[#allocation2 + $0x188] sm:$0xff] %v289
  %350 = vst [vmem:[#allocation2 + $0x190] sm:$0xff] %v191
  %351 = vst [vmem:[#allocation2 + $0x198] sm:$0xff] %v292
  %352 = vst [vmem:[#allocation2 + $0x1a0] sm:$0xff] %v194
  %353 = vst [vmem:[#allocation2 + $0x1a8] sm:$0xff] %v295
  %354 = vst [vmem:[#allocation2 + $0x1b0] sm:$0xff] %v197
  %355 = vst [vmem:[#allocation2 + $0x1b8] sm:$0xff] %v298
  %s356 = scalar_lea.vmem %s0, 8
  %v357 = vld [vmem:[%s356] sm:$0xff]
  %v358 = vld [vmem:[%s356 + $0x8] sm:$0xff]
  %v359 = vld [vmem:[%s356 + $0x10] sm:$0xff]
  %v360 = vld [vmem:[%s356 + $0x18] sm:$0xff]
  %v361 = vld [vmem:[%s356 + $0x20] sm:$0xff]
  %v362 = vld [vmem:[%s356 + $0x28] sm:$0xff]
  %v363 = vld [vmem:[%s356 + $0x30] sm:$0xff]
  %v364 = vld [vmem:[%s356 + $0x38] sm:$0xff]
  %v365 = vld [vmem:[%s356 + $0x40] sm:$0xff]
  %v366 = vld [vmem:[%s356 + $0x48] sm:$0xff]
  %v367 = vld [vmem:[%s356 + $0x50] sm:$0xff]
  %v368 = vld [vmem:[%s356 + $0x58] sm:$0xff]
  %v369 = vld [vmem:[%s356 + $0x60] sm:$0xff]
  %v370 = vld [vmem:[%s356 + $0x68] sm:$0xff]
  %v371 = vld [vmem:[%s356 + $0x70] sm:$0xff]
  %v372 = vld [vmem:[%s356 + $0x78] sm:$0xff]
  %v373 = vld [vmem:[%s356 + $0x80] sm:$0xff]
  %v374 = vld [vmem:[%s356 + $0x88] sm:$0xff]
  %v375 = vld [vmem:[%s356 + $0x90] sm:$0xff]
  %v376 = vld [vmem:[%s356 + $0x98] sm:$0xff]
  %v377 = vld [vmem:[%s356 + $0xa0] sm:$0xff]
  %v378 = vld [vmem:[%s356 + $0xa8] sm:$0xff]
  %v379 = vld [vmem:[%s356 + $0xb0] sm:$0xff]
  %v380 = vld [vmem:[%s356 + $0xb8] sm:$0xff]
  %v381 = vld [vmem:[%s356 + $0xc0] sm:$0xff]
  %v382 = vld [vmem:[%s356 + $0xc8] sm:$0xff]
  %v383 = vld [vmem:[%s356 + $0xd0] sm:$0xff]
  %v384 = vld [vmem:[%s356 + $0xd8] sm:$0xff]
  %s385 = scalar_lea.vmem %s1, 256
  %v386 = vld [vmem:[%s385] sm:$0xff]
  %v387 = vld [vmem:[%s385 + $0x8] sm:$0xff]
  %v388 = vld [vmem:[%s385 + $0x10] sm:$0xff]
  %v389 = vld [vmem:[%s385 + $0x18] sm:$0xff]
  %v390 = vld [vmem:[%s385 + $0x20] sm:$0xff]
  %v391 = vld [vmem:[%s385 + $0x28] sm:$0xff]
  %v392 = vld [vmem:[%s385 + $0x30] sm:$0xff]
  %v393 = vld [vmem:[%s385 + $0x38] sm:$0xff]
  %v394 = vld [vmem:[%s385 + $0x40] sm:$0xff]
  %v395 = vld [vmem:[%s385 + $0x48] sm:$0xff]
  %v396 = vld [vmem:[%s385 + $0x50] sm:$0xff]
  %v397 = vld [vmem:[%s385 + $0x58] sm:$0xff]
  %v398 = vld [vmem:[%s385 + $0x60] sm:$0xff]
  %v399 = vld [vmem:[%s385 + $0x68] sm:$0xff]
  %v400 = vld [vmem:[%s385 + $0x70] sm:$0xff]
  %v401 = vld [vmem:[%s385 + $0x78] sm:$0xff]
  %v402 = vld [vmem:[%s385 + $0x80] sm:$0xff]
  %v403 = vld [vmem:[%s385 + $0x88] sm:$0xff]
  %v404 = vld [vmem:[%s385 + $0x90] sm:$0xff]
  %v405 = vld [vmem:[%s385 + $0x98] sm:$0xff]
  %v406 = vld [vmem:[%s385 + $0xa0] sm:$0xff]
  %v407 = vld [vmem:[%s385 + $0xa8] sm:$0xff]
  %v408 = vld [vmem:[%s385 + $0xb0] sm:$0xff]
  %v409 = vld [vmem:[%s385 + $0xb8] sm:$0xff]
  %v410 = vld [vmem:[%s385 + $0xc0] sm:$0xff]
  %v411 = vld [vmem:[%s385 + $0xc8] sm:$0xff]
  %v412 = vld [vmem:[%s385 + $0xd0] sm:$0xff]
  %v413 = vld [vmem:[%s385 + $0xd8] sm:$0xff]
  %v414 = vld [vmem:[%s385 + $0xe0] sm:$0xff]
  %v415 = vld [vmem:[%s385 + $0xe8] sm:$0xff]
  %v416 = vld [vmem:[%s385 + $0xf0] sm:$0xff]
  %v417 = vld [vmem:[%s385 + $0xf8] sm:$0xff]
  %418 = vmatpush.msra.mxu0 %v416
  %419 = vmatpush.msra.mxu0 %v414
  %420 = vmatpush.msra.mxu0 %v412
  %421 = vmatpush.msra.mxu0 %v410
  %422 = vmatpush.msra.mxu0 %v408
  %423 = vmatpush.msra.mxu0 %v406
  %424 = vmatpush.msra.mxu0 %v404
  %425 = vmatpush.msra.mxu0 %v402
  %426 = vmatpush.msra.mxu0 %v400
  %427 = vmatpush.msra.mxu0 %v398
  %428 = vmatpush.msra.mxu0 %v396
  %429 = vmatpush.msra.mxu0 %v394
  %430 = vmatpush.msra.mxu0 %v392
  %431 = vmatpush.msra.mxu0 %v390
  %432 = vmatpush.msra.mxu0 %v388
  %433 = vmatpush.msra.mxu0 %v386
  %434 = vmatmul.f32.gmra.mxu0 %v357
  %v435 = vpop.f32.mrf.mxu0
  %v436 = vadd.f32 0.0, %v435
  %437 = vmatmul.f32.gmra.mxu0 %v358
  %v438 = vpop.f32.mrf.mxu0
  %v439 = vadd.f32 0.0, %v438
  %440 = vmatmul.f32.gmra.mxu0 %v359
  %v441 = vpop.f32.mrf.mxu0
  %v442 = vadd.f32 0.0, %v441
  %443 = vmatmul.f32.gmra.mxu0 %v360
  %v444 = vpop.f32.mrf.mxu0
  %v445 = vadd.f32 0.0, %v444
  %446 = vmatmul.f32.gmra.mxu0 %v361
  %v447 = vpop.f32.mrf.mxu0
  %v448 = vadd.f32 0.0, %v447
  %449 = vmatmul.f32.gmra.mxu0 %v362
  %v450 = vpop.f32.mrf.mxu0
  %v451 = vadd.f32 0.0, %v450
  %452 = vmatmul.f32.gmra.mxu0 %v363
  %v453 = vpop.f32.mrf.mxu0
  %v454 = vadd.f32 0.0, %v453
  %455 = vmatmul.f32.gmra.mxu0 %v364
  %v456 = vpop.f32.mrf.mxu0
  %v457 = vadd.f32 0.0, %v456
  %458 = vmatmul.f32.gmra.mxu0 %v365
  %v459 = vpop.f32.mrf.mxu0
  %v460 = vadd.f32 0.0, %v459
  %461 = vmatmul.f32.gmra.mxu0 %v366
  %v462 = vpop.f32.mrf.mxu0
  %v463 = vadd.f32 0.0, %v462
  %464 = vmatmul.f32.gmra.mxu0 %v367
  %v465 = vpop.f32.mrf.mxu0
  %v466 = vadd.f32 0.0, %v465
  %467 = vmatmul.f32.gmra.mxu0 %v368
  %v468 = vpop.f32.mrf.mxu0
  %v469 = vadd.f32 0.0, %v468
  %470 = vmatmul.f32.gmra.mxu0 %v369
  %v471 = vpop.f32.mrf.mxu0
  %v472 = vadd.f32 0.0, %v471
  %473 = vmatmul.f32.gmra.mxu0 %v370
  %v474 = vpop.f32.mrf.mxu0
  %v475 = vadd.f32 0.0, %v474
  %476 = vmatmul.f32.gmra.mxu0 %v371
  %v477 = vpop.f32.mrf.mxu0
  %v478 = vadd.f32 0.0, %v477
  %479 = vmatmul.f32.gmra.mxu0 %v372
  %v480 = vpop.f32.mrf.mxu0
  %v481 = vadd.f32 0.0, %v480
  %482 = vmatmul.f32.gmra.mxu0 %v373
  %v483 = vpop.f32.mrf.mxu0
  %v484 = vadd.f32 0.0, %v483
  %485 = vmatmul.f32.gmra.mxu0 %v374
  %v486 = vpop.f32.mrf.mxu0
  %v487 = vadd.f32 0.0, %v486
  %488 = vmatmul.f32.gmra.mxu0 %v375
  %v489 = vpop.f32.mrf.mxu0
  %v490 = vadd.f32 0.0, %v489
  %491 = vmatmul.f32.gmra.mxu0 %v376
  %v492 = vpop.f32.mrf.mxu0
  %v493 = vadd.f32 0.0, %v492
  %494 = vmatmul.f32.gmra.mxu0 %v377
  %v495 = vpop.f32.mrf.mxu0
  %v496 = vadd.f32 0.0, %v495
  %497 = vmatmul.f32.gmra.mxu0 %v378
  %v498 = vpop.f32.mrf.mxu0
  %v499 = vadd.f32 0.0, %v498
  %500 = vmatmul.f32.gmra.mxu0 %v379
  %v501 = vpop.f32.mrf.mxu0
  %v502 = vadd.f32 0.0, %v501
  %503 = vmatmul.f32.gmra.mxu0 %v380
  %v504 = vpop.f32.mrf.mxu0
  %v505 = vadd.f32 0.0, %v504
  %506 = vmatmul.f32.gmra.mxu0 %v381
  %v507 = vpop.f32.mrf.mxu0
  %v508 = vadd.f32 0.0, %v507
  %509 = vmatmul.f32.gmra.mxu0 %v382
  %v510 = vpop.f32.mrf.mxu0
  %v511 = vadd.f32 0.0, %v510
  %512 = vmatmul.f32.gmra.mxu0 %v383
  %v513 = vpop.f32.mrf.mxu0
  %v514 = vadd.f32 0.0, %v513
  %515 = vmatmul.f32.gmra.mxu0 %v384
  %v516 = vpop.f32.mrf.mxu0
  %v517 = vadd.f32 0.0, %v516
  %518 = vdwg.mxu0
  %519 = vmatpush.msra.mxu0 %v417
  %520 = vmatpush.msra.mxu0 %v415
  %521 = vmatpush.msra.mxu0 %v413
  %522 = vmatpush.msra.mxu0 %v411
  %523 = vmatpush.msra.mxu0 %v409
  %524 = vmatpush.msra.mxu0 %v407
  %525 = vmatpush.msra.mxu0 %v405
  %526 = vmatpush.msra.mxu0 %v403
  %527 = vmatpush.msra.mxu0 %v401
  %528 = vmatpush.msra.mxu0 %v399
  %529 = vmatpush.msra.mxu0 %v397
  %530 = vmatpush.msra.mxu0 %v395
  %531 = vmatpush.msra.mxu0 %v393
  %532 = vmatpush.msra.mxu0 %v391
  %533 = vmatpush.msra.mxu0 %v389
  %534 = vmatpush.msra.mxu0 %v387
  %535 = vmatmul.f32.gmra.mxu0 %v357
  %v536 = vpop.f32.mrf.mxu0
  %v537 = vadd.f32 0.0, %v536
  %538 = vmatmul.f32.gmra.mxu0 %v358
  %v539 = vpop.f32.mrf.mxu0
  %v540 = vadd.f32 0.0, %v539
  %541 = vmatmul.f32.gmra.mxu0 %v359
  %v542 = vpop.f32.mrf.mxu0
  %v543 = vadd.f32 0.0, %v542
  %544 = vmatmul.f32.gmra.mxu0 %v360
  %v545 = vpop.f32.mrf.mxu0
  %v546 = vadd.f32 0.0, %v545
  %547 = vmatmul.f32.gmra.mxu0 %v361
  %v548 = vpop.f32.mrf.mxu0
  %v549 = vadd.f32 0.0, %v548
  %550 = vmatmul.f32.gmra.mxu0 %v362
  %v551 = vpop.f32.mrf.mxu0
  %v552 = vadd.f32 0.0, %v551
  %553 = vmatmul.f32.gmra.mxu0 %v363
  %v554 = vpop.f32.mrf.mxu0
  %v555 = vadd.f32 0.0, %v554
  %556 = vmatmul.f32.gmra.mxu0 %v364
  %v557 = vpop.f32.mrf.mxu0
  %v558 = vadd.f32 0.0, %v557
  %559 = vmatmul.f32.gmra.mxu0 %v365
  %v560 = vpop.f32.mrf.mxu0
  %v561 = vadd.f32 0.0, %v560
  %562 = vmatmul.f32.gmra.mxu0 %v366
  %v563 = vpop.f32.mrf.mxu0
  %v564 = vadd.f32 0.0, %v563
  %565 = vmatmul.f32.gmra.mxu0 %v367
  %v566 = vpop.f32.mrf.mxu0
  %v567 = vadd.f32 0.0, %v566
  %568 = vmatmul.f32.gmra.mxu0 %v368
  %v569 = vpop.f32.mrf.mxu0
  %v570 = vadd.f32 0.0, %v569
  %571 = vmatmul.f32.gmra.mxu0 %v369
  %v572 = vpop.f32.mrf.mxu0
  %v573 = vadd.f32 0.0, %v572
  %574 = vmatmul.f32.gmra.mxu0 %v370
  %v575 = vpop.f32.mrf.mxu0
  %v576 = vadd.f32 0.0, %v575
  %577 = vmatmul.f32.gmra.mxu0 %v371
  %v578 = vpop.f32.mrf.mxu0
  %v579 = vadd.f32 0.0, %v578
  %580 = vmatmul.f32.gmra.mxu0 %v372
  %v581 = vpop.f32.mrf.mxu0
  %v582 = vadd.f32 0.0, %v581
  %583 = vmatmul.f32.gmra.mxu0 %v373
  %v584 = vpop.f32.mrf.mxu0
  %v585 = vadd.f32 0.0, %v584
  %586 = vmatmul.f32.gmra.mxu0 %v374
  %v587 = vpop.f32.mrf.mxu0
  %v588 = vadd.f32 0.0, %v587
  %589 = vmatmul.f32.gmra.mxu0 %v375
  %v590 = vpop.f32.mrf.mxu0
  %v591 = vadd.f32 0.0, %v590
  %592 = vmatmul.f32.gmra.mxu0 %v376
  %v593 = vpop.f32.mrf.mxu0
  %v594 = vadd.f32 0.0, %v593
  %595 = vmatmul.f32.gmra.mxu0 %v377
  %v596 = vpop.f32.mrf.mxu0
  %v597 = vadd.f32 0.0, %v596
  %598 = vmatmul.f32.gmra.mxu0 %v378
  %v599 = vpop.f32.mrf.mxu0
  %v600 = vadd.f32 0.0, %v599
  %601 = vmatmul.f32.gmra.mxu0 %v379
  %v602 = vpop.f32.mrf.mxu0
  %v603 = vadd.f32 0.0, %v602
  %604 = vmatmul.f32.gmra.mxu0 %v380
  %v605 = vpop.f32.mrf.mxu0
  %v606 = vadd.f32 0.0, %v605
  %607 = vmatmul.f32.gmra.mxu0 %v381
  %v608 = vpop.f32.mrf.mxu0
  %v609 = vadd.f32 0.0, %v608
  %610 = vmatmul.f32.gmra.mxu0 %v382
  %v611 = vpop.f32.mrf.mxu0
  %v612 = vadd.f32 0.0, %v611
  %613 = vmatmul.f32.gmra.mxu0 %v383
  %v614 = vpop.f32.mrf.mxu0
  %v615 = vadd.f32 0.0, %v614
  %616 = vmatmul.f32.gmra.mxu0 %v384
  %v617 = vpop.f32.mrf.mxu0
  %v618 = vadd.f32 0.0, %v617
  %619 = vdwg.mxu0
  %v620 = vld [vmem:[#allocation2] sm:$0xff]
  %v621 = vld [vmem:[#allocation2 + $0x8] sm:$0xff]
  %v622 = vld [vmem:[#allocation2 + $0x10] sm:$0xff]
  %v623 = vld [vmem:[#allocation2 + $0x18] sm:$0xff]
  %v624 = vld [vmem:[#allocation2 + $0x20] sm:$0xff]
  %v625 = vld [vmem:[#allocation2 + $0x28] sm:$0xff]
  %v626 = vld [vmem:[#allocation2 + $0x30] sm:$0xff]
  %v627 = vld [vmem:[#allocation2 + $0x38] sm:$0xff]
  %v628 = vld [vmem:[#allocation2 + $0x40] sm:$0xff]
  %v629 = vld [vmem:[#allocation2 + $0x48] sm:$0xff]
  %v630 = vld [vmem:[#allocation2 + $0x50] sm:$0xff]
  %v631 = vld [vmem:[#allocation2 + $0x58] sm:$0xff]
  %v632 = vld [vmem:[#allocation2 + $0x60] sm:$0xff]
  %v633 = vld [vmem:[#allocation2 + $0x68] sm:$0xff]
  %v634 = vld [vmem:[#allocation2 + $0x70] sm:$0xff]
  %v635 = vld [vmem:[#allocation2 + $0x78] sm:$0xff]
  %v636 = vld [vmem:[#allocation2 + $0x80] sm:$0xff]
  %v637 = vld [vmem:[#allocation2 + $0x88] sm:$0xff]
  %v638 = vld [vmem:[#allocation2 + $0x90] sm:$0xff]
  %v639 = vld [vmem:[#allocation2 + $0x98] sm:$0xff]
  %v640 = vld [vmem:[#allocation2 + $0xa0] sm:$0xff]
  %v641 = vld [vmem:[#allocation2 + $0xa8] sm:$0xff]
  %v642 = vld [vmem:[#allocation2 + $0xb0] sm:$0xff]
  %v643 = vld [vmem:[#allocation2 + $0xb8] sm:$0xff]
  %v644 = vld [vmem:[#allocation2 + $0xc0] sm:$0xff]
  %v645 = vld [vmem:[#allocation2 + $0xc8] sm:$0xff]
  %v646 = vld [vmem:[#allocation2 + $0xd0] sm:$0xff]
  %v647 = vld [vmem:[#allocation2 + $0xd8] sm:$0xff]
  %v648 = vld [vmem:[#allocation2 + $0xe0] sm:$0xff]
  %v649 = vld [vmem:[#allocation2 + $0xe8] sm:$0xff]
  %v650 = vld [vmem:[#allocation2 + $0xf0] sm:$0xff]
  %v651 = vld [vmem:[#allocation2 + $0xf8] sm:$0xff]
  %v652 = vld [vmem:[#allocation2 + $0x100] sm:$0xff]
  %v653 = vld [vmem:[#allocation2 + $0x108] sm:$0xff]
  %v654 = vld [vmem:[#allocation2 + $0x110] sm:$0xff]
  %v655 = vld [vmem:[#allocation2 + $0x118] sm:$0xff]
  %v656 = vld [vmem:[#allocation2 + $0x120] sm:$0xff]
  %v657 = vld [vmem:[#allocation2 + $0x128] sm:$0xff]
  %v658 = vld [vmem:[#allocation2 + $0x130] sm:$0xff]
  %v659 = vld [vmem:[#allocation2 + $0x138] sm:$0xff]
  %v660 = vld [vmem:[#allocation2 + $0x140] sm:$0xff]
  %v661 = vld [vmem:[#allocation2 + $0x148] sm:$0xff]
  %v662 = vld [vmem:[#allocation2 + $0x150] sm:$0xff]
  %v663 = vld [vmem:[#allocation2 + $0x158] sm:$0xff]
  %v664 = vld [vmem:[#allocation2 + $0x160] sm:$0xff]
  %v665 = vld [vmem:[#allocation2 + $0x168] sm:$0xff]
  %v666 = vld [vmem:[#allocation2 + $0x170] sm:$0xff]
  %v667 = vld [vmem:[#allocation2 + $0x178] sm:$0xff]
  %v668 = vld [vmem:[#allocation2 + $0x180] sm:$0xff]
  %v669 = vld [vmem:[#allocation2 + $0x188] sm:$0xff]
  %v670 = vld [vmem:[#allocation2 + $0x190] sm:$0xff]
  %v671 = vld [vmem:[#allocation2 + $0x198] sm:$0xff]
  %v672 = vld [vmem:[#allocation2 + $0x1a0] sm:$0xff]
  %v673 = vld [vmem:[#allocation2 + $0x1a8] sm:$0xff]
  %v674 = vld [vmem:[#allocation2 + $0x1b0] sm:$0xff]
  %v675 = vld [vmem:[#allocation2 + $0x1b8] sm:$0xff]
  %v676 = vadd.f32 %v620, %v436
  %v677 = vadd.f32 %v621, %v537
  %v678 = vadd.f32 %v622, %v439
  %v679 = vadd.f32 %v623, %v540
  %v680 = vadd.f32 %v624, %v442
  %v681 = vadd.f32 %v625, %v543
  %v682 = vadd.f32 %v626, %v445
  %v683 = vadd.f32 %v627, %v546
  %v684 = vadd.f32 %v628, %v448
  %v685 = vadd.f32 %v629, %v549
  %v686 = vadd.f32 %v630, %v451
  %v687 = vadd.f32 %v631, %v552
  %v688 = vadd.f32 %v632, %v454
  %v689 = vadd.f32 %v633, %v555
  %v690 = vadd.f32 %v634, %v457
  %v691 = vadd.f32 %v635, %v558
  %v692 = vadd.f32 %v636, %v460
  %v693 = vadd.f32 %v637, %v561
  %v694 = vadd.f32 %v638, %v463
  %v695 = vadd.f32 %v639, %v564
  %v696 = vadd.f32 %v640, %v466
  %v697 = vadd.f32 %v641, %v567
  %v698 = vadd.f32 %v642, %v469
  %v699 = vadd.f32 %v643, %v570
  %v700 = vadd.f32 %v644, %v472
  %v701 = vadd.f32 %v645, %v573
  %v702 = vadd.f32 %v646, %v475
  %v703 = vadd.f32 %v647, %v576
  %v704 = vadd.f32 %v648, %v478
  %v705 = vadd.f32 %v649, %v579
  %v706 = vadd.f32 %v650, %v481
  %v707 = vadd.f32 %v651, %v582
  %v708 = vadd.f32 %v652, %v484
  %v709 = vadd.f32 %v653, %v585
  %v710 = vadd.f32 %v654, %v487
  %v711 = vadd.f32 %v655, %v588
  %v712 = vadd.f32 %v656, %v490
  %v713 = vadd.f32 %v657, %v591
  %v714 = vadd.f32 %v658, %v493
  %v715 = vadd.f32 %v659, %v594
  %v716 = vadd.f32 %v660, %v496
  %v717 = vadd.f32 %v661, %v597
  %v718 = vadd.f32 %v662, %v499
  %v719 = vadd.f32 %v663, %v600
  %v720 = vadd.f32 %v664, %v502
  %v721 = vadd.f32 %v665, %v603
  %v722 = vadd.f32 %v666, %v505
  %v723 = vadd.f32 %v667, %v606
  %v724 = vadd.f32 %v668, %v508
  %v725 = vadd.f32 %v669, %v609
  %v726 = vadd.f32 %v670, %v511
  %v727 = vadd.f32 %v671, %v612
  %v728 = vadd.f32 %v672, %v514
  %v729 = vadd.f32 %v673, %v615
  %v730 = vadd.f32 %v674, %v517
  %v731 = vadd.f32 %v675, %v618
  %732 = vst [vmem:[#allocation2] sm:$0xff] %v676
  %733 = vst [vmem:[#allocation2 + $0x8] sm:$0xff] %v677
  %734 = vst [vmem:[#allocation2 + $0x10] sm:$0xff] %v678
  %735 = vst [vmem:[#allocation2 + $0x18] sm:$0xff] %v679
  %736 = vst [vmem:[#allocation2 + $0x20] sm:$0xff] %v680
  %737 = vst [vmem:[#allocation2 + $0x28] sm:$0xff] %v681
  %738 = vst [vmem:[#allocation2 + $0x30] sm:$0xff] %v682
  %739 = vst [vmem:[#allocation2 + $0x38] sm:$0xff] %v683
  %740 = vst [vmem:[#allocation2 + $0x40] sm:$0xff] %v684
  %741 = vst [vmem:[#allocation2 + $0x48] sm:$0xff] %v685
  %742 = vst [vmem:[#allocation2 + $0x50] sm:$0xff] %v686
  %743 = vst [vmem:[#allocation2 + $0x58] sm:$0xff] %v687
  %744 = vst [vmem:[#allocation2 + $0x60] sm:$0xff] %v688
  %745 = vst [vmem:[#allocation2 + $0x68] sm:$0xff] %v689
  %746 = vst [vmem:[#allocation2 + $0x70] sm:$0xff] %v690
  %747 = vst [vmem:[#allocation2 + $0x78] sm:$0xff] %v691
  %748 = vst [vmem:[#allocation2 + $0x80] sm:$0xff] %v692
  %749 = vst [vmem:[#allocation2 + $0x88] sm:$0xff] %v693
  %750 = vst [vmem:[#allocation2 + $0x90] sm:$0xff] %v694
  %751 = vst [vmem:[#allocation2 + $0x98] sm:$0xff] %v695
  %752 = vst [vmem:[#allocation2 + $0xa0] sm:$0xff] %v696
  %753 = vst [vmem:[#allocation2 + $0xa8] sm:$0xff] %v697
  %754 = vst [vmem:[#allocation2 + $0xb0] sm:$0xff] %v698
  %755 = vst [vmem:[#allocation2 + $0xb8] sm:$0xff] %v699
  %756 = vst [vmem:[#allocation2 + $0xc0] sm:$0xff] %v700
  %757 = vst [vmem:[#allocation2 + $0xc8] sm:$0xff] %v701
  %758 = vst [vmem:[#allocation2 + $0xd0] sm:$0xff] %v702
  %759 = vst [vmem:[#allocation2 + $0xd8] sm:$0xff] %v703
  %760 = vst [vmem:[#allocation2 + $0xe0] sm:$0xff] %v704
  %761 = vst [vmem:[#allocation2 + $0xe8] sm:$0xff] %v705
  %762 = vst [vmem:[#allocation2 + $0xf0] sm:$0xff] %v706
  %763 = vst [vmem:[#allocation2 + $0xf8] sm:$0xff] %v707
  %764 = vst [vmem:[#allocation2 + $0x100] sm:$0xff] %v708
  %765 = vst [vmem:[#allocation2 + $0x108] sm:$0xff] %v709
  %766 = vst [vmem:[#allocation2 + $0x110] sm:$0xff] %v710
  %767 = vst [vmem:[#allocation2 + $0x118] sm:$0xff] %v711
  %768 = vst [vmem:[#allocation2 + $0x120] sm:$0xff] %v712
  %769 = vst [vmem:[#allocation2 + $0x128] sm:$0xff] %v713
  %770 = vst [vmem:[#allocation2 + $0x130] sm:$0xff] %v714
  %771 = vst [vmem:[#allocation2 + $0x138] sm:$0xff] %v715
  %772 = vst [vmem:[#allocation2 + $0x140] sm:$0xff] %v716
  %773 = vst [vmem:[#allocation2 + $0x148] sm:$0xff] %v717
  %774 = vst [vmem:[#allocation2 + $0x150] sm:$0xff] %v718
  %775 = vst [vmem:[#allocation2 + $0x158] sm:$0xff] %v719
  %776 = vst [vmem:[#allocation2 + $0x160] sm:$0xff] %v720
  %777 = vst [vmem:[#allocation2 + $0x168] sm:$0xff] %v721
  %778 = vst [vmem:[#allocation2 + $0x170] sm:$0xff] %v722
  %779 = vst [vmem:[#allocation2 + $0x178] sm:$0xff] %v723
  %780 = vst [vmem:[#allocation2 + $0x180] sm:$0xff] %v724
  %781 = vst [vmem:[#allocation2 + $0x188] sm:$0xff] %v725
  %782 = vst [vmem:[#allocation2 + $0x190] sm:$0xff] %v726
  %783 = vst [vmem:[#allocation2 + $0x198] sm:$0xff] %v727
  %784 = vst [vmem:[#allocation2 + $0x1a0] sm:$0xff] %v728
  %785 = vst [vmem:[#allocation2 + $0x1a8] sm:$0xff] %v729
  %786 = vst [vmem:[#allocation2 + $0x1b0] sm:$0xff] %v730
  %787 = vst [vmem:[#allocation2 + $0x1b8] sm:$0xff] %v731
  %s788 = scalar_lea.vmem %s0, 16
  %v789 = vld [vmem:[%s788] sm:$0xff]
  %v790 = vld [vmem:[%s788 + $0x8] sm:$0xff]
  %v791 = vld [vmem:[%s788 + $0x10] sm:$0xff]
  %v792 = vld [vmem:[%s788 + $0x18] sm:$0xff]
  %v793 = vld [vmem:[%s788 + $0x20] sm:$0xff]
  %v794 = vld [vmem:[%s788 + $0x28] sm:$0xff]
  %v795 = vld [vmem:[%s788 + $0x30] sm:$0xff]
  %v796 = vld [vmem:[%s788 + $0x38] sm:$0xff]
  %v797 = vld [vmem:[%s788 + $0x40] sm:$0xff]
  %v798 = vld [vmem:[%s788 + $0x48] sm:$0xff]
  %v799 = vld [vmem:[%s788 + $0x50] sm:$0xff]
  %v800 = vld [vmem:[%s788 + $0x58] sm:$0xff]
  %v801 = vld [vmem:[%s788 + $0x60] sm:$0xff]
  %v802 = vld [vmem:[%s788 + $0x68] sm:$0xff]
  %v803 = vld [vmem:[%s788 + $0x70] sm:$0xff]
  %v804 = vld [vmem:[%s788 + $0x78] sm:$0xff]
  %v805 = vld [vmem:[%s788 + $0x80] sm:$0xff]
  %v806 = vld [vmem:[%s788 + $0x88] sm:$0xff]
  %v807 = vld [vmem:[%s788 + $0x90] sm:$0xff]
  %v808 = vld [vmem:[%s788 + $0x98] sm:$0xff]
  %v809 = vld [vmem:[%s788 + $0xa0] sm:$0xff]
  %v810 = vld [vmem:[%s788 + $0xa8] sm:$0xff]
  %v811 = vld [vmem:[%s788 + $0xb0] sm:$0xff]
  %v812 = vld [vmem:[%s788 + $0xb8] sm:$0xff]
  %v813 = vld [vmem:[%s788 + $0xc0] sm:$0xff]
  %v814 = vld [vmem:[%s788 + $0xc8] sm:$0xff]
  %v815 = vld [vmem:[%s788 + $0xd0] sm:$0xff]
  %v816 = vld [vmem:[%s788 + $0xd8] sm:$0xff]
  %s817 = scalar_lea.vmem %s1, 512
  %v818 = vld [vmem:[%s817] sm:$0xff]
  %v819 = vld [vmem:[%s817 + $0x8] sm:$0xff]
  %v820 = vld [vmem:[%s817 + $0x10] sm:$0xff]
  %v821 = vld [vmem:[%s817 + $0x18] sm:$0xff]
  %v822 = vld [vmem:[%s817 + $0x20] sm:$0xff]
  %v823 = vld [vmem:[%s817 + $0x28] sm:$0xff]
  %v824 = vld [vmem:[%s817 + $0x30] sm:$0xff]
  %v825 = vld [vmem:[%s817 + $0x38] sm:$0xff]
  %v826 = vld [vmem:[%s817 + $0x40] sm:$0xff]
  %v827 = vld [vmem:[%s817 + $0x48] sm:$0xff]
  %v828 = vld [vmem:[%s817 + $0x50] sm:$0xff]
  %v829 = vld [vmem:[%s817 + $0x58] sm:$0xff]
  %v830 = vld [vmem:[%s817 + $0x60] sm:$0xff]
  %v831 = vld [vmem:[%s817 + $0x68] sm:$0xff]
  %v832 = vld [vmem:[%s817 + $0x70] sm:$0xff]
  %v833 = vld [vmem:[%s817 + $0x78] sm:$0xff]
  %v834 = vld [vmem:[%s817 + $0x80] sm:$0xff]
  %v835 = vld [vmem:[%s817 + $0x88] sm:$0xff]
  %v836 = vld [vmem:[%s817 + $0x90] sm:$0xff]
  %v837 = vld [vmem:[%s817 + $0x98] sm:$0xff]
  %v838 = vld [vmem:[%s817 + $0xa0] sm:$0xff]
  %v839 = vld [vmem:[%s817 + $0xa8] sm:$0xff]
  %v840 = vld [vmem:[%s817 + $0xb0] sm:$0xff]
  %v841 = vld [vmem:[%s817 + $0xb8] sm:$0xff]
  %v842 = vld [vmem:[%s817 + $0xc0] sm:$0xff]
  %v843 = vld [vmem:[%s817 + $0xc8] sm:$0xff]
  %v844 = vld [vmem:[%s817 + $0xd0] sm:$0xff]
  %v845 = vld [vmem:[%s817 + $0xd8] sm:$0xff]
  %v846 = vld [vmem:[%s817 + $0xe0] sm:$0xff]
  %v847 = vld [vmem:[%s817 + $0xe8] sm:$0xff]
  %v848 = vld [vmem:[%s817 + $0xf0] sm:$0xff]
  %v849 = vld [vmem:[%s817 + $0xf8] sm:$0xff]
  %850 = vmatpush.msra.mxu0 %v848
  %851 = vmatpush.msra.mxu0 %v846
  %852 = vmatpush.msra.mxu0 %v844
  %853 = vmatpush.msra.mxu0 %v842
  %854 = vmatpush.msra.mxu0 %v840
  %855 = vmatpush.msra.mxu0 %v838
  %856 = vmatpush.msra.mxu0 %v836
  %857 = vmatpush.msra.mxu0 %v834
  %858 = vmatpush.msra.mxu0 %v832
  %859 = vmatpush.msra.mxu0 %v830
  %860 = vmatpush.msra.mxu0 %v828
  %861 = vmatpush.msra.mxu0 %v826
  %862 = vmatpush.msra.mxu0 %v824
  %863 = vmatpush.msra.mxu0 %v822
  %864 = vmatpush.msra.mxu0 %v820
  %865 = vmatpush.msra.mxu0 %v818
  %866 = vmatmul.f32.gmra.mxu0 %v789
  %v867 = vpop.f32.mrf.mxu0
  %v868 = vadd.f32 0.0, %v867
  %869 = vmatmul.f32.gmra.mxu0 %v790
  %v870 = vpop.f32.mrf.mxu0
  %v871 = vadd.f32 0.0, %v870
  %872 = vmatmul.f32.gmra.mxu0 %v791
  %v873 = vpop.f32.mrf.mxu0
  %v874 = vadd.f32 0.0, %v873
  %875 = vmatmul.f32.gmra.mxu0 %v792
  %v876 = vpop.f32.mrf.mxu0
  %v877 = vadd.f32 0.0, %v876
  %878 = vmatmul.f32.gmra.mxu0 %v793
  %v879 = vpop.f32.mrf.mxu0
  %v880 = vadd.f32 0.0, %v879
  %881 = vmatmul.f32.gmra.mxu0 %v794
  %v882 = vpop.f32.mrf.mxu0
  %v883 = vadd.f32 0.0, %v882
  %884 = vmatmul.f32.gmra.mxu0 %v795
  %v885 = vpop.f32.mrf.mxu0
  %v886 = vadd.f32 0.0, %v885
  %887 = vmatmul.f32.gmra.mxu0 %v796
  %v888 = vpop.f32.mrf.mxu0
  %v889 = vadd.f32 0.0, %v888
  %890 = vmatmul.f32.gmra.mxu0 %v797
  %v891 = vpop.f32.mrf.mxu0
  %v892 = vadd.f32 0.0, %v891
  %893 = vmatmul.f32.gmra.mxu0 %v798
  %v894 = vpop.f32.mrf.mxu0
  %v895 = vadd.f32 0.0, %v894
  %896 = vmatmul.f32.gmra.mxu0 %v799
  %v897 = vpop.f32.mrf.mxu0
  %v898 = vadd.f32 0.0, %v897
  %899 = vmatmul.f32.gmra.mxu0 %v800
  %v900 = vpop.f32.mrf.mxu0
  %v901 = vadd.f32 0.0, %v900
  %902 = vmatmul.f32.gmra.mxu0 %v801
  %v903 = vpop.f32.mrf.mxu0
  %v904 = vadd.f32 0.0, %v903
  %905 = vmatmul.f32.gmra.mxu0 %v802
  %v906 = vpop.f32.mrf.mxu0
  %v907 = vadd.f32 0.0, %v906
  %908 = vmatmul.f32.gmra.mxu0 %v803
  %v909 = vpop.f32.mrf.mxu0
  %v910 = vadd.f32 0.0, %v909
  %911 = vmatmul.f32.gmra.mxu0 %v804
  %v912 = vpop.f32.mrf.mxu0
  %v913 = vadd.f32 0.0, %v912
  %914 = vmatmul.f32.gmra.mxu0 %v805
  %v915 = vpop.f32.mrf.mxu0
  %v916 = vadd.f32 0.0, %v915
  %917 = vmatmul.f32.gmra.mxu0 %v806
  %v918 = vpop.f32.mrf.mxu0
  %v919 = vadd.f32 0.0, %v918
  %920 = vmatmul.f32.gmra.mxu0 %v807
  %v921 = vpop.f32.mrf.mxu0
  %v922 = vadd.f32 0.0, %v921
  %923 = vmatmul.f32.gmra.mxu0 %v808
  %v924 = vpop.f32.mrf.mxu0
  %v925 = vadd.f32 0.0, %v924
  %926 = vmatmul.f32.gmra.mxu0 %v809
  %v927 = vpop.f32.mrf.mxu0
  %v928 = vadd.f32 0.0, %v927
  %929 = vmatmul.f32.gmra.mxu0 %v810
  %v930 = vpop.f32.mrf.mxu0
  %v931 = vadd.f32 0.0, %v930
  %932 = vmatmul.f32.gmra.mxu0 %v811
  %v933 = vpop.f32.mrf.mxu0
  %v934 = vadd.f32 0.0, %v933
  %935 = vmatmul.f32.gmra.mxu0 %v812
  %v936 = vpop.f32.mrf.mxu0
  %v937 = vadd.f32 0.0, %v936
  %938 = vmatmul.f32.gmra.mxu0 %v813
  %v939 = vpop.f32.mrf.mxu0
  %v940 = vadd.f32 0.0, %v939
  %941 = vmatmul.f32.gmra.mxu0 %v814
  %v942 = vpop.f32.mrf.mxu0
  %v943 = vadd.f32 0.0, %v942
  %944 = vmatmul.f32.gmra.mxu0 %v815
  %v945 = vpop.f32.mrf.mxu0
  %v946 = vadd.f32 0.0, %v945
  %947 = vmatmul.f32.gmra.mxu0 %v816
  %v948 = vpop.f32.mrf.mxu0
  %v949 = vadd.f32 0.0, %v948
  %950 = vdwg.mxu0
  %951 = vmatpush.msra.mxu0 %v849
  %952 = vmatpush.msra.mxu0 %v847
  %953 = vmatpush.msra.mxu0 %v845
  %954 = vmatpush.msra.mxu0 %v843
  %955 = vmatpush.msra.mxu0 %v841
  %956 = vmatpush.msra.mxu0 %v839
  %957 = vmatpush.msra.mxu0 %v837
  %958 = vmatpush.msra.mxu0 %v835
  %959 = vmatpush.msra.mxu0 %v833
  %960 = vmatpush.msra.mxu0 %v831
  %961 = vmatpush.msra.mxu0 %v829
  %962 = vmatpush.msra.mxu0 %v827
  %963 = vmatpush.msra.mxu0 %v825
  %964 = vmatpush.msra.mxu0 %v823
  %965 = vmatpush.msra.mxu0 %v821
  %966 = vmatpush.msra.mxu0 %v819
  %967 = vmatmul.f32.gmra.mxu0 %v789
  %v968 = vpop.f32.mrf.mxu0
  %v969 = vadd.f32 0.0, %v968
  %970 = vmatmul.f32.gmra.mxu0 %v790
  %v971 = vpop.f32.mrf.mxu0
  %v972 = vadd.f32 0.0, %v971
  %973 = vmatmul.f32.gmra.mxu0 %v791
  %v974 = vpop.f32.mrf.mxu0
  %v975 = vadd.f32 0.0, %v974
  %976 = vmatmul.f32.gmra.mxu0 %v792
  %v977 = vpop.f32.mrf.mxu0
  %v978 = vadd.f32 0.0, %v977
  %979 = vmatmul.f32.gmra.mxu0 %v793
  %v980 = vpop.f32.mrf.mxu0
  %v981 = vadd.f32 0.0, %v980
  %982 = vmatmul.f32.gmra.mxu0 %v794
  %v983 = vpop.f32.mrf.mxu0
  %v984 = vadd.f32 0.0, %v983
  %985 = vmatmul.f32.gmra.mxu0 %v795
  %v986 = vpop.f32.mrf.mxu0
  %v987 = vadd.f32 0.0, %v986
  %988 = vmatmul.f32.gmra.mxu0 %v796
  %v989 = vpop.f32.mrf.mxu0
  %v990 = vadd.f32 0.0, %v989
  %991 = vmatmul.f32.gmra.mxu0 %v797
  %v992 = vpop.f32.mrf.mxu0
  %v993 = vadd.f32 0.0, %v992
  %994 = vmatmul.f32.gmra.mxu0 %v798
  %v995 = vpop.f32.mrf.mxu0
  %v996 = vadd.f32 0.0, %v995
  %997 = vmatmul.f32.gmra.mxu0 %v799
  %v998 = vpop.f32.mrf.mxu0
  %v999 = vadd.f32 0.0, %v998
  %1000 = vmatmul.f32.gmra.mxu0 %v800
  %v1001 = vpop.f32.mrf.mxu0
  %v1002 = vadd.f32 0.0, %v1001
  %1003 = vmatmul.f32.gmra.mxu0 %v801
  %v1004 = vpop.f32.mrf.mxu0
  %v1005 = vadd.f32 0.0, %v1004
  %1006 = vmatmul.f32.gmra.mxu0 %v802
  %v1007 = vpop.f32.mrf.mxu0
  %v1008 = vadd.f32 0.0, %v1007
  %1009 = vmatmul.f32.gmra.mxu0 %v803
  %v1010 = vpop.f32.mrf.mxu0
  %v1011 = vadd.f32 0.0, %v1010
  %1012 = vmatmul.f32.gmra.mxu0 %v804
  %v1013 = vpop.f32.mrf.mxu0
  %v1014 = vadd.f32 0.0, %v1013
  %1015 = vmatmul.f32.gmra.mxu0 %v805
  %v1016 = vpop.f32.mrf.mxu0
  %v1017 = vadd.f32 0.0, %v1016
  %1018 = vmatmul.f32.gmra.mxu0 %v806
  %v1019 = vpop.f32.mrf.mxu0
  %v1020 = vadd.f32 0.0, %v1019
  %1021 = vmatmul.f32.gmra.mxu0 %v807
  %v1022 = vpop.f32.mrf.mxu0
  %v1023 = vadd.f32 0.0, %v1022
  %1024 = vmatmul.f32.gmra.mxu0 %v808
  %v1025 = vpop.f32.mrf.mxu0
  %v1026 = vadd.f32 0.0, %v1025
  %1027 = vmatmul.f32.gmra.mxu0 %v809
  %v1028 = vpop.f32.mrf.mxu0
  %v1029 = vadd.f32 0.0, %v1028
  %1030 = vmatmul.f32.gmra.mxu0 %v810
  %v1031 = vpop.f32.mrf.mxu0
  %v1032 = vadd.f32 0.0, %v1031
  %1033 = vmatmul.f32.gmra.mxu0 %v811
  %v1034 = vpop.f32.mrf.mxu0
  %v1035 = vadd.f32 0.0, %v1034
  %1036 = vmatmul.f32.gmra.mxu0 %v812
  %v1037 = vpop.f32.mrf.mxu0
  %v1038 = vadd.f32 0.0, %v1037
  %1039 = vmatmul.f32.gmra.mxu0 %v813
  %v1040 = vpop.f32.mrf.mxu0
  %v1041 = vadd.f32 0.0, %v1040
  %1042 = vmatmul.f32.gmra.mxu0 %v814
  %v1043 = vpop.f32.mrf.mxu0
  %v1044 = vadd.f32 0.0, %v1043
  %1045 = vmatmul.f32.gmra.mxu0 %v815
  %v1046 = vpop.f32.mrf.mxu0
  %v1047 = vadd.f32 0.0, %v1046
  %1048 = vmatmul.f32.gmra.mxu0 %v816
  %v1049 = vpop.f32.mrf.mxu0
  %v1050 = vadd.f32 0.0, %v1049
  %1051 = vdwg.mxu0
  %v1052 = vld [vmem:[#allocation2] sm:$0xff]
  %v1053 = vld [vmem:[#allocation2 + $0x8] sm:$0xff]
  %v1054 = vld [vmem:[#allocation2 + $0x10] sm:$0xff]
  %v1055 = vld [vmem:[#allocation2 + $0x18] sm:$0xff]
  %v1056 = vld [vmem:[#allocation2 + $0x20] sm:$0xff]
  %v1057 = vld [vmem:[#allocation2 + $0x28] sm:$0xff]
  %v1058 = vld [vmem:[#allocation2 + $0x30] sm:$0xff]
  %v1059 = vld [vmem:[#allocation2 + $0x38] sm:$0xff]
  %v1060 = vld [vmem:[#allocation2 + $0x40] sm:$0xff]
  %v1061 = vld [vmem:[#allocation2 + $0x48] sm:$0xff]
  %v1062 = vld [vmem:[#allocation2 + $0x50] sm:$0xff]
  %v1063 = vld [vmem:[#allocation2 + $0x58] sm:$0xff]
  %v1064 = vld [vmem:[#allocation2 + $0x60] sm:$0xff]
  %v1065 = vld [vmem:[#allocation2 + $0x68] sm:$0xff]
  %v1066 = vld [vmem:[#allocation2 + $0x70] sm:$0xff]
  %v1067 = vld [vmem:[#allocation2 + $0x78] sm:$0xff]
  %v1068 = vld [vmem:[#allocation2 + $0x80] sm:$0xff]
  %v1069 = vld [vmem:[#allocation2 + $0x88] sm:$0xff]
  %v1070 = vld [vmem:[#allocation2 + $0x90] sm:$0xff]
  %v1071 = vld [vmem:[#allocation2 + $0x98] sm:$0xff]
  %v1072 = vld [vmem:[#allocation2 + $0xa0] sm:$0xff]
  %v1073 = vld [vmem:[#allocation2 + $0xa8] sm:$0xff]
  %v1074 = vld [vmem:[#allocation2 + $0xb0] sm:$0xff]
  %v1075 = vld [vmem:[#allocation2 + $0xb8] sm:$0xff]
  %v1076 = vld [vmem:[#allocation2 + $0xc0] sm:$0xff]
  %v1077 = vld [vmem:[#allocation2 + $0xc8] sm:$0xff]
  %v1078 = vld [vmem:[#allocation2 + $0xd0] sm:$0xff]
  %v1079 = vld [vmem:[#allocation2 + $0xd8] sm:$0xff]
  %v1080 = vld [vmem:[#allocation2 + $0xe0] sm:$0xff]
  %v1081 = vld [vmem:[#allocation2 + $0xe8] sm:$0xff]
  %v1082 = vld [vmem:[#allocation2 + $0xf0] sm:$0xff]
  %v1083 = vld [vmem:[#allocation2 + $0xf8] sm:$0xff]
  %v1084 = vld [vmem:[#allocation2 + $0x100] sm:$0xff]
  %v1085 = vld [vmem:[#allocation2 + $0x108] sm:$0xff]
  %v1086 = vld [vmem:[#allocation2 + $0x110] sm:$0xff]
  %v1087 = vld [vmem:[#allocation2 + $0x118] sm:$0xff]
  %v1088 = vld [vmem:[#allocation2 + $0x120] sm:$0xff]
  %v1089 = vld [vmem:[#allocation2 + $0x128] sm:$0xff]
  %v1090 = vld [vmem:[#allocation2 + $0x130] sm:$0xff]
  %v1091 = vld [vmem:[#allocation2 + $0x138] sm:$0xff]
  %v1092 = vld [vmem:[#allocation2 + $0x140] sm:$0xff]
  %v1093 = vld [vmem:[#allocation2 + $0x148] sm:$0xff]
  %v1094 = vld [vmem:[#allocation2 + $0x150] sm:$0xff]
  %v1095 = vld [vmem:[#allocation2 + $0x158] sm:$0xff]
  %v1096 = vld [vmem:[#allocation2 + $0x160] sm:$0xff]
  %v1097 = vld [vmem:[#allocation2 + $0x168] sm:$0xff]
  %v1098 = vld [vmem:[#allocation2 + $0x170] sm:$0xff]
  %v1099 = vld [vmem:[#allocation2 + $0x178] sm:$0xff]
  %v1100 = vld [vmem:[#allocation2 + $0x180] sm:$0xff]
  %v1101 = vld [vmem:[#allocation2 + $0x188] sm:$0xff]
  %v1102 = vld [vmem:[#allocation2 + $0x190] sm:$0xff]
  %v1103 = vld [vmem:[#allocation2 + $0x198] sm:$0xff]
  %v1104 = vld [vmem:[#allocation2 + $0x1a0] sm:$0xff]
  %v1105 = vld [vmem:[#allocation2 + $0x1a8] sm:$0xff]
  %v1106 = vld [vmem:[#allocation2 + $0x1b0] sm:$0xff]
  %v1107 = vld [vmem:[#allocation2 + $0x1b8] sm:$0xff]
  %v1108 = vadd.f32 %v1052, %v868
  %v1109 = vadd.f32 %v1053, %v969
  %v1110 = vadd.f32 %v1054, %v871
  %v1111 = vadd.f32 %v1055, %v972
  %v1112 = vadd.f32 %v1056, %v874
  %v1113 = vadd.f32 %v1057, %v975
  %v1114 = vadd.f32 %v1058, %v877
  %v1115 = vadd.f32 %v1059, %v978
  %v1116 = vadd.f32 %v1060, %v880
  %v1117 = vadd.f32 %v1061, %v981
  %v1118 = vadd.f32 %v1062, %v883
  %v1119 = vadd.f32 %v1063, %v984
  %v1120 = vadd.f32 %v1064, %v886
  %v1121 = vadd.f32 %v1065, %v987
  %v1122 = vadd.f32 %v1066, %v889
  %v1123 = vadd.f32 %v1067, %v990
  %v1124 = vadd.f32 %v1068, %v892
  %v1125 = vadd.f32 %v1069, %v993
  %v1126 = vadd.f32 %v1070, %v895
  %v1127 = vadd.f32 %v1071, %v996
  %v1128 = vadd.f32 %v1072, %v898
  %v1129 = vadd.f32 %v1073, %v999
  %v1130 = vadd.f32 %v1074, %v901
  %v1131 = vadd.f32 %v1075, %v1002
  %v1132 = vadd.f32 %v1076, %v904
  %v1133 = vadd.f32 %v1077, %v1005
  %v1134 = vadd.f32 %v1078, %v907
  %v1135 = vadd.f32 %v1079, %v1008
  %v1136 = vadd.f32 %v1080, %v910
  %v1137 = vadd.f32 %v1081, %v1011
  %v1138 = vadd.f32 %v1082, %v913
  %v1139 = vadd.f32 %v1083, %v1014
  %v1140 = vadd.f32 %v1084, %v916
  %v1141 = vadd.f32 %v1085, %v1017
  %v1142 = vadd.f32 %v1086, %v919
  %v1143 = vadd.f32 %v1087, %v1020
  %v1144 = vadd.f32 %v1088, %v922
  %v1145 = vadd.f32 %v1089, %v1023
  %v1146 = vadd.f32 %v1090, %v925
  %v1147 = vadd.f32 %v1091, %v1026
  %v1148 = vadd.f32 %v1092, %v928
  %v1149 = vadd.f32 %v1093, %v1029
  %v1150 = vadd.f32 %v1094, %v931
  %v1151 = vadd.f32 %v1095, %v1032
  %v1152 = vadd.f32 %v1096, %v934
  %v1153 = vadd.f32 %v1097, %v1035
  %v1154 = vadd.f32 %v1098, %v937
  %v1155 = vadd.f32 %v1099, %v1038
  %v1156 = vadd.f32 %v1100, %v940
  %v1157 = vadd.f32 %v1101, %v1041
  %v1158 = vadd.f32 %v1102, %v943
  %v1159 = vadd.f32 %v1103, %v1044
  %v1160 = vadd.f32 %v1104, %v946
  %v1161 = vadd.f32 %v1105, %v1047
  %v1162 = vadd.f32 %v1106, %v949
  %v1163 = vadd.f32 %v1107, %v1050
  %1164 = vst [vmem:[#allocation2] sm:$0xff] %v1108
  %1165 = vst [vmem:[#allocation2 + $0x8] sm:$0xff] %v1109
  %1166 = vst [vmem:[#allocation2 + $0x10] sm:$0xff] %v1110
  %1167 = vst [vmem:[#allocation2 + $0x18] sm:$0xff] %v1111
  %1168 = vst [vmem:[#allocation2 + $0x20] sm:$0xff] %v1112
  %1169 = vst [vmem:[#allocation2 + $0x28] sm:$0xff] %v1113
  %1170 = vst [vmem:[#allocation2 + $0x30] sm:$0xff] %v1114
  %1171 = vst [vmem:[#allocation2 + $0x38] sm:$0xff] %v1115
  %1172 = vst [vmem:[#allocation2 + $0x40] sm:$0xff] %v1116
  %1173 = vst [vmem:[#allocation2 + $0x48] sm:$0xff] %v1117
  %1174 = vst [vmem:[#allocation2 + $0x50] sm:$0xff] %v1118
  %1175 = vst [vmem:[#allocation2 + $0x58] sm:$0xff] %v1119
  %1176 = vst [vmem:[#allocation2 + $0x60] sm:$0xff] %v1120
  %1177 = vst [vmem:[#allocation2 + $0x68] sm:$0xff] %v1121
  %1178 = vst [vmem:[#allocation2 + $0x70] sm:$0xff] %v1122
  %1179 = vst [vmem:[#allocation2 + $0x78] sm:$0xff] %v1123
  %1180 = vst [vmem:[#allocation2 + $0x80] sm:$0xff] %v1124
  %1181 = vst [vmem:[#allocation2 + $0x88] sm:$0xff] %v1125
  %1182 = vst [vmem:[#allocation2 + $0x90] sm:$0xff] %v1126
  %1183 = vst [vmem:[#allocation2 + $0x98] sm:$0xff] %v1127
  %1184 = vst [vmem:[#allocation2 + $0xa0] sm:$0xff] %v1128
  %1185 = vst [vmem:[#allocation2 + $0xa8] sm:$0xff] %v1129
  %1186 = vst [vmem:[#allocation2 + $0xb0] sm:$0xff] %v1130
  %1187 = vst [vmem:[#allocation2 + $0xb8] sm:$0xff] %v1131
  %1188 = vst [vmem:[#allocation2 + $0xc0] sm:$0xff] %v1132
  %1189 = vst [vmem:[#allocation2 + $0xc8] sm:$0xff] %v1133
  %1190 = vst [vmem:[#allocation2 + $0xd0] sm:$0xff] %v1134
  %1191 = vst [vmem:[#allocation2 + $0xd8] sm:$0xff] %v1135
  %1192 = vst [vmem:[#allocation2 + $0xe0] sm:$0xff] %v1136
  %1193 = vst [vmem:[#allocation2 + $0xe8] sm:$0xff] %v1137
  %1194 = vst [vmem:[#allocation2 + $0xf0] sm:$0xff] %v1138
  %1195 = vst [vmem:[#allocation2 + $0xf8] sm:$0xff] %v1139
  %1196 = vst [vmem:[#allocation2 + $0x100] sm:$0xff] %v1140
  %1197 = vst [vmem:[#allocation2 + $0x108] sm:$0xff] %v1141
  %1198 = vst [vmem:[#allocation2 + $0x110] sm:$0xff] %v1142
  %1199 = vst [vmem:[#allocation2 + $0x118] sm:$0xff] %v1143
  %1200 = vst [vmem:[#allocation2 + $0x120] sm:$0xff] %v1144
  %1201 = vst [vmem:[#allocation2 + $0x128] sm:$0xff] %v1145
  %1202 = vst [vmem:[#allocation2 + $0x130] sm:$0xff] %v1146
  %1203 = vst [vmem:[#allocation2 + $0x138] sm:$0xff] %v1147
  %1204 = vst [vmem:[#allocation2 + $0x140] sm:$0xff] %v1148
  %1205 = vst [vmem:[#allocation2 + $0x148] sm:$0xff] %v1149
  %1206 = vst [vmem:[#allocation2 + $0x150] sm:$0xff] %v1150
  %1207 = vst [vmem:[#allocation2 + $0x158] sm:$0xff] %v1151
  %1208 = vst [vmem:[#allocation2 + $0x160] sm:$0xff] %v1152
  %1209 = vst [vmem:[#allocation2 + $0x168] sm:$0xff] %v1153
  %1210 = vst [vmem:[#allocation2 + $0x170] sm:$0xff] %v1154
  %1211 = vst [vmem:[#allocation2 + $0x178] sm:$0xff] %v1155
  %1212 = vst [vmem:[#allocation2 + $0x180] sm:$0xff] %v1156
  %1213 = vst [vmem:[#allocation2 + $0x188] sm:$0xff] %v1157
  %1214 = vst [vmem:[#allocation2 + $0x190] sm:$0xff] %v1158
  %1215 = vst [vmem:[#allocation2 + $0x198] sm:$0xff] %v1159
  %1216 = vst [vmem:[#allocation2 + $0x1a0] sm:$0xff] %v1160
  %1217 = vst [vmem:[#allocation2 + $0x1a8] sm:$0xff] %v1161
  %1218 = vst [vmem:[#allocation2 + $0x1b0] sm:$0xff] %v1162
  %1219 = vst [vmem:[#allocation2 + $0x1b8] sm:$0xff] %v1163
  %s1220 = scalar_lea.vmem %s0, 24
  %v1221 = vld [vmem:[%s1220] sm:$0xff]
  %v1222 = vld [vmem:[%s1220 + $0x8] sm:$0xff]
  %v1223 = vld [vmem:[%s1220 + $0x10] sm:$0xff]
  %v1224 = vld [vmem:[%s1220 + $0x18] sm:$0xff]
  %v1225 = vld [vmem:[%s1220 + $0x20] sm:$0xff]
  %v1226 = vld [vmem:[%s1220 + $0x28] sm:$0xff]
  %v1227 = vld [vmem:[%s1220 + $0x30] sm:$0xff]
  %v1228 = vld [vmem:[%s1220 + $0x38] sm:$0xff]
  %v1229 = vld [vmem:[%s1220 + $0x40] sm:$0xff]
  %v1230 = vld [vmem:[%s1220 + $0x48] sm:$0xff]
  %v1231 = vld [vmem:[%s1220 + $0x50] sm:$0xff]
  %v1232 = vld [vmem:[%s1220 + $0x58] sm:$0xff]
  %v1233 = vld [vmem:[%s1220 + $0x60] sm:$0xff]
  %v1234 = vld [vmem:[%s1220 + $0x68] sm:$0xff]
  %v1235 = vld [vmem:[%s1220 + $0x70] sm:$0xff]
  %v1236 = vld [vmem:[%s1220 + $0x78] sm:$0xff]
  %v1237 = vld [vmem:[%s1220 + $0x80] sm:$0xff]
  %v1238 = vld [vmem:[%s1220 + $0x88] sm:$0xff]
  %v1239 = vld [vmem:[%s1220 + $0x90] sm:$0xff]
  %v1240 = vld [vmem:[%s1220 + $0x98] sm:$0xff]
  %v1241 = vld [vmem:[%s1220 + $0xa0] sm:$0xff]
  %v1242 = vld [vmem:[%s1220 + $0xa8] sm:$0xff]
  %v1243 = vld [vmem:[%s1220 + $0xb0] sm:$0xff]
  %v1244 = vld [vmem:[%s1220 + $0xb8] sm:$0xff]
  %v1245 = vld [vmem:[%s1220 + $0xc0] sm:$0xff]
  %v1246 = vld [vmem:[%s1220 + $0xc8] sm:$0xff]
  %v1247 = vld [vmem:[%s1220 + $0xd0] sm:$0xff]
  %v1248 = vld [vmem:[%s1220 + $0xd8] sm:$0xff]
  %s1249 = scalar_lea.vmem %s1, 768
  %v1250 = vld [vmem:[%s1249] sm:$0xff]
  %v1251 = vld [vmem:[%s1249 + $0x8] sm:$0xff]
  %v1252 = vld [vmem:[%s1249 + $0x10] sm:$0xff]
  %v1253 = vld [vmem:[%s1249 + $0x18] sm:$0xff]
  %v1254 = vld [vmem:[%s1249 + $0x20] sm:$0xff]
  %v1255 = vld [vmem:[%s1249 + $0x28] sm:$0xff]
  %v1256 = vld [vmem:[%s1249 + $0x30] sm:$0xff]
  %v1257 = vld [vmem:[%s1249 + $0x38] sm:$0xff]
  %v1258 = vld [vmem:[%s1249 + $0x40] sm:$0xff]
  %v1259 = vld [vmem:[%s1249 + $0x48] sm:$0xff]
  %v1260 = vld [vmem:[%s1249 + $0x50] sm:$0xff]
  %v1261 = vld [vmem:[%s1249 + $0x58] sm:$0xff]
  %v1262 = vld [vmem:[%s1249 + $0x60] sm:$0xff]
  %v1263 = vld [vmem:[%s1249 + $0x68] sm:$0xff]
  %v1264 = vld [vmem:[%s1249 + $0x70] sm:$0xff]
  %v1265 = vld [vmem:[%s1249 + $0x78] sm:$0xff]
  %v1266 = vld [vmem:[%s1249 + $0x80] sm:$0xff]
  %v1267 = vld [vmem:[%s1249 + $0x88] sm:$0xff]
  %v1268 = vld [vmem:[%s1249 + $0x90] sm:$0xff]
  %v1269 = vld [vmem:[%s1249 + $0x98] sm:$0xff]
  %v1270 = vld [vmem:[%s1249 + $0xa0] sm:$0xff]
  %v1271 = vld [vmem:[%s1249 + $0xa8] sm:$0xff]
  %v1272 = vld [vmem:[%s1249 + $0xb0] sm:$0xff]
  %v1273 = vld [vmem:[%s1249 + $0xb8] sm:$0xff]
  %v1274 = vld [vmem:[%s1249 + $0xc0] sm:$0xff]
  %v1275 = vld [vmem:[%s1249 + $0xc8] sm:$0xff]
  %v1276 = vld [vmem:[%s1249 + $0xd0] sm:$0xff]
  %v1277 = vld [vmem:[%s1249 + $0xd8] sm:$0xff]
  %v1278 = vld [vmem:[%s1249 + $0xe0] sm:$0xff]
  %v1279 = vld [vmem:[%s1249 + $0xe8] sm:$0xff]
  %v1280 = vld [vmem:[%s1249 + $0xf0] sm:$0xff]
  %v1281 = vld [vmem:[%s1249 + $0xf8] sm:$0xff]
  %1282 = vmatpush.msra.mxu0 %v1280
  %1283 = vmatpush.msra.mxu0 %v1278
  %1284 = vmatpush.msra.mxu0 %v1276
  %1285 = vmatpush.msra.mxu0 %v1274
  %1286 = vmatpush.msra.mxu0 %v1272
  %1287 = vmatpush.msra.mxu0 %v1270
  %1288 = vmatpush.msra.mxu0 %v1268
  %1289 = vmatpush.msra.mxu0 %v1266
  %1290 = vmatpush.msra.mxu0 %v1264
  %1291 = vmatpush.msra.mxu0 %v1262
  %1292 = vmatpush.msra.mxu0 %v1260
  %1293 = vmatpush.msra.mxu0 %v1258
  %1294 = vmatpush.msra.mxu0 %v1256
  %1295 = vmatpush.msra.mxu0 %v1254
  %1296 = vmatpush.msra.mxu0 %v1252
  %1297 = vmatpush.msra.mxu0 %v1250
  %1298 = vmatmul.f32.gmra.mxu0 %v1221
  %v1299 = vpop.f32.mrf.mxu0
  %v1300 = vadd.f32 0.0, %v1299
  %1301 = vmatmul.f32.gmra.mxu0 %v1222
  %v1302 = vpop.f32.mrf.mxu0
  %v1303 = vadd.f32 0.0, %v1302
  %1304 = vmatmul.f32.gmra.mxu0 %v1223
  %v1305 = vpop.f32.mrf.mxu0
  %v1306 = vadd.f32 0.0, %v1305
  %1307 = vmatmul.f32.gmra.mxu0 %v1224
  %v1308 = vpop.f32.mrf.mxu0
  %v1309 = vadd.f32 0.0, %v1308
  %1310 = vmatmul.f32.gmra.mxu0 %v1225
  %v1311 = vpop.f32.mrf.mxu0
  %v1312 = vadd.f32 0.0, %v1311
  %1313 = vmatmul.f32.gmra.mxu0 %v1226
  %v1314 = vpop.f32.mrf.mxu0
  %v1315 = vadd.f32 0.0, %v1314
  %1316 = vmatmul.f32.gmra.mxu0 %v1227
  %v1317 = vpop.f32.mrf.mxu0
  %v1318 = vadd.f32 0.0, %v1317
  %1319 = vmatmul.f32.gmra.mxu0 %v1228
  %v1320 = vpop.f32.mrf.mxu0
  %v1321 = vadd.f32 0.0, %v1320
  %1322 = vmatmul.f32.gmra.mxu0 %v1229
  %v1323 = vpop.f32.mrf.mxu0
  %v1324 = vadd.f32 0.0, %v1323
  %1325 = vmatmul.f32.gmra.mxu0 %v1230
  %v1326 = vpop.f32.mrf.mxu0
  %v1327 = vadd.f32 0.0, %v1326
  %1328 = vmatmul.f32.gmra.mxu0 %v1231
  %v1329 = vpop.f32.mrf.mxu0
  %v1330 = vadd.f32 0.0, %v1329
  %1331 = vmatmul.f32.gmra.mxu0 %v1232
  %v1332 = vpop.f32.mrf.mxu0
  %v1333 = vadd.f32 0.0, %v1332
  %1334 = vmatmul.f32.gmra.mxu0 %v1233
  %v1335 = vpop.f32.mrf.mxu0
  %v1336 = vadd.f32 0.0, %v1335
  %1337 = vmatmul.f32.gmra.mxu0 %v1234
  %v1338 = vpop.f32.mrf.mxu0
  %v1339 = vadd.f32 0.0, %v1338
  %1340 = vmatmul.f32.gmra.mxu0 %v1235
  %v1341 = vpop.f32.mrf.mxu0
  %v1342 = vadd.f32 0.0, %v1341
  %1343 = vmatmul.f32.gmra.mxu0 %v1236
  %v1344 = vpop.f32.mrf.mxu0
  %v1345 = vadd.f32 0.0, %v1344
  %1346 = vmatmul.f32.gmra.mxu0 %v1237
  %v1347 = vpop.f32.mrf.mxu0
  %v1348 = vadd.f32 0.0, %v1347
  %1349 = vmatmul.f32.gmra.mxu0 %v1238
  %v1350 = vpop.f32.mrf.mxu0
  %v1351 = vadd.f32 0.0, %v1350
  %1352 = vmatmul.f32.gmra.mxu0 %v1239
  %v1353 = vpop.f32.mrf.mxu0
  %v1354 = vadd.f32 0.0, %v1353
  %1355 = vmatmul.f32.gmra.mxu0 %v1240
  %v1356 = vpop.f32.mrf.mxu0
  %v1357 = vadd.f32 0.0, %v1356
  %1358 = vmatmul.f32.gmra.mxu0 %v1241
  %v1359 = vpop.f32.mrf.mxu0
  %v1360 = vadd.f32 0.0, %v1359
  %1361 = vmatmul.f32.gmra.mxu0 %v1242
  %v1362 = vpop.f32.mrf.mxu0
  %v1363 = vadd.f32 0.0, %v1362
  %1364 = vmatmul.f32.gmra.mxu0 %v1243
  %v1365 = vpop.f32.mrf.mxu0
  %v1366 = vadd.f32 0.0, %v1365
  %1367 = vmatmul.f32.gmra.mxu0 %v1244
  %v1368 = vpop.f32.mrf.mxu0
  %v1369 = vadd.f32 0.0, %v1368
  %1370 = vmatmul.f32.gmra.mxu0 %v1245
  %v1371 = vpop.f32.mrf.mxu0
  %v1372 = vadd.f32 0.0, %v1371
  %1373 = vmatmul.f32.gmra.mxu0 %v1246
  %v1374 = vpop.f32.mrf.mxu0
  %v1375 = vadd.f32 0.0, %v1374
  %1376 = vmatmul.f32.gmra.mxu0 %v1247
  %v1377 = vpop.f32.mrf.mxu0
  %v1378 = vadd.f32 0.0, %v1377
  %1379 = vmatmul.f32.gmra.mxu0 %v1248
  %v1380 = vpop.f32.mrf.mxu0
  %v1381 = vadd.f32 0.0, %v1380
  %1382 = vdwg.mxu0
  %1383 = vmatpush.msra.mxu0 %v1281
  %1384 = vmatpush.msra.mxu0 %v1279
  %1385 = vmatpush.msra.mxu0 %v1277
  %1386 = vmatpush.msra.mxu0 %v1275
  %1387 = vmatpush.msra.mxu0 %v1273
  %1388 = vmatpush.msra.mxu0 %v1271
  %1389 = vmatpush.msra.mxu0 %v1269
  %1390 = vmatpush.msra.mxu0 %v1267
  %1391 = vmatpush.msra.mxu0 %v1265
  %1392 = vmatpush.msra.mxu0 %v1263
  %1393 = vmatpush.msra.mxu0 %v1261
  %1394 = vmatpush.msra.mxu0 %v1259
  %1395 = vmatpush.msra.mxu0 %v1257
  %1396 = vmatpush.msra.mxu0 %v1255
  %1397 = vmatpush.msra.mxu0 %v1253
  %1398 = vmatpush.msra.mxu0 %v1251
  %1399 = vmatmul.f32.gmra.mxu0 %v1221
  %v1400 = vpop.f32.mrf.mxu0
  %v1401 = vadd.f32 0.0, %v1400
  %1402 = vmatmul.f32.gmra.mxu0 %v1222
  %v1403 = vpop.f32.mrf.mxu0
  %v1404 = vadd.f32 0.0, %v1403
  %1405 = vmatmul.f32.gmra.mxu0 %v1223
  %v1406 = vpop.f32.mrf.mxu0
  %v1407 = vadd.f32 0.0, %v1406
  %1408 = vmatmul.f32.gmra.mxu0 %v1224
  %v1409 = vpop.f32.mrf.mxu0
  %v1410 = vadd.f32 0.0, %v1409
  %1411 = vmatmul.f32.gmra.mxu0 %v1225
  %v1412 = vpop.f32.mrf.mxu0
  %v1413 = vadd.f32 0.0, %v1412
  %1414 = vmatmul.f32.gmra.mxu0 %v1226
  %v1415 = vpop.f32.mrf.mxu0
  %v1416 = vadd.f32 0.0, %v1415
  %1417 = vmatmul.f32.gmra.mxu0 %v1227
  %v1418 = vpop.f32.mrf.mxu0
  %v1419 = vadd.f32 0.0, %v1418
  %1420 = vmatmul.f32.gmra.mxu0 %v1228
  %v1421 = vpop.f32.mrf.mxu0
  %v1422 = vadd.f32 0.0, %v1421
  %1423 = vmatmul.f32.gmra.mxu0 %v1229
  %v1424 = vpop.f32.mrf.mxu0
  %v1425 = vadd.f32 0.0, %v1424
  %1426 = vmatmul.f32.gmra.mxu0 %v1230
  %v1427 = vpop.f32.mrf.mxu0
  %v1428 = vadd.f32 0.0, %v1427
  %1429 = vmatmul.f32.gmra.mxu0 %v1231
  %v1430 = vpop.f32.mrf.mxu0
  %v1431 = vadd.f32 0.0, %v1430
  %1432 = vmatmul.f32.gmra.mxu0 %v1232
  %v1433 = vpop.f32.mrf.mxu0
  %v1434 = vadd.f32 0.0, %v1433
  %1435 = vmatmul.f32.gmra.mxu0 %v1233
  %v1436 = vpop.f32.mrf.mxu0
  %v1437 = vadd.f32 0.0, %v1436
  %1438 = vmatmul.f32.gmra.mxu0 %v1234
  %v1439 = vpop.f32.mrf.mxu0
  %v1440 = vadd.f32 0.0, %v1439
  %1441 = vmatmul.f32.gmra.mxu0 %v1235
  %v1442 = vpop.f32.mrf.mxu0
  %v1443 = vadd.f32 0.0, %v1442
  %1444 = vmatmul.f32.gmra.mxu0 %v1236
  %v1445 = vpop.f32.mrf.mxu0
  %v1446 = vadd.f32 0.0, %v1445
  %1447 = vmatmul.f32.gmra.mxu0 %v1237
  %v1448 = vpop.f32.mrf.mxu0
  %v1449 = vadd.f32 0.0, %v1448
  %1450 = vmatmul.f32.gmra.mxu0 %v1238
  %v1451 = vpop.f32.mrf.mxu0
  %v1452 = vadd.f32 0.0, %v1451
  %1453 = vmatmul.f32.gmra.mxu0 %v1239
  %v1454 = vpop.f32.mrf.mxu0
  %v1455 = vadd.f32 0.0, %v1454
  %1456 = vmatmul.f32.gmra.mxu0 %v1240
  %v1457 = vpop.f32.mrf.mxu0
  %v1458 = vadd.f32 0.0, %v1457
  %1459 = vmatmul.f32.gmra.mxu0 %v1241
  %v1460 = vpop.f32.mrf.mxu0
  %v1461 = vadd.f32 0.0, %v1460
  %1462 = vmatmul.f32.gmra.mxu0 %v1242
  %v1463 = vpop.f32.mrf.mxu0
  %v1464 = vadd.f32 0.0, %v1463
  %1465 = vmatmul.f32.gmra.mxu0 %v1243
  %v1466 = vpop.f32.mrf.mxu0
  %v1467 = vadd.f32 0.0, %v1466
  %1468 = vmatmul.f32.gmra.mxu0 %v1244
  %v1469 = vpop.f32.mrf.mxu0
  %v1470 = vadd.f32 0.0, %v1469
  %1471 = vmatmul.f32.gmra.mxu0 %v1245
  %v1472 = vpop.f32.mrf.mxu0
  %v1473 = vadd.f32 0.0, %v1472
  %1474 = vmatmul.f32.gmra.mxu0 %v1246
  %v1475 = vpop.f32.mrf.mxu0
  %v1476 = vadd.f32 0.0, %v1475
  %1477 = vmatmul.f32.gmra.mxu0 %v1247
  %v1478 = vpop.f32.mrf.mxu0
  %v1479 = vadd.f32 0.0, %v1478
  %1480 = vmatmul.f32.gmra.mxu0 %v1248
  %v1481 = vpop.f32.mrf.mxu0
  %v1482 = vadd.f32 0.0, %v1481
  %1483 = vdwg.mxu0
  %v1484 = vld [vmem:[#allocation2] sm:$0xff]
  %v1485 = vld [vmem:[#allocation2 + $0x8] sm:$0xff]
  %v1486 = vld [vmem:[#allocation2 + $0x10] sm:$0xff]
  %v1487 = vld [vmem:[#allocation2 + $0x18] sm:$0xff]
  %v1488 = vld [vmem:[#allocation2 + $0x20] sm:$0xff]
  %v1489 = vld [vmem:[#allocation2 + $0x28] sm:$0xff]
  %v1490 = vld [vmem:[#allocation2 + $0x30] sm:$0xff]
  %v1491 = vld [vmem:[#allocation2 + $0x38] sm:$0xff]
  %v1492 = vld [vmem:[#allocation2 + $0x40] sm:$0xff]
  %v1493 = vld [vmem:[#allocation2 + $0x48] sm:$0xff]
  %v1494 = vld [vmem:[#allocation2 + $0x50] sm:$0xff]
  %v1495 = vld [vmem:[#allocation2 + $0x58] sm:$0xff]
  %v1496 = vld [vmem:[#allocation2 + $0x60] sm:$0xff]
  %v1497 = vld [vmem:[#allocation2 + $0x68] sm:$0xff]
  %v1498 = vld [vmem:[#allocation2 + $0x70] sm:$0xff]
  %v1499 = vld [vmem:[#allocation2 + $0x78] sm:$0xff]
  %v1500 = vld [vmem:[#allocation2 + $0x80] sm:$0xff]
  %v1501 = vld [vmem:[#allocation2 + $0x88] sm:$0xff]
  %v1502 = vld [vmem:[#allocation2 + $0x90] sm:$0xff]
  %v1503 = vld [vmem:[#allocation2 + $0x98] sm:$0xff]
  %v1504 = vld [vmem:[#allocation2 + $0xa0] sm:$0xff]
  %v1505 = vld [vmem:[#allocation2 + $0xa8] sm:$0xff]
  %v1506 = vld [vmem:[#allocation2 + $0xb0] sm:$0xff]
  %v1507 = vld [vmem:[#allocation2 + $0xb8] sm:$0xff]
  %v1508 = vld [vmem:[#allocation2 + $0xc0] sm:$0xff]
  %v1509 = vld [vmem:[#allocation2 + $0xc8] sm:$0xff]
  %v1510 = vld [vmem:[#allocation2 + $0xd0] sm:$0xff]
  %v1511 = vld [vmem:[#allocation2 + $0xd8] sm:$0xff]
  %v1512 = vld [vmem:[#allocation2 + $0xe0] sm:$0xff]
  %v1513 = vld [vmem:[#allocation2 + $0xe8] sm:$0xff]
  %v1514 = vld [vmem:[#allocation2 + $0xf0] sm:$0xff]
  %v1515 = vld [vmem:[#allocation2 + $0xf8] sm:$0xff]
  %v1516 = vld [vmem:[#allocation2 + $0x100] sm:$0xff]
  %v1517 = vld [vmem:[#allocation2 + $0x108] sm:$0xff]
  %v1518 = vld [vmem:[#allocation2 + $0x110] sm:$0xff]
  %v1519 = vld [vmem:[#allocation2 + $0x118] sm:$0xff]
  %v1520 = vld [vmem:[#allocation2 + $0x120] sm:$0xff]
  %v1521 = vld [vmem:[#allocation2 + $0x128] sm:$0xff]
  %v1522 = vld [vmem:[#allocation2 + $0x130] sm:$0xff]
  %v1523 = vld [vmem:[#allocation2 + $0x138] sm:$0xff]
  %v1524 = vld [vmem:[#allocation2 + $0x140] sm:$0xff]
  %v1525 = vld [vmem:[#allocation2 + $0x148] sm:$0xff]
  %v1526 = vld [vmem:[#allocation2 + $0x150] sm:$0xff]
  %v1527 = vld [vmem:[#allocation2 + $0x158] sm:$0xff]
  %v1528 = vld [vmem:[#allocation2 + $0x160] sm:$0xff]
  %v1529 = vld [vmem:[#allocation2 + $0x168] sm:$0xff]
  %v1530 = vld [vmem:[#allocation2 + $0x170] sm:$0xff]
  %v1531 = vld [vmem:[#allocation2 + $0x178] sm:$0xff]
  %v1532 = vld [vmem:[#allocation2 + $0x180] sm:$0xff]
  %v1533 = vld [vmem:[#allocation2 + $0x188] sm:$0xff]
  %v1534 = vld [vmem:[#allocation2 + $0x190] sm:$0xff]
  %v1535 = vld [vmem:[#allocation2 + $0x198] sm:$0xff]
  %v1536 = vld [vmem:[#allocation2 + $0x1a0] sm:$0xff]
  %v1537 = vld [vmem:[#allocation2 + $0x1a8] sm:$0xff]
  %v1538 = vld [vmem:[#allocation2 + $0x1b0] sm:$0xff]
  %v1539 = vld [vmem:[#allocation2 + $0x1b8] sm:$0xff]
  %v1540 = vadd.f32 %v1484, %v1300
  %v1541 = vadd.f32 %v1485, %v1401
  %v1542 = vadd.f32 %v1486, %v1303
  %v1543 = vadd.f32 %v1487, %v1404
  %v1544 = vadd.f32 %v1488, %v1306
  %v1545 = vadd.f32 %v1489, %v1407
  %v1546 = vadd.f32 %v1490, %v1309
  %v1547 = vadd.f32 %v1491, %v1410
  %v1548 = vadd.f32 %v1492, %v1312
  %v1549 = vadd.f32 %v1493, %v1413
  %v1550 = vadd.f32 %v1494, %v1315
  %v1551 = vadd.f32 %v1495, %v1416
  %v1552 = vadd.f32 %v1496, %v1318
  %v1553 = vadd.f32 %v1497, %v1419
  %v1554 = vadd.f32 %v1498, %v1321
  %v1555 = vadd.f32 %v1499, %v1422
  %v1556 = vadd.f32 %v1500, %v1324
  %v1557 = vadd.f32 %v1501, %v1425
  %v1558 = vadd.f32 %v1502, %v1327
  %v1559 = vadd.f32 %v1503, %v1428
  %v1560 = vadd.f32 %v1504, %v1330
  %v1561 = vadd.f32 %v1505, %v1431
  %v1562 = vadd.f32 %v1506, %v1333
  %v1563 = vadd.f32 %v1507, %v1434
  %v1564 = vadd.f32 %v1508, %v1336
  %v1565 = vadd.f32 %v1509, %v1437
  %v1566 = vadd.f32 %v1510, %v1339
  %v1567 = vadd.f32 %v1511, %v1440
  %v1568 = vadd.f32 %v1512, %v1342
  %v1569 = vadd.f32 %v1513, %v1443
  %v1570 = vadd.f32 %v1514, %v1345
  %v1571 = vadd.f32 %v1515, %v1446
  %v1572 = vadd.f32 %v1516, %v1348
  %v1573 = vadd.f32 %v1517, %v1449
  %v1574 = vadd.f32 %v1518, %v1351
  %v1575 = vadd.f32 %v1519, %v1452
  %v1576 = vadd.f32 %v1520, %v1354
  %v1577 = vadd.f32 %v1521, %v1455
  %v1578 = vadd.f32 %v1522, %v1357
  %v1579 = vadd.f32 %v1523, %v1458
  %v1580 = vadd.f32 %v1524, %v1360
  %v1581 = vadd.f32 %v1525, %v1461
  %v1582 = vadd.f32 %v1526, %v1363
  %v1583 = vadd.f32 %v1527, %v1464
  %v1584 = vadd.f32 %v1528, %v1366
  %v1585 = vadd.f32 %v1529, %v1467
  %v1586 = vadd.f32 %v1530, %v1369
  %v1587 = vadd.f32 %v1531, %v1470
  %v1588 = vadd.f32 %v1532, %v1372
  %v1589 = vadd.f32 %v1533, %v1473
  %v1590 = vadd.f32 %v1534, %v1375
  %v1591 = vadd.f32 %v1535, %v1476
  %v1592 = vadd.f32 %v1536, %v1378
  %v1593 = vadd.f32 %v1537, %v1479
  %v1594 = vadd.f32 %v1538, %v1381
  %v1595 = vadd.f32 %v1539, %v1482
  %1596 = vst [vmem:[#allocation2] sm:$0xff] %v1540
  %1597 = vst [vmem:[#allocation2 + $0x8] sm:$0xff] %v1541
  %1598 = vst [vmem:[#allocation2 + $0x10] sm:$0xff] %v1542
  %1599 = vst [vmem:[#allocation2 + $0x18] sm:$0xff] %v1543
  %1600 = vst [vmem:[#allocation2 + $0x20] sm:$0xff] %v1544
  %1601 = vst [vmem:[#allocation2 + $0x28] sm:$0xff] %v1545
  %1602 = vst [vmem:[#allocation2 + $0x30] sm:$0xff] %v1546
  %1603 = vst [vmem:[#allocation2 + $0x38] sm:$0xff] %v1547
  %1604 = vst [vmem:[#allocation2 + $0x40] sm:$0xff] %v1548
  %1605 = vst [vmem:[#allocation2 + $0x48] sm:$0xff] %v1549
  %1606 = vst [vmem:[#allocation2 + $0x50] sm:$0xff] %v1550
  %1607 = vst [vmem:[#allocation2 + $0x58] sm:$0xff] %v1551
  %1608 = vst [vmem:[#allocation2 + $0x60] sm:$0xff] %v1552
  %1609 = vst [vmem:[#allocation2 + $0x68] sm:$0xff] %v1553
  %1610 = vst [vmem:[#allocation2 + $0x70] sm:$0xff] %v1554
  %1611 = vst [vmem:[#allocation2 + $0x78] sm:$0xff] %v1555
  %1612 = vst [vmem:[#allocation2 + $0x80] sm:$0xff] %v1556
  %1613 = vst [vmem:[#allocation2 + $0x88] sm:$0xff] %v1557
  %1614 = vst [vmem:[#allocation2 + $0x90] sm:$0xff] %v1558
  %1615 = vst [vmem:[#allocation2 + $0x98] sm:$0xff] %v1559
  %1616 = vst [vmem:[#allocation2 + $0xa0] sm:$0xff] %v1560
  %1617 = vst [vmem:[#allocation2 + $0xa8] sm:$0xff] %v1561
  %1618 = vst [vmem:[#allocation2 + $0xb0] sm:$0xff] %v1562
  %1619 = vst [vmem:[#allocation2 + $0xb8] sm:$0xff] %v1563
  %1620 = vst [vmem:[#allocation2 + $0xc0] sm:$0xff] %v1564
  %1621 = vst [vmem:[#allocation2 + $0xc8] sm:$0xff] %v1565
  %1622 = vst [vmem:[#allocation2 + $0xd0] sm:$0xff] %v1566
  %1623 = vst [vmem:[#allocation2 + $0xd8] sm:$0xff] %v1567
  %1624 = vst [vmem:[#allocation2 + $0xe0] sm:$0xff] %v1568
  %1625 = vst [vmem:[#allocation2 + $0xe8] sm:$0xff] %v1569
  %1626 = vst [vmem:[#allocation2 + $0xf0] sm:$0xff] %v1570
  %1627 = vst [vmem:[#allocation2 + $0xf8] sm:$0xff] %v1571
  %1628 = vst [vmem:[#allocation2 + $0x100] sm:$0xff] %v1572
  %1629 = vst [vmem:[#allocation2 + $0x108] sm:$0xff] %v1573
  %1630 = vst [vmem:[#allocation2 + $0x110] sm:$0xff] %v1574
  %1631 = vst [vmem:[#allocation2 + $0x118] sm:$0xff] %v1575
  %1632 = vst [vmem:[#allocation2 + $0x120] sm:$0xff] %v1576
  %1633 = vst [vmem:[#allocation2 + $0x128] sm:$0xff] %v1577
  %1634 = vst [vmem:[#allocation2 + $0x130] sm:$0xff] %v1578
  %1635 = vst [vmem:[#allocation2 + $0x138] sm:$0xff] %v1579
  %1636 = vst [vmem:[#allocation2 + $0x140] sm:$0xff] %v1580
  %1637 = vst [vmem:[#allocation2 + $0x148] sm:$0xff] %v1581
  %1638 = vst [vmem:[#allocation2 + $0x150] sm:$0xff] %v1582
  %1639 = vst [vmem:[#allocation2 + $0x158] sm:$0xff] %v1583
  %1640 = vst [vmem:[#allocation2 + $0x160] sm:$0xff] %v1584
  %1641 = vst [vmem:[#allocation2 + $0x168] sm:$0xff] %v1585
  %1642 = vst [vmem:[#allocation2 + $0x170] sm:$0xff] %v1586
  %1643 = vst [vmem:[#allocation2 + $0x178] sm:$0xff] %v1587
  %1644 = vst [vmem:[#allocation2 + $0x180] sm:$0xff] %v1588
  %1645 = vst [vmem:[#allocation2 + $0x188] sm:$0xff] %v1589
  %1646 = vst [vmem:[#allocation2 + $0x190] sm:$0xff] %v1590
  %1647 = vst [vmem:[#allocation2 + $0x198] sm:$0xff] %v1591
  %1648 = vst [vmem:[#allocation2 + $0x1a0] sm:$0xff] %v1592
  %1649 = vst [vmem:[#allocation2 + $0x1a8] sm:$0xff] %v1593
  %1650 = vst [vmem:[#allocation2 + $0x1b0] sm:$0xff] %v1594
  %1651 = vst [vmem:[#allocation2 + $0x1b8] sm:$0xff] %v1595
  %s1652 = scalar_lea.vmem %s0, 32
  %v1653 = vld [vmem:[%s1652] sm:$0xff]
  %v1654 = vld [vmem:[%s1652 + $0x8] sm:$0xff]
  %v1655 = vld [vmem:[%s1652 + $0x10] sm:$0xff]
  %v1656 = vld [vmem:[%s1652 + $0x18] sm:$0xff]
  %v1657 = vld [vmem:[%s1652 + $0x20] sm:$0xff]
  %v1658 = vld [vmem:[%s1652 + $0x28] sm:$0xff]
  %v1659 = vld [vmem:[%s1652 + $0x30] sm:$0xff]
  %v1660 = vld [vmem:[%s1652 + $0x38] sm:$0xff]
  %v1661 = vld [vmem:[%s1652 + $0x40] sm:$0xff]
  %v1662 = vld [vmem:[%s1652 + $0x48] sm:$0xff]
  %v1663 = vld [vmem:[%s1652 + $0x50] sm:$0xff]
  %v1664 = vld [vmem:[%s1652 + $0x58] sm:$0xff]
  %v1665 = vld [vmem:[%s1652 + $0x60] sm:$0xff]
  %v1666 = vld [vmem:[%s1652 + $0x68] sm:$0xff]
  %v1667 = vld [vmem:[%s1652 + $0x70] sm:$0xff]
  %v1668 = vld [vmem:[%s1652 + $0x78] sm:$0xff]
  %v1669 = vld [vmem:[%s1652 + $0x80] sm:$0xff]
  %v1670 = vld [vmem:[%s1652 + $0x88] sm:$0xff]
  %v1671 = vld [vmem:[%s1652 + $0x90] sm:$0xff]
  %v1672 = vld [vmem:[%s1652 + $0x98] sm:$0xff]
  %v1673 = vld [vmem:[%s1652 + $0xa0] sm:$0xff]
  %v1674 = vld [vmem:[%s1652 + $0xa8] sm:$0xff]
  %v1675 = vld [vmem:[%s1652 + $0xb0] sm:$0xff]
  %v1676 = vld [vmem:[%s1652 + $0xb8] sm:$0xff]
  %v1677 = vld [vmem:[%s1652 + $0xc0] sm:$0xff]
  %v1678 = vld [vmem:[%s1652 + $0xc8] sm:$0xff]
  %v1679 = vld [vmem:[%s1652 + $0xd0] sm:$0xff]
  %v1680 = vld [vmem:[%s1652 + $0xd8] sm:$0xff]
  %s1681 = scalar_lea.vmem %s1, 1024
  %v1682 = vld [vmem:[%s1681] sm:$0xff]
  %v1683 = vld [vmem:[%s1681 + $0x8] sm:$0xff]
  %v1684 = vld [vmem:[%s1681 + $0x10] sm:$0xff]
  %v1685 = vld [vmem:[%s1681 + $0x18] sm:$0xff]
  %v1686 = vld [vmem:[%s1681 + $0x20] sm:$0xff]
  %v1687 = vld [vmem:[%s1681 + $0x28] sm:$0xff]
  %v1688 = vld [vmem:[%s1681 + $0x30] sm:$0xff]
  %v1689 = vld [vmem:[%s1681 + $0x38] sm:$0xff]
  %v1690 = vld [vmem:[%s1681 + $0x40] sm:$0xff]
  %v1691 = vld [vmem:[%s1681 + $0x48] sm:$0xff]
  %v1692 = vld [vmem:[%s1681 + $0x50] sm:$0xff]
  %v1693 = vld [vmem:[%s1681 + $0x58] sm:$0xff]
  %v1694 = vld [vmem:[%s1681 + $0x60] sm:$0xff]
  %v1695 = vld [vmem:[%s1681 + $0x68] sm:$0xff]
  %v1696 = vld [vmem:[%s1681 + $0x70] sm:$0xff]
  %v1697 = vld [vmem:[%s1681 + $0x78] sm:$0xff]
  %v1698 = vld [vmem:[%s1681 + $0x80] sm:$0xff]
  %v1699 = vld [vmem:[%s1681 + $0x88] sm:$0xff]
  %v1700 = vld [vmem:[%s1681 + $0x90] sm:$0xff]
  %v1701 = vld [vmem:[%s1681 + $0x98] sm:$0xff]
  %v1702 = vld [vmem:[%s1681 + $0xa0] sm:$0xff]
  %v1703 = vld [vmem:[%s1681 + $0xa8] sm:$0xff]
  %v1704 = vld [vmem:[%s1681 + $0xb0] sm:$0xff]
  %v1705 = vld [vmem:[%s1681 + $0xb8] sm:$0xff]
  %v1706 = vld [vmem:[%s1681 + $0xc0] sm:$0xff]
  %v1707 = vld [vmem:[%s1681 + $0xc8] sm:$0xff]
  %v1708 = vld [vmem:[%s1681 + $0xd0] sm:$0xff]
  %v1709 = vld [vmem:[%s1681 + $0xd8] sm:$0xff]
  %v1710 = vld [vmem:[%s1681 + $0xe0] sm:$0xff]
  %v1711 = vld [vmem:[%s1681 + $0xe8] sm:$0xff]
  %v1712 = vld [vmem:[%s1681 + $0xf0] sm:$0xff]
  %v1713 = vld [vmem:[%s1681 + $0xf8] sm:$0xff]
  %1714 = vmatpush.msra.mxu0 %v1712
  %1715 = vmatpush.msra.mxu0 %v1710
  %1716 = vmatpush.msra.mxu0 %v1708
  %1717 = vmatpush.msra.mxu0 %v1706
  %1718 = vmatpush.msra.mxu0 %v1704
  %1719 = vmatpush.msra.mxu0 %v1702
  %1720 = vmatpush.msra.mxu0 %v1700
  %1721 = vmatpush.msra.mxu0 %v1698
  %1722 = vmatpush.msra.mxu0 %v1696
  %1723 = vmatpush.msra.mxu0 %v1694
  %1724 = vmatpush.msra.mxu0 %v1692
  %1725 = vmatpush.msra.mxu0 %v1690
  %1726 = vmatpush.msra.mxu0 %v1688
  %1727 = vmatpush.msra.mxu0 %v1686
  %1728 = vmatpush.msra.mxu0 %v1684
  %1729 = vmatpush.msra.mxu0 %v1682
  %1730 = vmatmul.f32.gmra.mxu0 %v1653
  %v1731 = vpop.f32.mrf.mxu0
  %v1732 = vadd.f32 0.0, %v1731
  %1733 = vmatmul.f32.gmra.mxu0 %v1654
  %v1734 = vpop.f32.mrf.mxu0
  %v1735 = vadd.f32 0.0, %v1734
  %1736 = vmatmul.f32.gmra.mxu0 %v1655
  %v1737 = vpop.f32.mrf.mxu0
  %v1738 = vadd.f32 0.0, %v1737
  %1739 = vmatmul.f32.gmra.mxu0 %v1656
  %v1740 = vpop.f32.mrf.mxu0
  %v1741 = vadd.f32 0.0, %v1740
  %1742 = vmatmul.f32.gmra.mxu0 %v1657
  %v1743 = vpop.f32.mrf.mxu0
  %v1744 = vadd.f32 0.0, %v1743
  %1745 = vmatmul.f32.gmra.mxu0 %v1658
  %v1746 = vpop.f32.mrf.mxu0
  %v1747 = vadd.f32 0.0, %v1746
  %1748 = vmatmul.f32.gmra.mxu0 %v1659
  %v1749 = vpop.f32.mrf.mxu0
  %v1750 = vadd.f32 0.0, %v1749
  %1751 = vmatmul.f32.gmra.mxu0 %v1660
  %v1752 = vpop.f32.mrf.mxu0
  %v1753 = vadd.f32 0.0, %v1752
  %1754 = vmatmul.f32.gmra.mxu0 %v1661
  %v1755 = vpop.f32.mrf.mxu0
  %v1756 = vadd.f32 0.0, %v1755
  %1757 = vmatmul.f32.gmra.mxu0 %v1662
  %v1758 = vpop.f32.mrf.mxu0
  %v1759 = vadd.f32 0.0, %v1758
  %1760 = vmatmul.f32.gmra.mxu0 %v1663
  %v1761 = vpop.f32.mrf.mxu0
  %v1762 = vadd.f32 0.0, %v1761
  %1763 = vmatmul.f32.gmra.mxu0 %v1664
  %v1764 = vpop.f32.mrf.mxu0
  %v1765 = vadd.f32 0.0, %v1764
  %1766 = vmatmul.f32.gmra.mxu0 %v1665
  %v1767 = vpop.f32.mrf.mxu0
  %v1768 = vadd.f32 0.0, %v1767
  %1769 = vmatmul.f32.gmra.mxu0 %v1666
  %v1770 = vpop.f32.mrf.mxu0
  %v1771 = vadd.f32 0.0, %v1770
  %1772 = vmatmul.f32.gmra.mxu0 %v1667
  %v1773 = vpop.f32.mrf.mxu0
  %v1774 = vadd.f32 0.0, %v1773
  %1775 = vmatmul.f32.gmra.mxu0 %v1668
  %v1776 = vpop.f32.mrf.mxu0
  %v1777 = vadd.f32 0.0, %v1776
  %1778 = vmatmul.f32.gmra.mxu0 %v1669
  %v1779 = vpop.f32.mrf.mxu0
  %v1780 = vadd.f32 0.0, %v1779
  %1781 = vmatmul.f32.gmra.mxu0 %v1670
  %v1782 = vpop.f32.mrf.mxu0
  %v1783 = vadd.f32 0.0, %v1782
  %1784 = vmatmul.f32.gmra.mxu0 %v1671
  %v1785 = vpop.f32.mrf.mxu0
  %v1786 = vadd.f32 0.0, %v1785
  %1787 = vmatmul.f32.gmra.mxu0 %v1672
  %v1788 = vpop.f32.mrf.mxu0
  %v1789 = vadd.f32 0.0, %v1788
  %1790 = vmatmul.f32.gmra.mxu0 %v1673
  %v1791 = vpop.f32.mrf.mxu0
  %v1792 = vadd.f32 0.0, %v1791
  %1793 = vmatmul.f32.gmra.mxu0 %v1674
  %v1794 = vpop.f32.mrf.mxu0
  %v1795 = vadd.f32 0.0, %v1794
  %1796 = vmatmul.f32.gmra.mxu0 %v1675
  %v1797 = vpop.f32.mrf.mxu0
  %v1798 = vadd.f32 0.0, %v1797
  %1799 = vmatmul.f32.gmra.mxu0 %v1676
  %v1800 = vpop.f32.mrf.mxu0
  %v1801 = vadd.f32 0.0, %v1800
  %1802 = vmatmul.f32.gmra.mxu0 %v1677
  %v1803 = vpop.f32.mrf.mxu0
  %v1804 = vadd.f32 0.0, %v1803
  %1805 = vmatmul.f32.gmra.mxu0 %v1678
  %v1806 = vpop.f32.mrf.mxu0
  %v1807 = vadd.f32 0.0, %v1806
  %1808 = vmatmul.f32.gmra.mxu0 %v1679
  %v1809 = vpop.f32.mrf.mxu0
  %v1810 = vadd.f32 0.0, %v1809
  %1811 = vmatmul.f32.gmra.mxu0 %v1680
  %v1812 = vpop.f32.mrf.mxu0
  %v1813 = vadd.f32 0.0, %v1812
  %1814 = vdwg.mxu0
  %1815 = vmatpush.msra.mxu0 %v1713
  %1816 = vmatpush.msra.mxu0 %v1711
  %1817 = vmatpush.msra.mxu0 %v1709
  %1818 = vmatpush.msra.mxu0 %v1707
  %1819 = vmatpush.msra.mxu0 %v1705
  %1820 = vmatpush.msra.mxu0 %v1703
  %1821 = vmatpush.msra.mxu0 %v1701
  %1822 = vmatpush.msra.mxu0 %v1699
  %1823 = vmatpush.msra.mxu0 %v1697
  %1824 = vmatpush.msra.mxu0 %v1695
  %1825 = vmatpush.msra.mxu0 %v1693
  %1826 = vmatpush.msra.mxu0 %v1691
  %1827 = vmatpush.msra.mxu0 %v1689
  %1828 = vmatpush.msra.mxu0 %v1687
  %1829 = vmatpush.msra.mxu0 %v1685
  %1830 = vmatpush.msra.mxu0 %v1683
  %1831 = vmatmul.f32.gmra.mxu0 %v1653
  %v1832 = vpop.f32.mrf.mxu0
  %v1833 = vadd.f32 0.0, %v1832
  %1834 = vmatmul.f32.gmra.mxu0 %v1654
  %v1835 = vpop.f32.mrf.mxu0
  %v1836 = vadd.f32 0.0, %v1835
  %1837 = vmatmul.f32.gmra.mxu0 %v1655
  %v1838 = vpop.f32.mrf.mxu0
  %v1839 = vadd.f32 0.0, %v1838
  %1840 = vmatmul.f32.gmra.mxu0 %v1656
  %v1841 = vpop.f32.mrf.mxu0
  %v1842 = vadd.f32 0.0, %v1841
  %1843 = vmatmul.f32.gmra.mxu0 %v1657
  %v1844 = vpop.f32.mrf.mxu0
  %v1845 = vadd.f32 0.0, %v1844
  %1846 = vmatmul.f32.gmra.mxu0 %v1658
  %v1847 = vpop.f32.mrf.mxu0
  %v1848 = vadd.f32 0.0, %v1847
  %1849 = vmatmul.f32.gmra.mxu0 %v1659
  %v1850 = vpop.f32.mrf.mxu0
  %v1851 = vadd.f32 0.0, %v1850
  %1852 = vmatmul.f32.gmra.mxu0 %v1660
  %v1853 = vpop.f32.mrf.mxu0
  %v1854 = vadd.f32 0.0, %v1853
  %1855 = vmatmul.f32.gmra.mxu0 %v1661
  %v1856 = vpop.f32.mrf.mxu0
  %v1857 = vadd.f32 0.0, %v1856
  %1858 = vmatmul.f32.gmra.mxu0 %v1662
  %v1859 = vpop.f32.mrf.mxu0
  %v1860 = vadd.f32 0.0, %v1859
  %1861 = vmatmul.f32.gmra.mxu0 %v1663
  %v1862 = vpop.f32.mrf.mxu0
  %v1863 = vadd.f32 0.0, %v1862
  %1864 = vmatmul.f32.gmra.mxu0 %v1664
  %v1865 = vpop.f32.mrf.mxu0
  %v1866 = vadd.f32 0.0, %v1865
  %1867 = vmatmul.f32.gmra.mxu0 %v1665
  %v1868 = vpop.f32.mrf.mxu0
  %v1869 = vadd.f32 0.0, %v1868
  %1870 = vmatmul.f32.gmra.mxu0 %v1666
  %v1871 = vpop.f32.mrf.mxu0
  %v1872 = vadd.f32 0.0, %v1871
  %1873 = vmatmul.f32.gmra.mxu0 %v1667
  %v1874 = vpop.f32.mrf.mxu0
  %v1875 = vadd.f32 0.0, %v1874
  %1876 = vmatmul.f32.gmra.mxu0 %v1668
  %v1877 = vpop.f32.mrf.mxu0
  %v1878 = vadd.f32 0.0, %v1877
  %1879 = vmatmul.f32.gmra.mxu0 %v1669
  %v1880 = vpop.f32.mrf.mxu0
  %v1881 = vadd.f32 0.0, %v1880
  %1882 = vmatmul.f32.gmra.mxu0 %v1670
  %v1883 = vpop.f32.mrf.mxu0
  %v1884 = vadd.f32 0.0, %v1883
  %1885 = vmatmul.f32.gmra.mxu0 %v1671
  %v1886 = vpop.f32.mrf.mxu0
  %v1887 = vadd.f32 0.0, %v1886
  %1888 = vmatmul.f32.gmra.mxu0 %v1672
  %v1889 = vpop.f32.mrf.mxu0
  %v1890 = vadd.f32 0.0, %v1889
  %1891 = vmatmul.f32.gmra.mxu0 %v1673
  %v1892 = vpop.f32.mrf.mxu0
  %v1893 = vadd.f32 0.0, %v1892
  %1894 = vmatmul.f32.gmra.mxu0 %v1674
  %v1895 = vpop.f32.mrf.mxu0
  %v1896 = vadd.f32 0.0, %v1895
  %1897 = vmatmul.f32.gmra.mxu0 %v1675
  %v1898 = vpop.f32.mrf.mxu0
  %v1899 = vadd.f32 0.0, %v1898
  %1900 = vmatmul.f32.gmra.mxu0 %v1676
  %v1901 = vpop.f32.mrf.mxu0
  %v1902 = vadd.f32 0.0, %v1901
  %1903 = vmatmul.f32.gmra.mxu0 %v1677
  %v1904 = vpop.f32.mrf.mxu0
  %v1905 = vadd.f32 0.0, %v1904
  %1906 = vmatmul.f32.gmra.mxu0 %v1678
  %v1907 = vpop.f32.mrf.mxu0
  %v1908 = vadd.f32 0.0, %v1907
  %1909 = vmatmul.f32.gmra.mxu0 %v1679
  %v1910 = vpop.f32.mrf.mxu0
  %v1911 = vadd.f32 0.0, %v1910
  %1912 = vmatmul.f32.gmra.mxu0 %v1680
  %v1913 = vpop.f32.mrf.mxu0
  %v1914 = vadd.f32 0.0, %v1913
  %1915 = vdwg.mxu0
  %v1916 = vld [vmem:[#allocation2] sm:$0xff]
  %v1917 = vld [vmem:[#allocation2 + $0x8] sm:$0xff]
  %v1918 = vld [vmem:[#allocation2 + $0x10] sm:$0xff]
  %v1919 = vld [vmem:[#allocation2 + $0x18] sm:$0xff]
  %v1920 = vld [vmem:[#allocation2 + $0x20] sm:$0xff]
  %v1921 = vld [vmem:[#allocation2 + $0x28] sm:$0xff]
  %v1922 = vld [vmem:[#allocation2 + $0x30] sm:$0xff]
  %v1923 = vld [vmem:[#allocation2 + $0x38] sm:$0xff]
  %v1924 = vld [vmem:[#allocation2 + $0x40] sm:$0xff]
  %v1925 = vld [vmem:[#allocation2 + $0x48] sm:$0xff]
  %v1926 = vld [vmem:[#allocation2 + $0x50] sm:$0xff]
  %v1927 = vld [vmem:[#allocation2 + $0x58] sm:$0xff]
  %v1928 = vld [vmem:[#allocation2 + $0x60] sm:$0xff]
  %v1929 = vld [vmem:[#allocation2 + $0x68] sm:$0xff]
  %v1930 = vld [vmem:[#allocation2 + $0x70] sm:$0xff]
  %v1931 = vld [vmem:[#allocation2 + $0x78] sm:$0xff]
  %v1932 = vld [vmem:[#allocation2 + $0x80] sm:$0xff]
  %v1933 = vld [vmem:[#allocation2 + $0x88] sm:$0xff]
  %v1934 = vld [vmem:[#allocation2 + $0x90] sm:$0xff]
  %v1935 = vld [vmem:[#allocation2 + $0x98] sm:$0xff]
  %v1936 = vld [vmem:[#allocation2 + $0xa0] sm:$0xff]
  %v1937 = vld [vmem:[#allocation2 + $0xa8] sm:$0xff]
  %v1938 = vld [vmem:[#allocation2 + $0xb0] sm:$0xff]
  %v1939 = vld [vmem:[#allocation2 + $0xb8] sm:$0xff]
  %v1940 = vld [vmem:[#allocation2 + $0xc0] sm:$0xff]
  %v1941 = vld [vmem:[#allocation2 + $0xc8] sm:$0xff]
  %v1942 = vld [vmem:[#allocation2 + $0xd0] sm:$0xff]
  %v1943 = vld [vmem:[#allocation2 + $0xd8] sm:$0xff]
  %v1944 = vld [vmem:[#allocation2 + $0xe0] sm:$0xff]
  %v1945 = vld [vmem:[#allocation2 + $0xe8] sm:$0xff]
  %v1946 = vld [vmem:[#allocation2 + $0xf0] sm:$0xff]
  %v1947 = vld [vmem:[#allocation2 + $0xf8] sm:$0xff]
  %v1948 = vld [vmem:[#allocation2 + $0x100] sm:$0xff]
  %v1949 = vld [vmem:[#allocation2 + $0x108] sm:$0xff]
  %v1950 = vld [vmem:[#allocation2 + $0x110] sm:$0xff]
  %v1951 = vld [vmem:[#allocation2 + $0x118] sm:$0xff]
  %v1952 = vld [vmem:[#allocation2 + $0x120] sm:$0xff]
  %v1953 = vld [vmem:[#allocation2 + $0x128] sm:$0xff]
  %v1954 = vld [vmem:[#allocation2 + $0x130] sm:$0xff]
  %v1955 = vld [vmem:[#allocation2 + $0x138] sm:$0xff]
  %v1956 = vld [vmem:[#allocation2 + $0x140] sm:$0xff]
  %v1957 = vld [vmem:[#allocation2 + $0x148] sm:$0xff]
  %v1958 = vld [vmem:[#allocation2 + $0x150] sm:$0xff]
  %v1959 = vld [vmem:[#allocation2 + $0x158] sm:$0xff]
  %v1960 = vld [vmem:[#allocation2 + $0x160] sm:$0xff]
  %v1961 = vld [vmem:[#allocation2 + $0x168] sm:$0xff]
  %v1962 = vld [vmem:[#allocation2 + $0x170] sm:$0xff]
  %v1963 = vld [vmem:[#allocation2 + $0x178] sm:$0xff]
  %v1964 = vld [vmem:[#allocation2 + $0x180] sm:$0xff]
  %v1965 = vld [vmem:[#allocation2 + $0x188] sm:$0xff]
  %v1966 = vld [vmem:[#allocation2 + $0x190] sm:$0xff]
  %v1967 = vld [vmem:[#allocation2 + $0x198] sm:$0xff]
  %v1968 = vld [vmem:[#allocation2 + $0x1a0] sm:$0xff]
  %v1969 = vld [vmem:[#allocation2 + $0x1a8] sm:$0xff]
  %v1970 = vld [vmem:[#allocation2 + $0x1b0] sm:$0xff]
  %v1971 = vld [vmem:[#allocation2 + $0x1b8] sm:$0xff]
  %v1972 = vadd.f32 %v1916, %v1732
  %v1973 = vadd.f32 %v1917, %v1833
  %v1974 = vadd.f32 %v1918, %v1735
  %v1975 = vadd.f32 %v1919, %v1836
  %v1976 = vadd.f32 %v1920, %v1738
  %v1977 = vadd.f32 %v1921, %v1839
  %v1978 = vadd.f32 %v1922, %v1741
  %v1979 = vadd.f32 %v1923, %v1842
  %v1980 = vadd.f32 %v1924, %v1744
  %v1981 = vadd.f32 %v1925, %v1845
  %v1982 = vadd.f32 %v1926, %v1747
  %v1983 = vadd.f32 %v1927, %v1848
  %v1984 = vadd.f32 %v1928, %v1750
  %v1985 = vadd.f32 %v1929, %v1851
  %v1986 = vadd.f32 %v1930, %v1753
  %v1987 = vadd.f32 %v1931, %v1854
  %v1988 = vadd.f32 %v1932, %v1756
  %v1989 = vadd.f32 %v1933, %v1857
  %v1990 = vadd.f32 %v1934, %v1759
  %v1991 = vadd.f32 %v1935, %v1860
  %v1992 = vadd.f32 %v1936, %v1762
  %v1993 = vadd.f32 %v1937, %v1863
  %v1994 = vadd.f32 %v1938, %v1765
  %v1995 = vadd.f32 %v1939, %v1866
  %v1996 = vadd.f32 %v1940, %v1768
  %v1997 = vadd.f32 %v1941, %v1869
  %v1998 = vadd.f32 %v1942, %v1771
  %v1999 = vadd.f32 %v1943, %v1872
  %v2000 = vadd.f32 %v1944, %v1774
  %v2001 = vadd.f32 %v1945, %v1875
  %v2002 = vadd.f32 %v1946, %v1777
  %v2003 = vadd.f32 %v1947, %v1878
  %v2004 = vadd.f32 %v1948, %v1780
  %v2005 = vadd.f32 %v1949, %v1881
  %v2006 = vadd.f32 %v1950, %v1783
  %v2007 = vadd.f32 %v1951, %v1884
  %v2008 = vadd.f32 %v1952, %v1786
  %v2009 = vadd.f32 %v1953, %v1887
  %v2010 = vadd.f32 %v1954, %v1789
  %v2011 = vadd.f32 %v1955, %v1890
  %v2012 = vadd.f32 %v1956, %v1792
  %v2013 = vadd.f32 %v1957, %v1893
  %v2014 = vadd.f32 %v1958, %v1795
  %v2015 = vadd.f32 %v1959, %v1896
  %v2016 = vadd.f32 %v1960, %v1798
  %v2017 = vadd.f32 %v1961, %v1899
  %v2018 = vadd.f32 %v1962, %v1801
  %v2019 = vadd.f32 %v1963, %v1902
  %v2020 = vadd.f32 %v1964, %v1804
  %v2021 = vadd.f32 %v1965, %v1905
  %v2022 = vadd.f32 %v1966, %v1807
  %v2023 = vadd.f32 %v1967, %v1908
  %v2024 = vadd.f32 %v1968, %v1810
  %v2025 = vadd.f32 %v1969, %v1911
  %v2026 = vadd.f32 %v1970, %v1813
  %v2027 = vadd.f32 %v1971, %v1914
  %2028 = vst [vmem:[#allocation2] sm:$0xff] %v1972
  %2029 = vst [vmem:[#allocation2 + $0x8] sm:$0xff] %v1973
  %2030 = vst [vmem:[#allocation2 + $0x10] sm:$0xff] %v1974
  %2031 = vst [vmem:[#allocation2 + $0x18] sm:$0xff] %v1975
  %2032 = vst [vmem:[#allocation2 + $0x20] sm:$0xff] %v1976
  %2033 = vst [vmem:[#allocation2 + $0x28] sm:$0xff] %v1977
  %2034 = vst [vmem:[#allocation2 + $0x30] sm:$0xff] %v1978
  %2035 = vst [vmem:[#allocation2 + $0x38] sm:$0xff] %v1979
  %2036 = vst [vmem:[#allocation2 + $0x40] sm:$0xff] %v1980
  %2037 = vst [vmem:[#allocation2 + $0x48] sm:$0xff] %v1981
  %2038 = vst [vmem:[#allocation2 + $0x50] sm:$0xff] %v1982
  %2039 = vst [vmem:[#allocation2 + $0x58] sm:$0xff] %v1983
  %2040 = vst [vmem:[#allocation2 + $0x60] sm:$0xff] %v1984
  %2041 = vst [vmem:[#allocation2 + $0x68] sm:$0xff] %v1985
  %2042 = vst [vmem:[#allocation2 + $0x70] sm:$0xff] %v1986
  %2043 = vst [vmem:[#allocation2 + $0x78] sm:$0xff] %v1987
  %2044 = vst [vmem:[#allocation2 + $0x80] sm:$0xff] %v1988
  %2045 = vst [vmem:[#allocation2 + $0x88] sm:$0xff] %v1989
  %2046 = vst [vmem:[#allocation2 + $0x90] sm:$0xff] %v1990
  %2047 = vst [vmem:[#allocation2 + $0x98] sm:$0xff] %v1991
  %2048 = vst [vmem:[#allocation2 + $0xa0] sm:$0xff] %v1992
  %2049 = vst [vmem:[#allocation2 + $0xa8] sm:$0xff] %v1993
  %2050 = vst [vmem:[#allocation2 + $0xb0] sm:$0xff] %v1994
  %2051 = vst [vmem:[#allocation2 + $0xb8] sm:$0xff] %v1995
  %2052 = vst [vmem:[#allocation2 + $0xc0] sm:$0xff] %v1996
  %2053 = vst [vmem:[#allocation2 + $0xc8] sm:$0xff] %v1997
  %2054 = vst [vmem:[#allocation2 + $0xd0] sm:$0xff] %v1998
  %2055 = vst [vmem:[#allocation2 + $0xd8] sm:$0xff] %v1999
  %2056 = vst [vmem:[#allocation2 + $0xe0] sm:$0xff] %v2000
  %2057 = vst [vmem:[#allocation2 + $0xe8] sm:$0xff] %v2001
  %2058 = vst [vmem:[#allocation2 + $0xf0] sm:$0xff] %v2002
  %2059 = vst [vmem:[#allocation2 + $0xf8] sm:$0xff] %v2003
  %2060 = vst [vmem:[#allocation2 + $0x100] sm:$0xff] %v2004
  %2061 = vst [vmem:[#allocation2 + $0x108] sm:$0xff] %v2005
  %2062 = vst [vmem:[#allocation2 + $0x110] sm:$0xff] %v2006
  %2063 = vst [vmem:[#allocation2 + $0x118] sm:$0xff] %v2007
  %2064 = vst [vmem:[#allocation2 + $0x120] sm:$0xff] %v2008
  %2065 = vst [vmem:[#allocation2 + $0x128] sm:$0xff] %v2009
  %2066 = vst [vmem:[#allocation2 + $0x130] sm:$0xff] %v2010
  %2067 = vst [vmem:[#allocation2 + $0x138] sm:$0xff] %v2011
  %2068 = vst [vmem:[#allocation2 + $0x140] sm:$0xff] %v2012
  %2069 = vst [vmem:[#allocation2 + $0x148] sm:$0xff] %v2013
  %2070 = vst [vmem:[#allocation2 + $0x150] sm:$0xff] %v2014
  %2071 = vst [vmem:[#allocation2 + $0x158] sm:$0xff] %v2015
  %2072 = vst [vmem:[#allocation2 + $0x160] sm:$0xff] %v2016
  %2073 = vst [vmem:[#allocation2 + $0x168] sm:$0xff] %v2017
  %2074 = vst [vmem:[#allocation2 + $0x170] sm:$0xff] %v2018
  %2075 = vst [vmem:[#allocation2 + $0x178] sm:$0xff] %v2019
  %2076 = vst [vmem:[#allocation2 + $0x180] sm:$0xff] %v2020
  %2077 = vst [vmem:[#allocation2 + $0x188] sm:$0xff] %v2021
  %2078 = vst [vmem:[#allocation2 + $0x190] sm:$0xff] %v2022
  %2079 = vst [vmem:[#allocation2 + $0x198] sm:$0xff] %v2023
  %2080 = vst [vmem:[#allocation2 + $0x1a0] sm:$0xff] %v2024
  %2081 = vst [vmem:[#allocation2 + $0x1a8] sm:$0xff] %v2025
  %2082 = vst [vmem:[#allocation2 + $0x1b0] sm:$0xff] %v2026
  %2083 = vst [vmem:[#allocation2 + $0x1b8] sm:$0xff] %v2027
  %v2084 = vld [vmem:[#allocation2] sm:$0xff]
  %v2085 = vld [vmem:[#allocation2 + $0x8] sm:$0xff]
  %v2086 = vld [vmem:[#allocation2 + $0x20] sm:$0xff]
  %v2087 = vld [vmem:[#allocation2 + $0x28] sm:$0xff]
  %v2088 = vld [vmem:[#allocation2 + $0x40] sm:$0xff]
  %v2089 = vld [vmem:[#allocation2 + $0x48] sm:$0xff]
  %v2090 = vld [vmem:[#allocation2 + $0x60] sm:$0xff]
  %v2091 = vld [vmem:[#allocation2 + $0x68] sm:$0xff]
  %v2092 = vld [vmem:[#allocation2 + $0x80] sm:$0xff]
  %v2093 = vld [vmem:[#allocation2 + $0x88] sm:$0xff]
  %v2094 = vld [vmem:[#allocation2 + $0xa0] sm:$0xff]
  %v2095 = vld [vmem:[#allocation2 + $0xa8] sm:$0xff]
  %v2096 = vld [vmem:[#allocation2 + $0xc0] sm:$0xff]
  %v2097 = vld [vmem:[#allocation2 + $0xc8] sm:$0xff]
  %v2098 = vld [vmem:[#allocation2 + $0xe0] sm:$0xff]
  %v2099 = vld [vmem:[#allocation2 + $0xe8] sm:$0xff]
  %v2100 = vld [vmem:[#allocation2 + $0x100] sm:$0xff]
  %v2101 = vld [vmem:[#allocation2 + $0x108] sm:$0xff]
  %v2102 = vld [vmem:[#allocation2 + $0x120] sm:$0xff]
  %v2103 = vld [vmem:[#allocation2 + $0x128] sm:$0xff]
  %v2104 = vld [vmem:[#allocation2 + $0x140] sm:$0xff]
  %v2105 = vld [vmem:[#allocation2 + $0x148] sm:$0xff]
  %v2106 = vld [vmem:[#allocation2 + $0x160] sm:$0xff]
  %v2107 = vld [vmem:[#allocation2 + $0x168] sm:$0xff]
  %v2108 = vld [vmem:[#allocation2 + $0x180] sm:$0xff]
  %v2109 = vld [vmem:[#allocation2 + $0x188] sm:$0xff]
  %v2110 = vld [vmem:[#allocation2 + $0x1a0] sm:$0xff]
  %v2111 = vld [vmem:[#allocation2 + $0x1a8] sm:$0xff]
  %v2112 = vld [vmem:[#allocation2 + $0x10] sm:$0xff]
  %v2113 = vld [vmem:[#allocation2 + $0x18] sm:$0xff]
  %v2114 = vld [vmem:[#allocation2 + $0x30] sm:$0xff]
  %v2115 = vld [vmem:[#allocation2 + $0x38] sm:$0xff]
  %v2116 = vld [vmem:[#allocation2 + $0x50] sm:$0xff]
  %v2117 = vld [vmem:[#allocation2 + $0x58] sm:$0xff]
  %v2118 = vld [vmem:[#allocation2 + $0x70] sm:$0xff]
  %v2119 = vld [vmem:[#allocation2 + $0x78] sm:$0xff]
  %v2120 = vld [vmem:[#allocation2 + $0x90] sm:$0xff]
  %v2121 = vld [vmem:[#allocation2 + $0x98] sm:$0xff]
  %v2122 = vld [vmem:[#allocation2 + $0xb0] sm:$0xff]
  %v2123 = vld [vmem:[#allocation2 + $0xb8] sm:$0xff]
  %v2124 = vld [vmem:[#allocation2 + $0xd0] sm:$0xff]
  %v2125 = vld [vmem:[#allocation2 + $0xd8] sm:$0xff]
  %v2126 = vld [vmem:[#allocation2 + $0xf0] sm:$0xff]
  %v2127 = vld [vmem:[#allocation2 + $0xf8] sm:$0xff]
  %v2128 = vld [vmem:[#allocation2 + $0x110] sm:$0xff]
  %v2129 = vld [vmem:[#allocation2 + $0x118] sm:$0xff]
  %v2130 = vld [vmem:[#allocation2 + $0x130] sm:$0xff]
  %v2131 = vld [vmem:[#allocation2 + $0x138] sm:$0xff]
  %v2132 = vld [vmem:[#allocation2 + $0x150] sm:$0xff]
  %v2133 = vld [vmem:[#allocation2 + $0x158] sm:$0xff]
  %v2134 = vld [vmem:[#allocation2 + $0x170] sm:$0xff]
  %v2135 = vld [vmem:[#allocation2 + $0x178] sm:$0xff]
  %v2136 = vld [vmem:[#allocation2 + $0x190] sm:$0xff]
  %v2137 = vld [vmem:[#allocation2 + $0x198] sm:$0xff]
  %v2138 = vld [vmem:[#allocation2 + $0x1b0] sm:$0xff]
  %v2139 = vld [vmem:[#allocation2 + $0x1b8] sm:$0xff]
  %v2140 = vmax.f32 %v2084, %v2112
  %v2141 = vmax.f32 %v2085, %v2113
  %v2142 = vmax.f32 %v2086, %v2114
  %v2143 = vmax.f32 %v2087, %v2115
  %v2144 = vmax.f32 %v2088, %v2116
  %v2145 = vmax.f32 %v2089, %v2117
  %v2146 = vmax.f32 %v2090, %v2118
  %v2147 = vmax.f32 %v2091, %v2119
  %v2148 = vmax.f32 %v2092, %v2120
  %v2149 = vmax.f32 %v2093, %v2121
  %v2150 = vmax.f32 %v2094, %v2122
  %v2151 = vmax.f32 %v2095, %v2123
  %v2152 = vmax.f32 %v2096, %v2124
  %v2153 = vmax.f32 %v2097, %v2125
  %v2154 = vmax.f32 %v2098, %v2126
  %v2155 = vmax.f32 %v2099, %v2127
  %v2156 = vmax.f32 %v2100, %v2128
  %v2157 = vmax.f32 %v2101, %v2129
  %v2158 = vmax.f32 %v2102, %v2130
  %v2159 = vmax.f32 %v2103, %v2131
  %v2160 = vmax.f32 %v2104, %v2132
  %v2161 = vmax.f32 %v2105, %v2133
  %v2162 = vmax.f32 %v2106, %v2134
  %v2163 = vmax.f32 %v2107, %v2135
  %v2164 = vmax.f32 %v2108, %v2136
  %v2165 = vmax.f32 %v2109, %v2137
  %v2166 = vmax.f32 %v2110, %v2138
  %v2167 = vmax.f32 %v2111, %v2139
  %v2168 = vmax.f32 %v2140, %v2141
  %v2169 = vmax.f32 %v2142, %v2143
  %v2170 = vmax.f32 %v2144, %v2145
  %v2171 = vmax.f32 %v2146, %v2147
  %v2172 = vmax.f32 %v2148, %v2149
  %v2173 = vmax.f32 %v2150, %v2151
  %v2174 = vmax.f32 %v2152, %v2153
  %v2175 = vmax.f32 %v2154, %v2155
  %v2176 = vmax.f32 %v2156, %v2157
  %v2177 = vmax.f32 %v2158, %v2159
  %v2178 = vmax.f32 %v2160, %v2161
  %v2179 = vmax.f32 %v2162, %v2163
  %v2180 = vmax.f32 %v2164, %v2165
  %v2181 = vmax.f32 %v2166, %v2167
  %v2182 = vld [vmem:[%s2] sm:$0x1]
  %v2184 = vperm.slane %v2182, 0
  %v2186 = vadd.f32 %v2168, %v2184
  %v2187 = vadd.f32 %v2169, %v2184
  %v2188 = vadd.f32 %v2170, %v2184
  %v2189 = vadd.f32 %v2171, %v2184
  %v2190 = vadd.f32 %v2172, %v2184
  %v2191 = vadd.f32 %v2173, %v2184
  %v2192 = vadd.f32 %v2174, %v2184
  %v2193 = vadd.f32 %v2175, %v2184
  %v2194 = vadd.f32 %v2176, %v2184
  %v2195 = vadd.f32 %v2177, %v2184
  %v2196 = vadd.f32 %v2178, %v2184
  %v2197 = vadd.f32 %v2179, %v2184
  %v2198 = vadd.f32 %v2180, %v2184
  %v2199 = vadd.f32 %v2181, %v2184
  %v2200 = vmax.f32 %v2186, 0.0
  %v2201 = vmax.f32 %v2187, 0.0
  %v2202 = vmax.f32 %v2188, 0.0
  %v2203 = vmax.f32 %v2189, 0.0
  %v2204 = vmax.f32 %v2190, 0.0
  %v2205 = vmax.f32 %v2191, 0.0
  %v2206 = vmax.f32 %v2192, 0.0
  %v2207 = vmax.f32 %v2193, 0.0
  %v2208 = vmax.f32 %v2194, 0.0
  %v2209 = vmax.f32 %v2195, 0.0
  %v2210 = vmax.f32 %v2196, 0.0
  %v2211 = vmax.f32 %v2197, 0.0
  %v2212 = vmax.f32 %v2198, 0.0
  %v2213 = vmax.f32 %v2199, 0.0
  %2214 = vst [vmem:[#allocation4] sm:$0xff] %v2200
  %2215 = vst [vmem:[#allocation4 + $0x8] sm:$0xff] %v2201
  %2216 = vst [vmem:[#allocation4 + $0x10] sm:$0xff] %v2202
  %2217 = vst [vmem:[#allocation4 + $0x18] sm:$0xff] %v2203
  %2218 = vst [vmem:[#allocation4 + $0x20] sm:$0xff] %v2204
  %2219 = vst [vmem:[#allocation4 + $0x28] sm:$0xff] %v2205
  %2220 = vst [vmem:[#allocation4 + $0x30] sm:$0xff] %v2206
  %2221 = vst [vmem:[#allocation4 + $0x38] sm:$0xff] %v2207
  %2222 = vst [vmem:[#allocation4 + $0x40] sm:$0xff] %v2208
  %2223 = vst [vmem:[#allocation4 + $0x48] sm:$0xff] %v2209
  %2224 = vst [vmem:[#allocation4 + $0x50] sm:$0xff] %v2210
  %2225 = vst [vmem:[#allocation4 + $0x58] sm:$0xff] %v2211
  %2226 = vst [vmem:[#allocation4 + $0x60] sm:$0xff] %v2212
  %2227 = vst [vmem:[#allocation4 + $0x68] sm:$0xff] %v2213
  %v2228 = vld [vmem:[#allocation4] sm:$0xff]
  %v2229 = vld [vmem:[#allocation4 + $0x8] sm:$0xff]
  %v2230 = vld [vmem:[#allocation4 + $0x10] sm:$0xff]
  %v2231 = vld [vmem:[#allocation4 + $0x18] sm:$0xff]
  %v2232 = vld [vmem:[#allocation4 + $0x20] sm:$0xff]
  %v2233 = vld [vmem:[#allocation4 + $0x28] sm:$0xff]
  %v2234 = vld [vmem:[#allocation4 + $0x30] sm:$0xff]
  %v2235 = vld [vmem:[#allocation4 + $0x38] sm:$0xff]
  %v2236 = vld [vmem:[#allocation4 + $0x40] sm:$0xff]
  %v2237 = vld [vmem:[#allocation4 + $0x48] sm:$0xff]
  %v2238 = vld [vmem:[%s3] sm:$0xff]
  %v2239 = vld [vmem:[%s3 + $0x8] sm:$0xff]
  %v2240 = vld [vmem:[%s3 + $0x10] sm:$0xff]
  %v2241 = vld [vmem:[%s3 + $0x18] sm:$0xff]
  %v2242 = vld [vmem:[%s3 + $0x20] sm:$0xff]
  %v2243 = vld [vmem:[%s3 + $0x28] sm:$0xff]
  %v2244 = vld [vmem:[%s3 + $0x30] sm:$0xff]
  %v2245 = vld [vmem:[%s3 + $0x38] sm:$0xff]
  %v2246 = vld [vmem:[%s3 + $0x40] sm:$0xff]
  %v2247 = vld [vmem:[%s3 + $0x48] sm:$0xff]
  %v2248 = vld [vmem:[%s3 + $0x50] sm:$0xff]
  %v2249 = vld [vmem:[%s3 + $0x58] sm:$0xff]
  %v2250 = vld [vmem:[%s3 + $0x60] sm:$0xff]
  %v2251 = vld [vmem:[%s3 + $0x68] sm:$0xff]
  %v2252 = vld [vmem:[%s3 + $0x70] sm:$0xff]
  %v2253 = vld [vmem:[%s3 + $0x78] sm:$0xff]
  %v2254 = vld [vmem:[%s3 + $0x80] sm:$0xff]
  %v2255 = vld [vmem:[%s3 + $0x88] sm:$0xff]
  %v2256 = vld [vmem:[%s3 + $0x90] sm:$0xff]
  %v2257 = vld [vmem:[%s3 + $0x98] sm:$0xff]
  %v2258 = vld [vmem:[%s3 + $0xa0] sm:$0xff]
  %v2259 = vld [vmem:[%s3 + $0xa8] sm:$0xff]
  %v2260 = vld [vmem:[%s3 + $0xb0] sm:$0xff]
  %v2261 = vld [vmem:[%s3 + $0xb8] sm:$0xff]
  %v2262 = vld [vmem:[%s3 + $0xc0] sm:$0xff]
  %v2263 = vld [vmem:[%s3 + $0xc8] sm:$0xff]
  %v2264 = vld [vmem:[%s3 + $0xd0] sm:$0xff]
  %v2265 = vld [vmem:[%s3 + $0xd8] sm:$0xff]
  %v2266 = vld [vmem:[%s3 + $0xe0] sm:$0xff]
  %v2267 = vld [vmem:[%s3 + $0xe8] sm:$0xff]
  %v2268 = vld [vmem:[%s3 + $0xf0] sm:$0xff]
  %v2269 = vld [vmem:[%s3 + $0xf8] sm:$0xff]
  %2270 = vmatpush.msra.mxu0 %v2268
  %2271 = vmatpush.msra.mxu0 %v2266
  %2272 = vmatpush.msra.mxu0 %v2264
  %2273 = vmatpush.msra.mxu0 %v2262
  %2274 = vmatpush.msra.mxu0 %v2260
  %2275 = vmatpush.msra.mxu0 %v2258
  %2276 = vmatpush.msra.mxu0 %v2256
  %2277 = vmatpush.msra.mxu0 %v2254
  %2278 = vmatpush.msra.mxu0 %v2252
  %2279 = vmatpush.msra.mxu0 %v2250
  %2280 = vmatpush.msra.mxu0 %v2248
  %2281 = vmatpush.msra.mxu0 %v2246
  %2282 = vmatpush.msra.mxu0 %v2244
  %2283 = vmatpush.msra.mxu0 %v2242
  %2284 = vmatpush.msra.mxu0 %v2240
  %2285 = vmatpush.msra.mxu0 %v2238
  %2286 = vmatmul.f32.gmra.mxu0 %v2228
  %v2287 = vpop.f32.mrf.mxu0
  %v2288 = vadd.f32 0.0, %v2287
  %2289 = vmatmul.f32.gmra.mxu0 %v2229
  %v2290 = vpop.f32.mrf.mxu0
  %v2291 = vadd.f32 0.0, %v2290
  %2292 = vmatmul.f32.gmra.mxu0 %v2230
  %v2293 = vpop.f32.mrf.mxu0
  %v2294 = vadd.f32 0.0, %v2293
  %2295 = vmatmul.f32.gmra.mxu0 %v2231
  %v2296 = vpop.f32.mrf.mxu0
  %v2297 = vadd.f32 0.0, %v2296
  %2298 = vmatmul.f32.gmra.mxu0 %v2232
  %v2299 = vpop.f32.mrf.mxu0
  %v2300 = vadd.f32 0.0, %v2299
  %2301 = vmatmul.f32.gmra.mxu0 %v2233
  %v2302 = vpop.f32.mrf.mxu0
  %v2303 = vadd.f32 0.0, %v2302
  %2304 = vmatmul.f32.gmra.mxu0 %v2234
  %v2305 = vpop.f32.mrf.mxu0
  %v2306 = vadd.f32 0.0, %v2305
  %2307 = vmatmul.f32.gmra.mxu0 %v2235
  %v2308 = vpop.f32.mrf.mxu0
  %v2309 = vadd.f32 0.0, %v2308
  %2310 = vmatmul.f32.gmra.mxu0 %v2236
  %v2311 = vpop.f32.mrf.mxu0
  %v2312 = vadd.f32 0.0, %v2311
  %2313 = vmatmul.f32.gmra.mxu0 %v2237
  %v2314 = vpop.f32.mrf.mxu0
  %v2315 = vadd.f32 0.0, %v2314
  %2316 = vdwg.mxu0
  %2317 = vmatpush.msra.mxu0 %v2269
  %2318 = vmatpush.msra.mxu0 %v2267
  %2319 = vmatpush.msra.mxu0 %v2265
  %2320 = vmatpush.msra.mxu0 %v2263
  %2321 = vmatpush.msra.mxu0 %v2261
  %2322 = vmatpush.msra.mxu0 %v2259
  %2323 = vmatpush.msra.mxu0 %v2257
  %2324 = vmatpush.msra.mxu0 %v2255
  %2325 = vmatpush.msra.mxu0 %v2253
  %2326 = vmatpush.msra.mxu0 %v2251
  %2327 = vmatpush.msra.mxu0 %v2249
  %2328 = vmatpush.msra.mxu0 %v2247
  %2329 = vmatpush.msra.mxu0 %v2245
  %2330 = vmatpush.msra.mxu0 %v2243
  %2331 = vmatpush.msra.mxu0 %v2241
  %2332 = vmatpush.msra.mxu0 %v2239
  %2333 = vmatmul.f32.gmra.mxu0 %v2228
  %v2334 = vpop.f32.mrf.mxu0
  %v2335 = vadd.f32 0.0, %v2334
  %2336 = vmatmul.f32.gmra.mxu0 %v2229
  %v2337 = vpop.f32.mrf.mxu0
  %v2338 = vadd.f32 0.0, %v2337
  %2339 = vmatmul.f32.gmra.mxu0 %v2230
  %v2340 = vpop.f32.mrf.mxu0
  %v2341 = vadd.f32 0.0, %v2340
  %2342 = vmatmul.f32.gmra.mxu0 %v2231
  %v2343 = vpop.f32.mrf.mxu0
  %v2344 = vadd.f32 0.0, %v2343
  %2345 = vmatmul.f32.gmra.mxu0 %v2232
  %v2346 = vpop.f32.mrf.mxu0
  %v2347 = vadd.f32 0.0, %v2346
  %2348 = vmatmul.f32.gmra.mxu0 %v2233
  %v2349 = vpop.f32.mrf.mxu0
  %v2350 = vadd.f32 0.0, %v2349
  %2351 = vmatmul.f32.gmra.mxu0 %v2234
  %v2352 = vpop.f32.mrf.mxu0
  %v2353 = vadd.f32 0.0, %v2352
  %2354 = vmatmul.f32.gmra.mxu0 %v2235
  %v2355 = vpop.f32.mrf.mxu0
  %v2356 = vadd.f32 0.0, %v2355
  %2357 = vmatmul.f32.gmra.mxu0 %v2236
  %v2358 = vpop.f32.mrf.mxu0
  %v2359 = vadd.f32 0.0, %v2358
  %2360 = vmatmul.f32.gmra.mxu0 %v2237
  %v2361 = vpop.f32.mrf.mxu0
  %v2362 = vadd.f32 0.0, %v2361
  %2363 = vdwg.mxu0
  %2364 = vst [vmem:[#allocation3] sm:$0xff] %v2288
  %2365 = vst [vmem:[#allocation3 + $0x8] sm:$0xff] %v2335
  %2366 = vst [vmem:[#allocation3 + $0x10] sm:$0xff] %v2291
  %2367 = vst [vmem:[#allocation3 + $0x18] sm:$0xff] %v2338
  %2368 = vst [vmem:[#allocation3 + $0x20] sm:$0xff] %v2294
  %2369 = vst [vmem:[#allocation3 + $0x28] sm:$0xff] %v2341
  %2370 = vst [vmem:[#allocation3 + $0x30] sm:$0xff] %v2297
  %2371 = vst [vmem:[#allocation3 + $0x38] sm:$0xff] %v2344
  %2372 = vst [vmem:[#allocation3 + $0x40] sm:$0xff] %v2300
  %2373 = vst [vmem:[#allocation3 + $0x48] sm:$0xff] %v2347
  %2374 = vst [vmem:[#allocation3 + $0x50] sm:$0xff] %v2303
  %2375 = vst [vmem:[#allocation3 + $0x58] sm:$0xff] %v2350
  %2376 = vst [vmem:[#allocation3 + $0x60] sm:$0xff] %v2306
  %2377 = vst [vmem:[#allocation3 + $0x68] sm:$0xff] %v2353
  %2378 = vst [vmem:[#allocation3 + $0x70] sm:$0xff] %v2309
  %2379 = vst [vmem:[#allocation3 + $0x78] sm:$0xff] %v2356
  %2380 = vst [vmem:[#allocation3 + $0x80] sm:$0xff] %v2312
  %2381 = vst [vmem:[#allocation3 + $0x88] sm:$0xff] %v2359
  %2382 = vst [vmem:[#allocation3 + $0x90] sm:$0xff] %v2315
  %2383 = vst [vmem:[#allocation3 + $0x98] sm:$0xff] %v2362
  %s2384 = scalar_lea.vmem [#allocation4], 8
  %v2385 = vld [vmem:[%s2384] sm:$0xff]
  %v2386 = vld [vmem:[%s2384 + $0x8] sm:$0xff]
  %v2387 = vld [vmem:[%s2384 + $0x10] sm:$0xff]
  %v2388 = vld [vmem:[%s2384 + $0x18] sm:$0xff]
  %v2389 = vld [vmem:[%s2384 + $0x20] sm:$0xff]
  %v2390 = vld [vmem:[%s2384 + $0x28] sm:$0xff]
  %v2391 = vld [vmem:[%s2384 + $0x30] sm:$0xff]
  %v2392 = vld [vmem:[%s2384 + $0x38] sm:$0xff]
  %v2393 = vld [vmem:[%s2384 + $0x40] sm:$0xff]
  %v2394 = vld [vmem:[%s2384 + $0x48] sm:$0xff]
  %s2395 = scalar_lea.vmem %s3, 256
  %v2396 = vld [vmem:[%s2395] sm:$0xff]
  %v2397 = vld [vmem:[%s2395 + $0x8] sm:$0xff]
  %v2398 = vld [vmem:[%s2395 + $0x10] sm:$0xff]
  %v2399 = vld [vmem:[%s2395 + $0x18] sm:$0xff]
  %v2400 = vld [vmem:[%s2395 + $0x20] sm:$0xff]
  %v2401 = vld [vmem:[%s2395 + $0x28] sm:$0xff]
  %v2402 = vld [vmem:[%s2395 + $0x30] sm:$0xff]
  %v2403 = vld [vmem:[%s2395 + $0x38] sm:$0xff]
  %v2404 = vld [vmem:[%s2395 + $0x40] sm:$0xff]
  %v2405 = vld [vmem:[%s2395 + $0x48] sm:$0xff]
  %v2406 = vld [vmem:[%s2395 + $0x50] sm:$0xff]
  %v2407 = vld [vmem:[%s2395 + $0x58] sm:$0xff]
  %v2408 = vld [vmem:[%s2395 + $0x60] sm:$0xff]
  %v2409 = vld [vmem:[%s2395 + $0x68] sm:$0xff]
  %v2410 = vld [vmem:[%s2395 + $0x70] sm:$0xff]
  %v2411 = vld [vmem:[%s2395 + $0x78] sm:$0xff]
  %v2412 = vld [vmem:[%s2395 + $0x80] sm:$0xff]
  %v2413 = vld [vmem:[%s2395 + $0x88] sm:$0xff]
  %v2414 = vld [vmem:[%s2395 + $0x90] sm:$0xff]
  %v2415 = vld [vmem:[%s2395 + $0x98] sm:$0xff]
  %v2416 = vld [vmem:[%s2395 + $0xa0] sm:$0xff]
  %v2417 = vld [vmem:[%s2395 + $0xa8] sm:$0xff]
  %v2418 = vld [vmem:[%s2395 + $0xb0] sm:$0xff]
  %v2419 = vld [vmem:[%s2395 + $0xb8] sm:$0xff]
  %v2420 = vld [vmem:[%s2395 + $0xc0] sm:$0xff]
  %v2421 = vld [vmem:[%s2395 + $0xc8] sm:$0xff]
  %v2422 = vld [vmem:[%s2395 + $0xd0] sm:$0xff]
  %v2423 = vld [vmem:[%s2395 + $0xd8] sm:$0xff]
  %v2424 = vld [vmem:[%s2395 + $0xe0] sm:$0xff]
  %v2425 = vld [vmem:[%s2395 + $0xe8] sm:$0xff]
  %v2426 = vld [vmem:[%s2395 + $0xf0] sm:$0xff]
  %v2427 = vld [vmem:[%s2395 + $0xf8] sm:$0xff]
  %2428 = vmatpush.msra.mxu0 %v2426
  %2429 = vmatpush.msra.mxu0 %v2424
  %2430 = vmatpush.msra.mxu0 %v2422
  %2431 = vmatpush.msra.mxu0 %v2420
  %2432 = vmatpush.msra.mxu0 %v2418
  %2433 = vmatpush.msra.mxu0 %v2416
  %2434 = vmatpush.msra.mxu0 %v2414
  %2435 = vmatpush.msra.mxu0 %v2412
  %2436 = vmatpush.msra.mxu0 %v2410
  %2437 = vmatpush.msra.mxu0 %v2408
  %2438 = vmatpush.msra.mxu0 %v2406
  %2439 = vmatpush.msra.mxu0 %v2404
  %2440 = vmatpush.msra.mxu0 %v2402
  %2441 = vmatpush.msra.mxu0 %v2400
  %2442 = vmatpush.msra.mxu0 %v2398
  %2443 = vmatpush.msra.mxu0 %v2396
  %2444 = vmatmul.f32.gmra.mxu0 %v2385
  %v2445 = vpop.f32.mrf.mxu0
  %v2446 = vadd.f32 0.0, %v2445
  %2447 = vmatmul.f32.gmra.mxu0 %v2386
  %v2448 = vpop.f32.mrf.mxu0
  %v2449 = vadd.f32 0.0, %v2448
  %2450 = vmatmul.f32.gmra.mxu0 %v2387
  %v2451 = vpop.f32.mrf.mxu0
  %v2452 = vadd.f32 0.0, %v2451
  %2453 = vmatmul.f32.gmra.mxu0 %v2388
  %v2454 = vpop.f32.mrf.mxu0
  %v2455 = vadd.f32 0.0, %v2454
  %2456 = vmatmul.f32.gmra.mxu0 %v2389
  %v2457 = vpop.f32.mrf.mxu0
  %v2458 = vadd.f32 0.0, %v2457
  %2459 = vmatmul.f32.gmra.mxu0 %v2390
  %v2460 = vpop.f32.mrf.mxu0
  %v2461 = vadd.f32 0.0, %v2460
  %2462 = vmatmul.f32.gmra.mxu0 %v2391
  %v2463 = vpop.f32.mrf.mxu0
  %v2464 = vadd.f32 0.0, %v2463
  %2465 = vmatmul.f32.gmra.mxu0 %v2392
  %v2466 = vpop.f32.mrf.mxu0
  %v2467 = vadd.f32 0.0, %v2466
  %2468 = vmatmul.f32.gmra.mxu0 %v2393
  %v2469 = vpop.f32.mrf.mxu0
  %v2470 = vadd.f32 0.0, %v2469
  %2471 = vmatmul.f32.gmra.mxu0 %v2394
  %v2472 = vpop.f32.mrf.mxu0
  %v2473 = vadd.f32 0.0, %v2472
  %2474 = vdwg.mxu0
  %2475 = vmatpush.msra.mxu0 %v2427
  %2476 = vmatpush.msra.mxu0 %v2425
  %2477 = vmatpush.msra.mxu0 %v2423
  %2478 = vmatpush.msra.mxu0 %v2421
  %2479 = vmatpush.msra.mxu0 %v2419
  %2480 = vmatpush.msra.mxu0 %v2417
  %2481 = vmatpush.msra.mxu0 %v2415
  %2482 = vmatpush.msra.mxu0 %v2413
  %2483 = vmatpush.msra.mxu0 %v2411
  %2484 = vmatpush.msra.mxu0 %v2409
  %2485 = vmatpush.msra.mxu0 %v2407
  %2486 = vmatpush.msra.mxu0 %v2405
  %2487 = vmatpush.msra.mxu0 %v2403
  %2488 = vmatpush.msra.mxu0 %v2401
  %2489 = vmatpush.msra.mxu0 %v2399
  %2490 = vmatpush.msra.mxu0 %v2397
  %2491 = vmatmul.f32.gmra.mxu0 %v2385
  %v2492 = vpop.f32.mrf.mxu0
  %v2493 = vadd.f32 0.0, %v2492
  %2494 = vmatmul.f32.gmra.mxu0 %v2386
  %v2495 = vpop.f32.mrf.mxu0
  %v2496 = vadd.f32 0.0, %v2495
  %2497 = vmatmul.f32.gmra.mxu0 %v2387
  %v2498 = vpop.f32.mrf.mxu0
  %v2499 = vadd.f32 0.0, %v2498
  %2500 = vmatmul.f32.gmra.mxu0 %v2388
  %v2501 = vpop.f32.mrf.mxu0
  %v2502 = vadd.f32 0.0, %v2501
  %2503 = vmatmul.f32.gmra.mxu0 %v2389
  %v2504 = vpop.f32.mrf.mxu0
  %v2505 = vadd.f32 0.0, %v2504
  %2506 = vmatmul.f32.gmra.mxu0 %v2390
  %v2507 = vpop.f32.mrf.mxu0
  %v2508 = vadd.f32 0.0, %v2507
  %2509 = vmatmul.f32.gmra.mxu0 %v2391
  %v2510 = vpop.f32.mrf.mxu0
  %v2511 = vadd.f32 0.0, %v2510
  %2512 = vmatmul.f32.gmra.mxu0 %v2392
  %v2513 = vpop.f32.mrf.mxu0
  %v2514 = vadd.f32 0.0, %v2513
  %2515 = vmatmul.f32.gmra.mxu0 %v2393
  %v2516 = vpop.f32.mrf.mxu0
  %v2517 = vadd.f32 0.0, %v2516
  %2518 = vmatmul.f32.gmra.mxu0 %v2394
  %v2519 = vpop.f32.mrf.mxu0
  %v2520 = vadd.f32 0.0, %v2519
  %2521 = vdwg.mxu0
  %v2522 = vld [vmem:[#allocation3] sm:$0xff]
  %v2523 = vld [vmem:[#allocation3 + $0x8] sm:$0xff]
  %v2524 = vld [vmem:[#allocation3 + $0x10] sm:$0xff]
  %v2525 = vld [vmem:[#allocation3 + $0x18] sm:$0xff]
  %v2526 = vld [vmem:[#allocation3 + $0x20] sm:$0xff]
  %v2527 = vld [vmem:[#allocation3 + $0x28] sm:$0xff]
  %v2528 = vld [vmem:[#allocation3 + $0x30] sm:$0xff]
  %v2529 = vld [vmem:[#allocation3 + $0x38] sm:$0xff]
  %v2530 = vld [vmem:[#allocation3 + $0x40] sm:$0xff]
  %v2531 = vld [vmem:[#allocation3 + $0x48] sm:$0xff]
  %v2532 = vld [vmem:[#allocation3 + $0x50] sm:$0xff]
  %v2533 = vld [vmem:[#allocation3 + $0x58] sm:$0xff]
  %v2534 = vld [vmem:[#allocation3 + $0x60] sm:$0xff]
  %v2535 = vld [vmem:[#allocation3 + $0x68] sm:$0xff]
  %v2536 = vld [vmem:[#allocation3 + $0x70] sm:$0xff]
  %v2537 = vld [vmem:[#allocation3 + $0x78] sm:$0xff]
  %v2538 = vld [vmem:[#allocation3 + $0x80] sm:$0xff]
  %v2539 = vld [vmem:[#allocation3 + $0x88] sm:$0xff]
  %v2540 = vld [vmem:[#allocation3 + $0x90] sm:$0xff]
  %v2541 = vld [vmem:[#allocation3 + $0x98] sm:$0xff]
  %v2542 = vadd.f32 %v2522, %v2446
  %v2543 = vadd.f32 %v2523, %v2493
  %v2544 = vadd.f32 %v2524, %v2449
  %v2545 = vadd.f32 %v2525, %v2496
  %v2546 = vadd.f32 %v2526, %v2452
  %v2547 = vadd.f32 %v2527, %v2499
  %v2548 = vadd.f32 %v2528, %v2455
  %v2549 = vadd.f32 %v2529, %v2502
  %v2550 = vadd.f32 %v2530, %v2458
  %v2551 = vadd.f32 %v2531, %v2505
  %v2552 = vadd.f32 %v2532, %v2461
  %v2553 = vadd.f32 %v2533, %v2508
  %v2554 = vadd.f32 %v2534, %v2464
  %v2555 = vadd.f32 %v2535, %v2511
  %v2556 = vadd.f32 %v2536, %v2467
  %v2557 = vadd.f32 %v2537, %v2514
  %v2558 = vadd.f32 %v2538, %v2470
  %v2559 = vadd.f32 %v2539, %v2517
  %v2560 = vadd.f32 %v2540, %v2473
  %v2561 = vadd.f32 %v2541, %v2520
  %2562 = vst [vmem:[#allocation3] sm:$0xff] %v2542
  %2563 = vst [vmem:[#allocation3 + $0x8] sm:$0xff] %v2543
  %2564 = vst [vmem:[#allocation3 + $0x10] sm:$0xff] %v2544
  %2565 = vst [vmem:[#allocation3 + $0x18] sm:$0xff] %v2545
  %2566 = vst [vmem:[#allocation3 + $0x20] sm:$0xff] %v2546
  %2567 = vst [vmem:[#allocation3 + $0x28] sm:$0xff] %v2547
  %2568 = vst [vmem:[#allocation3 + $0x30] sm:$0xff] %v2548
  %2569 = vst [vmem:[#allocation3 + $0x38] sm:$0xff] %v2549
  %2570 = vst [vmem:[#allocation3 + $0x40] sm:$0xff] %v2550
  %2571 = vst [vmem:[#allocation3 + $0x48] sm:$0xff] %v2551
  %2572 = vst [vmem:[#allocation3 + $0x50] sm:$0xff] %v2552
  %2573 = vst [vmem:[#allocation3 + $0x58] sm:$0xff] %v2553
  %2574 = vst [vmem:[#allocation3 + $0x60] sm:$0xff] %v2554
  %2575 = vst [vmem:[#allocation3 + $0x68] sm:$0xff] %v2555
  %2576 = vst [vmem:[#allocation3 + $0x70] sm:$0xff] %v2556
  %2577 = vst [vmem:[#allocation3 + $0x78] sm:$0xff] %v2557
  %2578 = vst [vmem:[#allocation3 + $0x80] sm:$0xff] %v2558
  %2579 = vst [vmem:[#allocation3 + $0x88] sm:$0xff] %v2559
  %2580 = vst [vmem:[#allocation3 + $0x90] sm:$0xff] %v2560
  %2581 = vst [vmem:[#allocation3 + $0x98] sm:$0xff] %v2561
  %s2582 = scalar_lea.vmem [#allocation4], 16
  %v2583 = vld [vmem:[%s2582] sm:$0xff]
  %v2584 = vld [vmem:[%s2582 + $0x8] sm:$0xff]
  %v2585 = vld [vmem:[%s2582 + $0x10] sm:$0xff]
  %v2586 = vld [vmem:[%s2582 + $0x18] sm:$0xff]
  %v2587 = vld [vmem:[%s2582 + $0x20] sm:$0xff]
  %v2588 = vld [vmem:[%s2582 + $0x28] sm:$0xff]
  %v2589 = vld [vmem:[%s2582 + $0x30] sm:$0xff]
  %v2590 = vld [vmem:[%s2582 + $0x38] sm:$0xff]
  %v2591 = vld [vmem:[%s2582 + $0x40] sm:$0xff]
  %v2592 = vld [vmem:[%s2582 + $0x48] sm:$0xff]
  %s2593 = scalar_lea.vmem %s3, 512
  %v2594 = vld [vmem:[%s2593] sm:$0xff]
  %v2595 = vld [vmem:[%s2593 + $0x8] sm:$0xff]
  %v2596 = vld [vmem:[%s2593 + $0x10] sm:$0xff]
  %v2597 = vld [vmem:[%s2593 + $0x18] sm:$0xff]
  %v2598 = vld [vmem:[%s2593 + $0x20] sm:$0xff]
  %v2599 = vld [vmem:[%s2593 + $0x28] sm:$0xff]
  %v2600 = vld [vmem:[%s2593 + $0x30] sm:$0xff]
  %v2601 = vld [vmem:[%s2593 + $0x38] sm:$0xff]
  %v2602 = vld [vmem:[%s2593 + $0x40] sm:$0xff]
  %v2603 = vld [vmem:[%s2593 + $0x48] sm:$0xff]
  %v2604 = vld [vmem:[%s2593 + $0x50] sm:$0xff]
  %v2605 = vld [vmem:[%s2593 + $0x58] sm:$0xff]
  %v2606 = vld [vmem:[%s2593 + $0x60] sm:$0xff]
  %v2607 = vld [vmem:[%s2593 + $0x68] sm:$0xff]
  %v2608 = vld [vmem:[%s2593 + $0x70] sm:$0xff]
  %v2609 = vld [vmem:[%s2593 + $0x78] sm:$0xff]
  %v2610 = vld [vmem:[%s2593 + $0x80] sm:$0xff]
  %v2611 = vld [vmem:[%s2593 + $0x88] sm:$0xff]
  %v2612 = vld [vmem:[%s2593 + $0x90] sm:$0xff]
  %v2613 = vld [vmem:[%s2593 + $0x98] sm:$0xff]
  %v2614 = vld [vmem:[%s2593 + $0xa0] sm:$0xff]
  %v2615 = vld [vmem:[%s2593 + $0xa8] sm:$0xff]
  %v2616 = vld [vmem:[%s2593 + $0xb0] sm:$0xff]
  %v2617 = vld [vmem:[%s2593 + $0xb8] sm:$0xff]
  %v2618 = vld [vmem:[%s2593 + $0xc0] sm:$0xff]
  %v2619 = vld [vmem:[%s2593 + $0xc8] sm:$0xff]
  %v2620 = vld [vmem:[%s2593 + $0xd0] sm:$0xff]
  %v2621 = vld [vmem:[%s2593 + $0xd8] sm:$0xff]
  %v2622 = vld [vmem:[%s2593 + $0xe0] sm:$0xff]
  %v2623 = vld [vmem:[%s2593 + $0xe8] sm:$0xff]
  %v2624 = vld [vmem:[%s2593 + $0xf0] sm:$0xff]
  %v2625 = vld [vmem:[%s2593 + $0xf8] sm:$0xff]
  %2626 = vmatpush.msra.mxu0 %v2624
  %2627 = vmatpush.msra.mxu0 %v2622
  %2628 = vmatpush.msra.mxu0 %v2620
  %2629 = vmatpush.msra.mxu0 %v2618
  %2630 = vmatpush.msra.mxu0 %v2616
  %2631 = vmatpush.msra.mxu0 %v2614
  %2632 = vmatpush.msra.mxu0 %v2612
  %2633 = vmatpush.msra.mxu0 %v2610
  %2634 = vmatpush.msra.mxu0 %v2608
  %2635 = vmatpush.msra.mxu0 %v2606
  %2636 = vmatpush.msra.mxu0 %v2604
  %2637 = vmatpush.msra.mxu0 %v2602
  %2638 = vmatpush.msra.mxu0 %v2600
  %2639 = vmatpush.msra.mxu0 %v2598
  %2640 = vmatpush.msra.mxu0 %v2596
  %2641 = vmatpush.msra.mxu0 %v2594
  %2642 = vmatmul.f32.gmra.mxu0 %v2583
  %v2643 = vpop.f32.mrf.mxu0
  %v2644 = vadd.f32 0.0, %v2643
  %2645 = vmatmul.f32.gmra.mxu0 %v2584
  %v2646 = vpop.f32.mrf.mxu0
  %v2647 = vadd.f32 0.0, %v2646
  %2648 = vmatmul.f32.gmra.mxu0 %v2585
  %v2649 = vpop.f32.mrf.mxu0
  %v2650 = vadd.f32 0.0, %v2649
  %2651 = vmatmul.f32.gmra.mxu0 %v2586
  %v2652 = vpop.f32.mrf.mxu0
  %v2653 = vadd.f32 0.0, %v2652
  %2654 = vmatmul.f32.gmra.mxu0 %v2587
  %v2655 = vpop.f32.mrf.mxu0
  %v2656 = vadd.f32 0.0, %v2655
  %2657 = vmatmul.f32.gmra.mxu0 %v2588
  %v2658 = vpop.f32.mrf.mxu0
  %v2659 = vadd.f32 0.0, %v2658
  %2660 = vmatmul.f32.gmra.mxu0 %v2589
  %v2661 = vpop.f32.mrf.mxu0
  %v2662 = vadd.f32 0.0, %v2661
  %2663 = vmatmul.f32.gmra.mxu0 %v2590
  %v2664 = vpop.f32.mrf.mxu0
  %v2665 = vadd.f32 0.0, %v2664
  %2666 = vmatmul.f32.gmra.mxu0 %v2591
  %v2667 = vpop.f32.mrf.mxu0
  %v2668 = vadd.f32 0.0, %v2667
  %2669 = vmatmul.f32.gmra.mxu0 %v2592
  %v2670 = vpop.f32.mrf.mxu0
  %v2671 = vadd.f32 0.0, %v2670
  %2672 = vdwg.mxu0
  %2673 = vmatpush.msra.mxu0 %v2625
  %2674 = vmatpush.msra.mxu0 %v2623
  %2675 = vmatpush.msra.mxu0 %v2621
  %2676 = vmatpush.msra.mxu0 %v2619
  %2677 = vmatpush.msra.mxu0 %v2617
  %2678 = vmatpush.msra.mxu0 %v2615
  %2679 = vmatpush.msra.mxu0 %v2613
  %2680 = vmatpush.msra.mxu0 %v2611
  %2681 = vmatpush.msra.mxu0 %v2609
  %2682 = vmatpush.msra.mxu0 %v2607
  %2683 = vmatpush.msra.mxu0 %v2605
  %2684 = vmatpush.msra.mxu0 %v2603
  %2685 = vmatpush.msra.mxu0 %v2601
  %2686 = vmatpush.msra.mxu0 %v2599
  %2687 = vmatpush.msra.mxu0 %v2597
  %2688 = vmatpush.msra.mxu0 %v2595
  %2689 = vmatmul.f32.gmra.mxu0 %v2583
  %v2690 = vpop.f32.mrf.mxu0
  %v2691 = vadd.f32 0.0, %v2690
  %2692 = vmatmul.f32.gmra.mxu0 %v2584
  %v2693 = vpop.f32.mrf.mxu0
  %v2694 = vadd.f32 0.0, %v2693
  %2695 = vmatmul.f32.gmra.mxu0 %v2585
  %v2696 = vpop.f32.mrf.mxu0
  %v2697 = vadd.f32 0.0, %v2696
  %2698 = vmatmul.f32.gmra.mxu0 %v2586
  %v2699 = vpop.f32.mrf.mxu0
  %v2700 = vadd.f32 0.0, %v2699
  %2701 = vmatmul.f32.gmra.mxu0 %v2587
  %v2702 = vpop.f32.mrf.mxu0
  %v2703 = vadd.f32 0.0, %v2702
  %2704 = vmatmul.f32.gmra.mxu0 %v2588
  %v2705 = vpop.f32.mrf.mxu0
  %v2706 = vadd.f32 0.0, %v2705
  %2707 = vmatmul.f32.gmra.mxu0 %v2589
  %v2708 = vpop.f32.mrf.mxu0
  %v2709 = vadd.f32 0.0, %v2708
  %2710 = vmatmul.f32.gmra.mxu0 %v2590
  %v2711 = vpop.f32.mrf.mxu0
  %v2712 = vadd.f32 0.0, %v2711
  %2713 = vmatmul.f32.gmra.mxu0 %v2591
  %v2714 = vpop.f32.mrf.mxu0
  %v2715 = vadd.f32 0.0, %v2714
  %2716 = vmatmul.f32.gmra.mxu0 %v2592
  %v2717 = vpop.f32.mrf.mxu0
  %v2718 = vadd.f32 0.0, %v2717
  %2719 = vdwg.mxu0
  %v2720 = vld [vmem:[#allocation3] sm:$0xff]
  %v2721 = vld [vmem:[#allocation3 + $0x8] sm:$0xff]
  %v2722 = vld [vmem:[#allocation3 + $0x10] sm:$0xff]
  %v2723 = vld [vmem:[#allocation3 + $0x18] sm:$0xff]
  %v2724 = vld [vmem:[#allocation3 + $0x20] sm:$0xff]
  %v2725 = vld [vmem:[#allocation3 + $0x28] sm:$0xff]
  %v2726 = vld [vmem:[#allocation3 + $0x30] sm:$0xff]
  %v2727 = vld [vmem:[#allocation3 + $0x38] sm:$0xff]
  %v2728 = vld [vmem:[#allocation3 + $0x40] sm:$0xff]
  %v2729 = vld [vmem:[#allocation3 + $0x48] sm:$0xff]
  %v2730 = vld [vmem:[#allocation3 + $0x50] sm:$0xff]
  %v2731 = vld [vmem:[#allocation3 + $0x58] sm:$0xff]
  %v2732 = vld [vmem:[#allocation3 + $0x60] sm:$0xff]
  %v2733 = vld [vmem:[#allocation3 + $0x68] sm:$0xff]
  %v2734 = vld [vmem:[#allocation3 + $0x70] sm:$0xff]
  %v2735 = vld [vmem:[#allocation3 + $0x78] sm:$0xff]
  %v2736 = vld [vmem:[#allocation3 + $0x80] sm:$0xff]
  %v2737 = vld [vmem:[#allocation3 + $0x88] sm:$0xff]
  %v2738 = vld [vmem:[#allocation3 + $0x90] sm:$0xff]
  %v2739 = vld [vmem:[#allocation3 + $0x98] sm:$0xff]
  %v2740 = vadd.f32 %v2720, %v2644
  %v2741 = vadd.f32 %v2721, %v2691
  %v2742 = vadd.f32 %v2722, %v2647
  %v2743 = vadd.f32 %v2723, %v2694
  %v2744 = vadd.f32 %v2724, %v2650
  %v2745 = vadd.f32 %v2725, %v2697
  %v2746 = vadd.f32 %v2726, %v2653
  %v2747 = vadd.f32 %v2727, %v2700
  %v2748 = vadd.f32 %v2728, %v2656
  %v2749 = vadd.f32 %v2729, %v2703
  %v2750 = vadd.f32 %v2730, %v2659
  %v2751 = vadd.f32 %v2731, %v2706
  %v2752 = vadd.f32 %v2732, %v2662
  %v2753 = vadd.f32 %v2733, %v2709
  %v2754 = vadd.f32 %v2734, %v2665
  %v2755 = vadd.f32 %v2735, %v2712
  %v2756 = vadd.f32 %v2736, %v2668
  %v2757 = vadd.f32 %v2737, %v2715
  %v2758 = vadd.f32 %v2738, %v2671
  %v2759 = vadd.f32 %v2739, %v2718
  %2760 = vst [vmem:[#allocation3] sm:$0xff] %v2740
  %2761 = vst [vmem:[#allocation3 + $0x8] sm:$0xff] %v2741
  %2762 = vst [vmem:[#allocation3 + $0x10] sm:$0xff] %v2742
  %2763 = vst [vmem:[#allocation3 + $0x18] sm:$0xff] %v2743
  %2764 = vst [vmem:[#allocation3 + $0x20] sm:$0xff] %v2744
  %2765 = vst [vmem:[#allocation3 + $0x28] sm:$0xff] %v2745
  %2766 = vst [vmem:[#allocation3 + $0x30] sm:$0xff] %v2746
  %2767 = vst [vmem:[#allocation3 + $0x38] sm:$0xff] %v2747
  %2768 = vst [vmem:[#allocation3 + $0x40] sm:$0xff] %v2748
  %2769 = vst [vmem:[#allocation3 + $0x48] sm:$0xff] %v2749
  %2770 = vst [vmem:[#allocation3 + $0x50] sm:$0xff] %v2750
  %2771 = vst [vmem:[#allocation3 + $0x58] sm:$0xff] %v2751
  %2772 = vst [vmem:[#allocation3 + $0x60] sm:$0xff] %v2752
  %2773 = vst [vmem:[#allocation3 + $0x68] sm:$0xff] %v2753
  %2774 = vst [vmem:[#allocation3 + $0x70] sm:$0xff] %v2754
  %2775 = vst [vmem:[#allocation3 + $0x78] sm:$0xff] %v2755
  %2776 = vst [vmem:[#allocation3 + $0x80] sm:$0xff] %v2756
  %2777 = vst [vmem:[#allocation3 + $0x88] sm:$0xff] %v2757
  %2778 = vst [vmem:[#allocation3 + $0x90] sm:$0xff] %v2758
  %2779 = vst [vmem:[#allocation3 + $0x98] sm:$0xff] %v2759
  %s2780 = scalar_lea.vmem [#allocation4], 24
  %v2781 = vld [vmem:[%s2780] sm:$0xff]
  %v2782 = vld [vmem:[%s2780 + $0x8] sm:$0xff]
  %v2783 = vld [vmem:[%s2780 + $0x10] sm:$0xff]
  %v2784 = vld [vmem:[%s2780 + $0x18] sm:$0xff]
  %v2785 = vld [vmem:[%s2780 + $0x20] sm:$0xff]
  %v2786 = vld [vmem:[%s2780 + $0x28] sm:$0xff]
  %v2787 = vld [vmem:[%s2780 + $0x30] sm:$0xff]
  %v2788 = vld [vmem:[%s2780 + $0x38] sm:$0xff]
  %v2789 = vld [vmem:[%s2780 + $0x40] sm:$0xff]
  %v2790 = vld [vmem:[%s2780 + $0x48] sm:$0xff]
  %s2791 = scalar_lea.vmem %s3, 768
  %v2792 = vld [vmem:[%s2791] sm:$0xff]
  %v2793 = vld [vmem:[%s2791 + $0x8] sm:$0xff]
  %v2794 = vld [vmem:[%s2791 + $0x10] sm:$0xff]
  %v2795 = vld [vmem:[%s2791 + $0x18] sm:$0xff]
  %v2796 = vld [vmem:[%s2791 + $0x20] sm:$0xff]
  %v2797 = vld [vmem:[%s2791 + $0x28] sm:$0xff]
  %v2798 = vld [vmem:[%s2791 + $0x30] sm:$0xff]
  %v2799 = vld [vmem:[%s2791 + $0x38] sm:$0xff]
  %v2800 = vld [vmem:[%s2791 + $0x40] sm:$0xff]
  %v2801 = vld [vmem:[%s2791 + $0x48] sm:$0xff]
  %v2802 = vld [vmem:[%s2791 + $0x50] sm:$0xff]
  %v2803 = vld [vmem:[%s2791 + $0x58] sm:$0xff]
  %v2804 = vld [vmem:[%s2791 + $0x60] sm:$0xff]
  %v2805 = vld [vmem:[%s2791 + $0x68] sm:$0xff]
  %v2806 = vld [vmem:[%s2791 + $0x70] sm:$0xff]
  %v2807 = vld [vmem:[%s2791 + $0x78] sm:$0xff]
  %v2808 = vld [vmem:[%s2791 + $0x80] sm:$0xff]
  %v2809 = vld [vmem:[%s2791 + $0x88] sm:$0xff]
  %v2810 = vld [vmem:[%s2791 + $0x90] sm:$0xff]
  %v2811 = vld [vmem:[%s2791 + $0x98] sm:$0xff]
  %v2812 = vld [vmem:[%s2791 + $0xa0] sm:$0xff]
  %v2813 = vld [vmem:[%s2791 + $0xa8] sm:$0xff]
  %v2814 = vld [vmem:[%s2791 + $0xb0] sm:$0xff]
  %v2815 = vld [vmem:[%s2791 + $0xb8] sm:$0xff]
  %v2816 = vld [vmem:[%s2791 + $0xc0] sm:$0xff]
  %v2817 = vld [vmem:[%s2791 + $0xc8] sm:$0xff]
  %v2818 = vld [vmem:[%s2791 + $0xd0] sm:$0xff]
  %v2819 = vld [vmem:[%s2791 + $0xd8] sm:$0xff]
  %v2820 = vld [vmem:[%s2791 + $0xe0] sm:$0xff]
  %v2821 = vld [vmem:[%s2791 + $0xe8] sm:$0xff]
  %v2822 = vld [vmem:[%s2791 + $0xf0] sm:$0xff]
  %v2823 = vld [vmem:[%s2791 + $0xf8] sm:$0xff]
  %2824 = vmatpush.msra.mxu0 %v2822
  %2825 = vmatpush.msra.mxu0 %v2820
  %2826 = vmatpush.msra.mxu0 %v2818
  %2827 = vmatpush.msra.mxu0 %v2816
  %2828 = vmatpush.msra.mxu0 %v2814
  %2829 = vmatpush.msra.mxu0 %v2812
  %2830 = vmatpush.msra.mxu0 %v2810
  %2831 = vmatpush.msra.mxu0 %v2808
  %2832 = vmatpush.msra.mxu0 %v2806
  %2833 = vmatpush.msra.mxu0 %v2804
  %2834 = vmatpush.msra.mxu0 %v2802
  %2835 = vmatpush.msra.mxu0 %v2800
  %2836 = vmatpush.msra.mxu0 %v2798
  %2837 = vmatpush.msra.mxu0 %v2796
  %2838 = vmatpush.msra.mxu0 %v2794
  %2839 = vmatpush.msra.mxu0 %v2792
  %2840 = vmatmul.f32.gmra.mxu0 %v2781
  %v2841 = vpop.f32.mrf.mxu0
  %v2842 = vadd.f32 0.0, %v2841
  %2843 = vmatmul.f32.gmra.mxu0 %v2782
  %v2844 = vpop.f32.mrf.mxu0
  %v2845 = vadd.f32 0.0, %v2844
  %2846 = vmatmul.f32.gmra.mxu0 %v2783
  %v2847 = vpop.f32.mrf.mxu0
  %v2848 = vadd.f32 0.0, %v2847
  %2849 = vmatmul.f32.gmra.mxu0 %v2784
  %v2850 = vpop.f32.mrf.mxu0
  %v2851 = vadd.f32 0.0, %v2850
  %2852 = vmatmul.f32.gmra.mxu0 %v2785
  %v2853 = vpop.f32.mrf.mxu0
  %v2854 = vadd.f32 0.0, %v2853
  %2855 = vmatmul.f32.gmra.mxu0 %v2786
  %v2856 = vpop.f32.mrf.mxu0
  %v2857 = vadd.f32 0.0, %v2856
  %2858 = vmatmul.f32.gmra.mxu0 %v2787
  %v2859 = vpop.f32.mrf.mxu0
  %v2860 = vadd.f32 0.0, %v2859
  %2861 = vmatmul.f32.gmra.mxu0 %v2788
  %v2862 = vpop.f32.mrf.mxu0
  %v2863 = vadd.f32 0.0, %v2862
  %2864 = vmatmul.f32.gmra.mxu0 %v2789
  %v2865 = vpop.f32.mrf.mxu0
  %v2866 = vadd.f32 0.0, %v2865
  %2867 = vmatmul.f32.gmra.mxu0 %v2790
  %v2868 = vpop.f32.mrf.mxu0
  %v2869 = vadd.f32 0.0, %v2868
  %2870 = vdwg.mxu0
  %2871 = vmatpush.msra.mxu0 %v2823
  %2872 = vmatpush.msra.mxu0 %v2821
  %2873 = vmatpush.msra.mxu0 %v2819
  %2874 = vmatpush.msra.mxu0 %v2817
  %2875 = vmatpush.msra.mxu0 %v2815
  %2876 = vmatpush.msra.mxu0 %v2813
  %2877 = vmatpush.msra.mxu0 %v2811
  %2878 = vmatpush.msra.mxu0 %v2809
  %2879 = vmatpush.msra.mxu0 %v2807
  %2880 = vmatpush.msra.mxu0 %v2805
  %2881 = vmatpush.msra.mxu0 %v2803
  %2882 = vmatpush.msra.mxu0 %v2801
  %2883 = vmatpush.msra.mxu0 %v2799
  %2884 = vmatpush.msra.mxu0 %v2797
  %2885 = vmatpush.msra.mxu0 %v2795
  %2886 = vmatpush.msra.mxu0 %v2793
  %2887 = vmatmul.f32.gmra.mxu0 %v2781
  %v2888 = vpop.f32.mrf.mxu0
  %v2889 = vadd.f32 0.0, %v2888
  %2890 = vmatmul.f32.gmra.mxu0 %v2782
  %v2891 = vpop.f32.mrf.mxu0
  %v2892 = vadd.f32 0.0, %v2891
  %2893 = vmatmul.f32.gmra.mxu0 %v2783
  %v2894 = vpop.f32.mrf.mxu0
  %v2895 = vadd.f32 0.0, %v2894
  %2896 = vmatmul.f32.gmra.mxu0 %v2784
  %v2897 = vpop.f32.mrf.mxu0
  %v2898 = vadd.f32 0.0, %v2897
  %2899 = vmatmul.f32.gmra.mxu0 %v2785
  %v2900 = vpop.f32.mrf.mxu0
  %v2901 = vadd.f32 0.0, %v2900
  %2902 = vmatmul.f32.gmra.mxu0 %v2786
  %v2903 = vpop.f32.mrf.mxu0
  %v2904 = vadd.f32 0.0, %v2903
  %2905 = vmatmul.f32.gmra.mxu0 %v2787
  %v2906 = vpop.f32.mrf.mxu0
  %v2907 = vadd.f32 0.0, %v2906
  %2908 = vmatmul.f32.gmra.mxu0 %v2788
  %v2909 = vpop.f32.mrf.mxu0
  %v2910 = vadd.f32 0.0, %v2909
  %2911 = vmatmul.f32.gmra.mxu0 %v2789
  %v2912 = vpop.f32.mrf.mxu0
  %v2913 = vadd.f32 0.0, %v2912
  %2914 = vmatmul.f32.gmra.mxu0 %v2790
  %v2915 = vpop.f32.mrf.mxu0
  %v2916 = vadd.f32 0.0, %v2915
  %2917 = vdwg.mxu0
  %v2918 = vld [vmem:[#allocation3] sm:$0xff]
  %v2919 = vld [vmem:[#allocation3 + $0x8] sm:$0xff]
  %v2920 = vld [vmem:[#allocation3 + $0x10] sm:$0xff]
  %v2921 = vld [vmem:[#allocation3 + $0x18] sm:$0xff]
  %v2922 = vld [vmem:[#allocation3 + $0x20] sm:$0xff]
  %v2923 = vld [vmem:[#allocation3 + $0x28] sm:$0xff]
  %v2924 = vld [vmem:[#allocation3 + $0x30] sm:$0xff]
  %v2925 = vld [vmem:[#allocation3 + $0x38] sm:$0xff]
  %v2926 = vld [vmem:[#allocation3 + $0x40] sm:$0xff]
  %v2927 = vld [vmem:[#allocation3 + $0x48] sm:$0xff]
  %v2928 = vld [vmem:[#allocation3 + $0x50] sm:$0xff]
  %v2929 = vld [vmem:[#allocation3 + $0x58] sm:$0xff]
  %v2930 = vld [vmem:[#allocation3 + $0x60] sm:$0xff]
  %v2931 = vld [vmem:[#allocation3 + $0x68] sm:$0xff]
  %v2932 = vld [vmem:[#allocation3 + $0x70] sm:$0xff]
  %v2933 = vld [vmem:[#allocation3 + $0x78] sm:$0xff]
  %v2934 = vld [vmem:[#allocation3 + $0x80] sm:$0xff]
  %v2935 = vld [vmem:[#allocation3 + $0x88] sm:$0xff]
  %v2936 = vld [vmem:[#allocation3 + $0x90] sm:$0xff]
  %v2937 = vld [vmem:[#allocation3 + $0x98] sm:$0xff]
  %v2938 = vadd.f32 %v2918, %v2842
  %v2939 = vadd.f32 %v2919, %v2889
  %v2940 = vadd.f32 %v2920, %v2845
  %v2941 = vadd.f32 %v2921, %v2892
  %v2942 = vadd.f32 %v2922, %v2848
  %v2943 = vadd.f32 %v2923, %v2895
  %v2944 = vadd.f32 %v2924, %v2851
  %v2945 = vadd.f32 %v2925, %v2898
  %v2946 = vadd.f32 %v2926, %v2854
  %v2947 = vadd.f32 %v2927, %v2901
  %v2948 = vadd.f32 %v2928, %v2857
  %v2949 = vadd.f32 %v2929, %v2904
  %v2950 = vadd.f32 %v2930, %v2860
  %v2951 = vadd.f32 %v2931, %v2907
  %v2952 = vadd.f32 %v2932, %v2863
  %v2953 = vadd.f32 %v2933, %v2910
  %v2954 = vadd.f32 %v2934, %v2866
  %v2955 = vadd.f32 %v2935, %v2913
  %v2956 = vadd.f32 %v2936, %v2869
  %v2957 = vadd.f32 %v2937, %v2916
  %2958 = vst [vmem:[#allocation3] sm:$0xff] %v2938
  %2959 = vst [vmem:[#allocation3 + $0x8] sm:$0xff] %v2939
  %2960 = vst [vmem:[#allocation3 + $0x10] sm:$0xff] %v2940
  %2961 = vst [vmem:[#allocation3 + $0x18] sm:$0xff] %v2941
  %2962 = vst [vmem:[#allocation3 + $0x20] sm:$0xff] %v2942
  %2963 = vst [vmem:[#allocation3 + $0x28] sm:$0xff] %v2943
  %2964 = vst [vmem:[#allocation3 + $0x30] sm:$0xff] %v2944
  %2965 = vst [vmem:[#allocation3 + $0x38] sm:$0xff] %v2945
  %2966 = vst [vmem:[#allocation3 + $0x40] sm:$0xff] %v2946
  %2967 = vst [vmem:[#allocation3 + $0x48] sm:$0xff] %v2947
  %2968 = vst [vmem:[#allocation3 + $0x50] sm:$0xff] %v2948
  %2969 = vst [vmem:[#allocation3 + $0x58] sm:$0xff] %v2949
  %2970 = vst [vmem:[#allocation3 + $0x60] sm:$0xff] %v2950
  %2971 = vst [vmem:[#allocation3 + $0x68] sm:$0xff] %v2951
  %2972 = vst [vmem:[#allocation3 + $0x70] sm:$0xff] %v2952
  %2973 = vst [vmem:[#allocation3 + $0x78] sm:$0xff] %v2953
  %2974 = vst [vmem:[#allocation3 + $0x80] sm:$0xff] %v2954
  %2975 = vst [vmem:[#allocation3 + $0x88] sm:$0xff] %v2955
  %2976 = vst [vmem:[#allocation3 + $0x90] sm:$0xff] %v2956
  %2977 = vst [vmem:[#allocation3 + $0x98] sm:$0xff] %v2957
  %s2978 = scalar_lea.vmem [#allocation4], 32
  %v2979 = vld [vmem:[%s2978] sm:$0xff]
  %v2980 = vld [vmem:[%s2978 + $0x8] sm:$0xff]
  %v2981 = vld [vmem:[%s2978 + $0x10] sm:$0xff]
  %v2982 = vld [vmem:[%s2978 + $0x18] sm:$0xff]
  %v2983 = vld [vmem:[%s2978 + $0x20] sm:$0xff]
  %v2984 = vld [vmem:[%s2978 + $0x28] sm:$0xff]
  %v2985 = vld [vmem:[%s2978 + $0x30] sm:$0xff]
  %v2986 = vld [vmem:[%s2978 + $0x38] sm:$0xff]
  %v2987 = vld [vmem:[%s2978 + $0x40] sm:$0xff]
  %v2988 = vld [vmem:[%s2978 + $0x48] sm:$0xff]
  %s2989 = scalar_lea.vmem %s3, 1024
  %v2990 = vld [vmem:[%s2989] sm:$0xff]
  %v2991 = vld [vmem:[%s2989 + $0x8] sm:$0xff]
  %v2992 = vld [vmem:[%s2989 + $0x10] sm:$0xff]
  %v2993 = vld [vmem:[%s2989 + $0x18] sm:$0xff]
  %v2994 = vld [vmem:[%s2989 + $0x20] sm:$0xff]
  %v2995 = vld [vmem:[%s2989 + $0x28] sm:$0xff]
  %v2996 = vld [vmem:[%s2989 + $0x30] sm:$0xff]
  %v2997 = vld [vmem:[%s2989 + $0x38] sm:$0xff]
  %v2998 = vld [vmem:[%s2989 + $0x40] sm:$0xff]
  %v2999 = vld [vmem:[%s2989 + $0x48] sm:$0xff]
  %v3000 = vld [vmem:[%s2989 + $0x50] sm:$0xff]
  %v3001 = vld [vmem:[%s2989 + $0x58] sm:$0xff]
  %v3002 = vld [vmem:[%s2989 + $0x60] sm:$0xff]
  %v3003 = vld [vmem:[%s2989 + $0x68] sm:$0xff]
  %v3004 = vld [vmem:[%s2989 + $0x70] sm:$0xff]
  %v3005 = vld [vmem:[%s2989 + $0x78] sm:$0xff]
  %v3006 = vld [vmem:[%s2989 + $0x80] sm:$0xff]
  %v3007 = vld [vmem:[%s2989 + $0x88] sm:$0xff]
  %v3008 = vld [vmem:[%s2989 + $0x90] sm:$0xff]
  %v3009 = vld [vmem:[%s2989 + $0x98] sm:$0xff]
  %v3010 = vld [vmem:[%s2989 + $0xa0] sm:$0xff]
  %v3011 = vld [vmem:[%s2989 + $0xa8] sm:$0xff]
  %v3012 = vld [vmem:[%s2989 + $0xb0] sm:$0xff]
  %v3013 = vld [vmem:[%s2989 + $0xb8] sm:$0xff]
  %v3014 = vld [vmem:[%s2989 + $0xc0] sm:$0xff]
  %v3015 = vld [vmem:[%s2989 + $0xc8] sm:$0xff]
  %v3016 = vld [vmem:[%s2989 + $0xd0] sm:$0xff]
  %v3017 = vld [vmem:[%s2989 + $0xd8] sm:$0xff]
  %v3018 = vld [vmem:[%s2989 + $0xe0] sm:$0xff]
  %v3019 = vld [vmem:[%s2989 + $0xe8] sm:$0xff]
  %v3020 = vld [vmem:[%s2989 + $0xf0] sm:$0xff]
  %v3021 = vld [vmem:[%s2989 + $0xf8] sm:$0xff]
  %3022 = vmatpush.msra.mxu0 %v3020
  %3023 = vmatpush.msra.mxu0 %v3018
  %3024 = vmatpush.msra.mxu0 %v3016
  %3025 = vmatpush.msra.mxu0 %v3014
  %3026 = vmatpush.msra.mxu0 %v3012
  %3027 = vmatpush.msra.mxu0 %v3010
  %3028 = vmatpush.msra.mxu0 %v3008
  %3029 = vmatpush.msra.mxu0 %v3006
  %3030 = vmatpush.msra.mxu0 %v3004
  %3031 = vmatpush.msra.mxu0 %v3002
  %3032 = vmatpush.msra.mxu0 %v3000
  %3033 = vmatpush.msra.mxu0 %v2998
  %3034 = vmatpush.msra.mxu0 %v2996
  %3035 = vmatpush.msra.mxu0 %v2994
  %3036 = vmatpush.msra.mxu0 %v2992
  %3037 = vmatpush.msra.mxu0 %v2990
  %3038 = vmatmul.f32.gmra.mxu0 %v2979
  %v3039 = vpop.f32.mrf.mxu0
  %v3040 = vadd.f32 0.0, %v3039
  %3041 = vmatmul.f32.gmra.mxu0 %v2980
  %v3042 = vpop.f32.mrf.mxu0
  %v3043 = vadd.f32 0.0, %v3042
  %3044 = vmatmul.f32.gmra.mxu0 %v2981
  %v3045 = vpop.f32.mrf.mxu0
  %v3046 = vadd.f32 0.0, %v3045
  %3047 = vmatmul.f32.gmra.mxu0 %v2982
  %v3048 = vpop.f32.mrf.mxu0
  %v3049 = vadd.f32 0.0, %v3048
  %3050 = vmatmul.f32.gmra.mxu0 %v2983
  %v3051 = vpop.f32.mrf.mxu0
  %v3052 = vadd.f32 0.0, %v3051
  %3053 = vmatmul.f32.gmra.mxu0 %v2984
  %v3054 = vpop.f32.mrf.mxu0
  %v3055 = vadd.f32 0.0, %v3054
  %3056 = vmatmul.f32.gmra.mxu0 %v2985
  %v3057 = vpop.f32.mrf.mxu0
  %v3058 = vadd.f32 0.0, %v3057
  %3059 = vmatmul.f32.gmra.mxu0 %v2986
  %v3060 = vpop.f32.mrf.mxu0
  %v3061 = vadd.f32 0.0, %v3060
  %3062 = vmatmul.f32.gmra.mxu0 %v2987
  %v3063 = vpop.f32.mrf.mxu0
  %v3064 = vadd.f32 0.0, %v3063
  %3065 = vmatmul.f32.gmra.mxu0 %v2988
  %v3066 = vpop.f32.mrf.mxu0
  %v3067 = vadd.f32 0.0, %v3066
  %3068 = vdwg.mxu0
  %3069 = vmatpush.msra.mxu0 %v3021
  %3070 = vmatpush.msra.mxu0 %v3019
  %3071 = vmatpush.msra.mxu0 %v3017
  %3072 = vmatpush.msra.mxu0 %v3015
  %3073 = vmatpush.msra.mxu0 %v3013
  %3074 = vmatpush.msra.mxu0 %v3011
  %3075 = vmatpush.msra.mxu0 %v3009
  %3076 = vmatpush.msra.mxu0 %v3007
  %3077 = vmatpush.msra.mxu0 %v3005
  %3078 = vmatpush.msra.mxu0 %v3003
  %3079 = vmatpush.msra.mxu0 %v3001
  %3080 = vmatpush.msra.mxu0 %v2999
  %3081 = vmatpush.msra.mxu0 %v2997
  %3082 = vmatpush.msra.mxu0 %v2995
  %3083 = vmatpush.msra.mxu0 %v2993
  %3084 = vmatpush.msra.mxu0 %v2991
  %3085 = vmatmul.f32.gmra.mxu0 %v2979
  %v3086 = vpop.f32.mrf.mxu0
  %v3087 = vadd.f32 0.0, %v3086
  %3088 = vmatmul.f32.gmra.mxu0 %v2980
  %v3089 = vpop.f32.mrf.mxu0
  %v3090 = vadd.f32 0.0, %v3089
  %3091 = vmatmul.f32.gmra.mxu0 %v2981
  %v3092 = vpop.f32.mrf.mxu0
  %v3093 = vadd.f32 0.0, %v3092
  %3094 = vmatmul.f32.gmra.mxu0 %v2982
  %v3095 = vpop.f32.mrf.mxu0
  %v3096 = vadd.f32 0.0, %v3095
  %3097 = vmatmul.f32.gmra.mxu0 %v2983
  %v3098 = vpop.f32.mrf.mxu0
  %v3099 = vadd.f32 0.0, %v3098
  %3100 = vmatmul.f32.gmra.mxu0 %v2984
  %v3101 = vpop.f32.mrf.mxu0
  %v3102 = vadd.f32 0.0, %v3101
  %3103 = vmatmul.f32.gmra.mxu0 %v2985
  %v3104 = vpop.f32.mrf.mxu0
  %v3105 = vadd.f32 0.0, %v3104
  %3106 = vmatmul.f32.gmra.mxu0 %v2986
  %v3107 = vpop.f32.mrf.mxu0
  %v3108 = vadd.f32 0.0, %v3107
  %3109 = vmatmul.f32.gmra.mxu0 %v2987
  %v3110 = vpop.f32.mrf.mxu0
  %v3111 = vadd.f32 0.0, %v3110
  %3112 = vmatmul.f32.gmra.mxu0 %v2988
  %v3113 = vpop.f32.mrf.mxu0
  %v3114 = vadd.f32 0.0, %v3113
  %3115 = vdwg.mxu0
  %v3116 = vld [vmem:[#allocation3] sm:$0xff]
  %v3117 = vld [vmem:[#allocation3 + $0x8] sm:$0xff]
  %v3118 = vld [vmem:[#allocation3 + $0x10] sm:$0xff]
  %v3119 = vld [vmem:[#allocation3 + $0x18] sm:$0xff]
  %v3120 = vld [vmem:[#allocation3 + $0x20] sm:$0xff]
  %v3121 = vld [vmem:[#allocation3 + $0x28] sm:$0xff]
  %v3122 = vld [vmem:[#allocation3 + $0x30] sm:$0xff]
  %v3123 = vld [vmem:[#allocation3 + $0x38] sm:$0xff]
  %v3124 = vld [vmem:[#allocation3 + $0x40] sm:$0xff]
  %v3125 = vld [vmem:[#allocation3 + $0x48] sm:$0xff]
  %v3126 = vld [vmem:[#allocation3 + $0x50] sm:$0xff]
  %v3127 = vld [vmem:[#allocation3 + $0x58] sm:$0xff]
  %v3128 = vld [vmem:[#allocation3 + $0x60] sm:$0xff]
  %v3129 = vld [vmem:[#allocation3 + $0x68] sm:$0xff]
  %v3130 = vld [vmem:[#allocation3 + $0x70] sm:$0xff]
  %v3131 = vld [vmem:[#allocation3 + $0x78] sm:$0xff]
  %v3132 = vld [vmem:[#allocation3 + $0x80] sm:$0xff]
  %v3133 = vld [vmem:[#allocation3 + $0x88] sm:$0xff]
  %v3134 = vld [vmem:[#allocation3 + $0x90] sm:$0xff]
  %v3135 = vld [vmem:[#allocation3 + $0x98] sm:$0xff]
  %v3136 = vadd.f32 %v3116, %v3040
  %v3137 = vadd.f32 %v3117, %v3087
  %v3138 = vadd.f32 %v3118, %v3043
  %v3139 = vadd.f32 %v3119, %v3090
  %v3140 = vadd.f32 %v3120, %v3046
  %v3141 = vadd.f32 %v3121, %v3093
  %v3142 = vadd.f32 %v3122, %v3049
  %v3143 = vadd.f32 %v3123, %v3096
  %v3144 = vadd.f32 %v3124, %v3052
  %v3145 = vadd.f32 %v3125, %v3099
  %v3146 = vadd.f32 %v3126, %v3055
  %v3147 = vadd.f32 %v3127, %v3102
  %v3148 = vadd.f32 %v3128, %v3058
  %v3149 = vadd.f32 %v3129, %v3105
  %v3150 = vadd.f32 %v3130, %v3061
  %v3151 = vadd.f32 %v3131, %v3108
  %v3152 = vadd.f32 %v3132, %v3064
  %v3153 = vadd.f32 %v3133, %v3111
  %v3154 = vadd.f32 %v3134, %v3067
  %v3155 = vadd.f32 %v3135, %v3114
  %3156 = vst [vmem:[#allocation3] sm:$0xff] %v3136
  %3157 = vst [vmem:[#allocation3 + $0x8] sm:$0xff] %v3137
  %3158 = vst [vmem:[#allocation3 + $0x10] sm:$0xff] %v3138
  %3159 = vst [vmem:[#allocation3 + $0x18] sm:$0xff] %v3139
  %3160 = vst [vmem:[#allocation3 + $0x20] sm:$0xff] %v3140
  %3161 = vst [vmem:[#allocation3 + $0x28] sm:$0xff] %v3141
  %3162 = vst [vmem:[#allocation3 + $0x30] sm:$0xff] %v3142
  %3163 = vst [vmem:[#allocation3 + $0x38] sm:$0xff] %v3143
  %3164 = vst [vmem:[#allocation3 + $0x40] sm:$0xff] %v3144
  %3165 = vst [vmem:[#allocation3 + $0x48] sm:$0xff] %v3145
  %3166 = vst [vmem:[#allocation3 + $0x50] sm:$0xff] %v3146
  %3167 = vst [vmem:[#allocation3 + $0x58] sm:$0xff] %v3147
  %3168 = vst [vmem:[#allocation3 + $0x60] sm:$0xff] %v3148
  %3169 = vst [vmem:[#allocation3 + $0x68] sm:$0xff] %v3149
  %3170 = vst [vmem:[#allocation3 + $0x70] sm:$0xff] %v3150
  %3171 = vst [vmem:[#allocation3 + $0x78] sm:$0xff] %v3151
  %3172 = vst [vmem:[#allocation3 + $0x80] sm:$0xff] %v3152
  %3173 = vst [vmem:[#allocation3 + $0x88] sm:$0xff] %v3153
  %3174 = vst [vmem:[#allocation3 + $0x90] sm:$0xff] %v3154
  %3175 = vst [vmem:[#allocation3 + $0x98] sm:$0xff] %v3155
  %v3176 = vld [vmem:[#allocation3] sm:$0xff]
  %v3177 = vld [vmem:[#allocation3 + $0x8] sm:$0xff]
  %v3178 = vld [vmem:[#allocation3 + $0x20] sm:$0xff]
  %v3179 = vld [vmem:[#allocation3 + $0x28] sm:$0xff]
  %v3180 = vld [vmem:[#allocation3 + $0x40] sm:$0xff]
  %v3181 = vld [vmem:[#allocation3 + $0x48] sm:$0xff]
  %v3182 = vld [vmem:[#allocation3 + $0x60] sm:$0xff]
  %v3183 = vld [vmem:[#allocation3 + $0x68] sm:$0xff]
  %v3184 = vld [vmem:[#allocation3 + $0x80] sm:$0xff]
  %v3185 = vld [vmem:[#allocation3 + $0x88] sm:$0xff]
  %v3186 = vld [vmem:[#allocation3 + $0x10] sm:$0xff]
  %v3187 = vld [vmem:[#allocation3 + $0x18] sm:$0xff]
  %v3188 = vld [vmem:[#allocation3 + $0x30] sm:$0xff]
  %v3189 = vld [vmem:[#allocation3 + $0x38] sm:$0xff]
  %v3190 = vld [vmem:[#allocation3 + $0x50] sm:$0xff]
  %v3191 = vld [vmem:[#allocation3 + $0x58] sm:$0xff]
  %v3192 = vld [vmem:[#allocation3 + $0x70] sm:$0xff]
  %v3193 = vld [vmem:[#allocation3 + $0x78] sm:$0xff]
  %v3194 = vld [vmem:[#allocation3 + $0x90] sm:$0xff]
  %v3195 = vld [vmem:[#allocation3 + $0x98] sm:$0xff]
  %v3196 = vmax.f32 %v3176, %v3186
  %v3197 = vmax.f32 %v3177, %v3187
  %v3198 = vmax.f32 %v3178, %v3188
  %v3199 = vmax.f32 %v3179, %v3189
  %v3200 = vmax.f32 %v3180, %v3190
  %v3201 = vmax.f32 %v3181, %v3191
  %v3202 = vmax.f32 %v3182, %v3192
  %v3203 = vmax.f32 %v3183, %v3193
  %v3204 = vmax.f32 %v3184, %v3194
  %v3205 = vmax.f32 %v3185, %v3195
  %v3206 = vmax.f32 %v3196, %v3197
  %v3207 = vmax.f32 %v3198, %v3199
  %v3208 = vmax.f32 %v3200, %v3201
  %v3209 = vmax.f32 %v3202, %v3203
  %v3210 = vmax.f32 %v3204, %v3205
  %v3211 = vld [vmem:[%s4] sm:$0x1]
  %v3213 = vperm.slane %v3211, 0
  %v3215 = vadd.f32 %v3206, %v3213
  %v3216 = vadd.f32 %v3207, %v3213
  %v3217 = vadd.f32 %v3208, %v3213
  %v3218 = vadd.f32 %v3209, %v3213
  %v3219 = vadd.f32 %v3210, %v3213
  %v3220 = vmax.f32 %v3215, 0.0
  %v3221 = vmax.f32 %v3216, 0.0
  %v3222 = vmax.f32 %v3217, 0.0
  %v3223 = vmax.f32 %v3218, 0.0
  %v3224 = vmax.f32 %v3219, 0.0
  %v3225 = vld [vmem:[%s5] sm:$0xff]
  %v3226 = vld [vmem:[%s5 + $0x8] sm:$0xff]
  %v3227 = vld [vmem:[%s5 + $0x10] sm:$0xff]
  %v3228 = vld [vmem:[%s5 + $0x18] sm:$0xff]
  %v3229 = vld [vmem:[%s5 + $0x20] sm:$0xff]
  %v3230 = vld [vmem:[%s5 + $0x28] sm:$0xff]
  %v3231 = vld [vmem:[%s5 + $0x30] sm:$0xff]
  %v3232 = vld [vmem:[%s5 + $0x38] sm:$0xff]
  %v3233 = vld [vmem:[%s5 + $0x40] sm:$0xff]
  %v3234 = vld [vmem:[%s5 + $0x48] sm:$0xff]
  %v3235 = vld [vmem:[%s5 + $0x50] sm:$0xff]
  %v3236 = vld [vmem:[%s5 + $0x58] sm:$0xff]
  %v3237 = vld [vmem:[%s5 + $0x60] sm:$0xff]
  %v3238 = vld [vmem:[%s5 + $0x68] sm:$0xff]
  %v3239 = vld [vmem:[%s5 + $0x70] sm:$0xff]
  %v3240 = vld [vmem:[%s5 + $0x78] sm:$0xff]
  %s3241 = scalar_lea.vmem %s5, 128
  %v3242 = vld [vmem:[%s3241] sm:$0xff]
  %v3243 = vld [vmem:[%s3241 + $0x8] sm:$0xff]
  %v3244 = vld [vmem:[%s3241 + $0x10] sm:$0xff]
  %v3245 = vld [vmem:[%s3241 + $0x18] sm:$0xff]
  %v3246 = vld [vmem:[%s3241 + $0x20] sm:$0xff]
  %v3247 = vld [vmem:[%s3241 + $0x28] sm:$0xff]
  %v3248 = vld [vmem:[%s3241 + $0x30] sm:$0xff]
  %v3249 = vld [vmem:[%s3241 + $0x38] sm:$0xff]
  %v3250 = vld [vmem:[%s3241 + $0x40] sm:$0xff]
  %v3251 = vld [vmem:[%s3241 + $0x48] sm:$0xff]
  %v3252 = vld [vmem:[%s3241 + $0x50] sm:$0xff]
  %v3253 = vld [vmem:[%s3241 + $0x58] sm:$0xff]
  %v3254 = vld [vmem:[%s3241 + $0x60] sm:$0xff]
  %v3255 = vld [vmem:[%s3241 + $0x68] sm:$0xff]
  %v3256 = vld [vmem:[%s3241 + $0x70] sm:$0xff]
  %v3257 = vld [vmem:[%s3241 + $0x78] sm:$0xff]
  %3258 = vmatpush.msra.mxu0 %v3257
  %3259 = vmatpush.msra.mxu0 %v3256
  %3260 = vmatpush.msra.mxu0 %v3255
  %3261 = vmatpush.msra.mxu0 %v3254
  %3262 = vmatpush.msra.mxu0 %v3253
  %3263 = vmatpush.msra.mxu0 %v3252
  %3264 = vmatpush.msra.mxu0 %v3251
  %3265 = vmatpush.msra.mxu0 %v3250
  %3266 = vmatpush.msra.mxu0 %v3249
  %3267 = vmatpush.msra.mxu0 %v3248
  %3268 = vmatpush.msra.mxu0 %v3247
  %3269 = vmatpush.msra.mxu0 %v3246
  %3270 = vmatpush.msra.mxu0 %v3245
  %3271 = vmatpush.msra.mxu0 %v3244
  %3272 = vmatpush.msra.mxu0 %v3243
  %3273 = vmatpush.msra.mxu0 %v3242
  %3274 = vmatmul.f32.gmra.mxu0 %v3221
  %v3275 = vpop.f32.mrf.mxu0
  %v3276 = vadd.f32 0.0, %v3275
  %3277 = vdwg.mxu0
  %3278 = vmatpush.msra.mxu0 %v3240
  %3279 = vmatpush.msra.mxu0 %v3239
  %3280 = vmatpush.msra.mxu0 %v3238
  %3281 = vmatpush.msra.mxu0 %v3237
  %3282 = vmatpush.msra.mxu0 %v3236
  %3283 = vmatpush.msra.mxu0 %v3235
  %3284 = vmatpush.msra.mxu0 %v3234
  %3285 = vmatpush.msra.mxu0 %v3233
  %3286 = vmatpush.msra.mxu0 %v3232
  %3287 = vmatpush.msra.mxu0 %v3231
  %3288 = vmatpush.msra.mxu0 %v3230
  %3289 = vmatpush.msra.mxu0 %v3229
  %3290 = vmatpush.msra.mxu0 %v3228
  %3291 = vmatpush.msra.mxu0 %v3227
  %3292 = vmatpush.msra.mxu0 %v3226
  %3293 = vmatpush.msra.mxu0 %v3225
  %3294 = vmatmul.f32.gmra.mxu0 %v3220
  %v3295 = vpop.f32.mrf.mxu0
  %v3296 = vadd.f32 %v3276, %v3295
  %3297 = vdwg.mxu0
  %s3298 = scalar_lea.vmem %s5, 256
  %v3299 = vld [vmem:[%s3298] sm:$0xff]
  %v3300 = vld [vmem:[%s3298 + $0x8] sm:$0xff]
  %v3301 = vld [vmem:[%s3298 + $0x10] sm:$0xff]
  %v3302 = vld [vmem:[%s3298 + $0x18] sm:$0xff]
  %v3303 = vld [vmem:[%s3298 + $0x20] sm:$0xff]
  %v3304 = vld [vmem:[%s3298 + $0x28] sm:$0xff]
  %v3305 = vld [vmem:[%s3298 + $0x30] sm:$0xff]
  %v3306 = vld [vmem:[%s3298 + $0x38] sm:$0xff]
  %v3307 = vld [vmem:[%s3298 + $0x40] sm:$0xff]
  %v3308 = vld [vmem:[%s3298 + $0x48] sm:$0xff]
  %v3309 = vld [vmem:[%s3298 + $0x50] sm:$0xff]
  %v3310 = vld [vmem:[%s3298 + $0x58] sm:$0xff]
  %v3311 = vld [vmem:[%s3298 + $0x60] sm:$0xff]
  %v3312 = vld [vmem:[%s3298 + $0x68] sm:$0xff]
  %v3313 = vld [vmem:[%s3298 + $0x70] sm:$0xff]
  %v3314 = vld [vmem:[%s3298 + $0x78] sm:$0xff]
  %3315 = vmatpush.msra.mxu0 %v3314
  %3316 = vmatpush.msra.mxu0 %v3313
  %3317 = vmatpush.msra.mxu0 %v3312
  %3318 = vmatpush.msra.mxu0 %v3311
  %3319 = vmatpush.msra.mxu0 %v3310
  %3320 = vmatpush.msra.mxu0 %v3309
  %3321 = vmatpush.msra.mxu0 %v3308
  %3322 = vmatpush.msra.mxu0 %v3307
  %3323 = vmatpush.msra.mxu0 %v3306
  %3324 = vmatpush.msra.mxu0 %v3305
  %3325 = vmatpush.msra.mxu0 %v3304
  %3326 = vmatpush.msra.mxu0 %v3303
  %3327 = vmatpush.msra.mxu0 %v3302
  %3328 = vmatpush.msra.mxu0 %v3301
  %3329 = vmatpush.msra.mxu0 %v3300
  %3330 = vmatpush.msra.mxu0 %v3299
  %3331 = vmatmul.f32.gmra.mxu0 %v3222
  %v3332 = vpop.f32.mrf.mxu0
  %v3333 = vadd.f32 0.0, %v3332
  %3334 = vdwg.mxu0
  %v3335 = vadd.f32 %v3296, %v3333
  %s3336 = scalar_lea.vmem %s5, 384
  %v3337 = vld [vmem:[%s3336] sm:$0xff]
  %v3338 = vld [vmem:[%s3336 + $0x8] sm:$0xff]
  %v3339 = vld [vmem:[%s3336 + $0x10] sm:$0xff]
  %v3340 = vld [vmem:[%s3336 + $0x18] sm:$0xff]
  %v3341 = vld [vmem:[%s3336 + $0x20] sm:$0xff]
  %v3342 = vld [vmem:[%s3336 + $0x28] sm:$0xff]
  %v3343 = vld [vmem:[%s3336 + $0x30] sm:$0xff]
  %v3344 = vld [vmem:[%s3336 + $0x38] sm:$0xff]
  %v3345 = vld [vmem:[%s3336 + $0x40] sm:$0xff]
  %v3346 = vld [vmem:[%s3336 + $0x48] sm:$0xff]
  %v3347 = vld [vmem:[%s3336 + $0x50] sm:$0xff]
  %v3348 = vld [vmem:[%s3336 + $0x58] sm:$0xff]
  %v3349 = vld [vmem:[%s3336 + $0x60] sm:$0xff]
  %v3350 = vld [vmem:[%s3336 + $0x68] sm:$0xff]
  %v3351 = vld [vmem:[%s3336 + $0x70] sm:$0xff]
  %v3352 = vld [vmem:[%s3336 + $0x78] sm:$0xff]
  %3353 = vmatpush.msra.mxu0 %v3352
  %3354 = vmatpush.msra.mxu0 %v3351
  %3355 = vmatpush.msra.mxu0 %v3350
  %3356 = vmatpush.msra.mxu0 %v3349
  %3357 = vmatpush.msra.mxu0 %v3348
  %3358 = vmatpush.msra.mxu0 %v3347
  %3359 = vmatpush.msra.mxu0 %v3346
  %3360 = vmatpush.msra.mxu0 %v3345
  %3361 = vmatpush.msra.mxu0 %v3344
  %3362 = vmatpush.msra.mxu0 %v3343
  %3363 = vmatpush.msra.mxu0 %v3342
  %3364 = vmatpush.msra.mxu0 %v3341
  %3365 = vmatpush.msra.mxu0 %v3340
  %3366 = vmatpush.msra.mxu0 %v3339
  %3367 = vmatpush.msra.mxu0 %v3338
  %3368 = vmatpush.msra.mxu0 %v3337
  %3369 = vmatmul.f32.gmra.mxu0 %v3223
  %v3370 = vpop.f32.mrf.mxu0
  %v3371 = vadd.f32 0.0, %v3370
  %3372 = vdwg.mxu0
  %v3373 = vadd.f32 %v3335, %v3371
  %s3374 = scalar_lea.vmem %s5, 512
  %v3375 = vld [vmem:[%s3374] sm:$0xff]
  %v3376 = vld [vmem:[%s3374 + $0x8] sm:$0xff]
  %v3377 = vld [vmem:[%s3374 + $0x10] sm:$0xff]
  %v3378 = vld [vmem:[%s3374 + $0x18] sm:$0xff]
  %v3379 = vld [vmem:[%s3374 + $0x20] sm:$0xff]
  %v3380 = vld [vmem:[%s3374 + $0x28] sm:$0xff]
  %v3381 = vld [vmem:[%s3374 + $0x30] sm:$0xff]
  %v3382 = vld [vmem:[%s3374 + $0x38] sm:$0xff]
  %v3383 = vld [vmem:[%s3374 + $0x40] sm:$0xff]
  %v3384 = vld [vmem:[%s3374 + $0x48] sm:$0xff]
  %v3385 = vld [vmem:[%s3374 + $0x50] sm:$0xff]
  %v3386 = vld [vmem:[%s3374 + $0x58] sm:$0xff]
  %v3387 = vld [vmem:[%s3374 + $0x60] sm:$0xff]
  %v3388 = vld [vmem:[%s3374 + $0x68] sm:$0xff]
  %v3389 = vld [vmem:[%s3374 + $0x70] sm:$0xff]
  %v3390 = vld [vmem:[%s3374 + $0x78] sm:$0xff]
  %3391 = vmatpush.msra.mxu0 %v3390
  %3392 = vmatpush.msra.mxu0 %v3389
  %3393 = vmatpush.msra.mxu0 %v3388
  %3394 = vmatpush.msra.mxu0 %v3387
  %3395 = vmatpush.msra.mxu0 %v3386
  %3396 = vmatpush.msra.mxu0 %v3385
  %3397 = vmatpush.msra.mxu0 %v3384
  %3398 = vmatpush.msra.mxu0 %v3383
  %3399 = vmatpush.msra.mxu0 %v3382
  %3400 = vmatpush.msra.mxu0 %v3381
  %3401 = vmatpush.msra.mxu0 %v3380
  %3402 = vmatpush.msra.mxu0 %v3379
  %3403 = vmatpush.msra.mxu0 %v3378
  %3404 = vmatpush.msra.mxu0 %v3377
  %3405 = vmatpush.msra.mxu0 %v3376
  %3406 = vmatpush.msra.mxu0 %v3375
  %3407 = vmatmul.f32.gmra.mxu0 %v3224
  %v3408 = vpop.f32.mrf.mxu0
  %v3409 = vadd.f32 0.0, %v3408
  %3410 = vdwg.mxu0
  %v3411 = vadd.f32 %v3373, %v3409
  %v3412 = vld [vmem:[%s6] sm:$0x1]
  %v3414 = vperm.slane %v3412, 0
  %v3416 = vadd.f32 %v3411, %v3414
  %v3417 = vmax.f32 %v3416, 0.0
  %v3418 = vld [vmem:[%s7] sm:$0xff]
  %v3419 = vld [vmem:[%s7 + $0x8] sm:$0xff]
  %v3420 = vld [vmem:[%s7 + $0x10] sm:$0xff]
  %v3421 = vld [vmem:[%s7 + $0x18] sm:$0xff]
  %v3422 = vld [vmem:[%s7 + $0x20] sm:$0xff]
  %v3423 = vld [vmem:[%s7 + $0x28] sm:$0xff]
  %v3424 = vld [vmem:[%s7 + $0x30] sm:$0xff]
  %v3425 = vld [vmem:[%s7 + $0x38] sm:$0xff]
  %v3426 = vld [vmem:[%s7 + $0x40] sm:$0xff]
  %v3427 = vld [vmem:[%s7 + $0x48] sm:$0xff]
  %v3428 = vld [vmem:[%s7 + $0x50] sm:$0xff]
  %v3429 = vld [vmem:[%s7 + $0x58] sm:$0xff]
  %v3430 = vld [vmem:[%s7 + $0x60] sm:$0xff]
  %v3431 = vld [vmem:[%s7 + $0x68] sm:$0xff]
  %v3432 = vld [vmem:[%s7 + $0x70] sm:$0xff]
  %v3433 = vld [vmem:[%s8] sm:$0x1]
  %v3435 = vperm.slane %v3433, 0
  %vm3437 = vcmask 982016
  %v3439 = vsel %vm3437, %v3417, 0
  %3441 = vmatpush.msra.mxu0 0.0
  %3442 = vmatpush.msra.mxu0 %v3432
  %3443 = vmatpush.msra.mxu0 %v3431
  %3444 = vmatpush.msra.mxu0 %v3430
  %3445 = vmatpush.msra.mxu0 %v3429
  %3446 = vmatpush.msra.mxu0 %v3428
  %3447 = vmatpush.msra.mxu0 %v3427
  %3448 = vmatpush.msra.mxu0 %v3426
  %3449 = vmatpush.msra.mxu0 %v3425
  %3450 = vmatpush.msra.mxu0 %v3424
  %3451 = vmatpush.msra.mxu0 %v3423
  %3452 = vmatpush.msra.mxu0 %v3422
  %3453 = vmatpush.msra.mxu0 %v3421
  %3454 = vmatpush.msra.mxu0 %v3420
  %3455 = vmatpush.msra.mxu0 %v3419
  %3456 = vmatpush.msra.mxu0 %v3418
  %3457 = vmatmul.f32.gmra.mxu0 %v3439
  %v3458 = vpop.f32.mrf.mxu0
  %v3459 = vadd.f32 %v3435, %v3458
  %3460 = vdwg.mxu0
  %v3461 = vmax.f32 %v3459, 0.0
  %v3462 = vld [vmem:[%s9] sm:$0xff]
  %v3463 = vld [vmem:[%s9 + $0x8] sm:$0xff]
  %v3464 = vld [vmem:[%s9 + $0x10] sm:$0xff]
  %v3465 = vld [vmem:[%s9 + $0x18] sm:$0xff]
  %v3466 = vld [vmem:[%s9 + $0x20] sm:$0xff]
  %v3467 = vld [vmem:[%s9 + $0x28] sm:$0xff]
  %v3468 = vld [vmem:[%s9 + $0x30] sm:$0xff]
  %v3469 = vld [vmem:[%s9 + $0x38] sm:$0xff]
  %v3470 = vld [vmem:[%s9 + $0x40] sm:$0xff]
  %v3471 = vld [vmem:[%s9 + $0x48] sm:$0xff]
  %v3472 = vld [vmem:[%s9 + $0x50] sm:$0xf]
  %v3473 = vld [vmem:[%s10] sm:$0x1]
  %v3475 = vperm.slane %v3473, 0
  %vm3477 = vcmask 687104
  %v3479 = vsel %vm3477, %v3461, 0
  %vm3481 = vcmask 1043456
  %v3483 = vsel %vm3481, %v3472, 0
  %3485 = vmatpush.msra.mxu0 0.0
  %3486 = vmatpush.msra.mxu0 0.0
  %3487 = vmatpush.msra.mxu0 0.0
  %3488 = vmatpush.msra.mxu0 0.0
  %3489 = vmatpush.msra.mxu0 0.0
  %3490 = vmatpush.msra.mxu0 %v3483
  %3491 = vmatpush.msra.mxu0 %v3471
  %3492 = vmatpush.msra.mxu0 %v3470
  %3493 = vmatpush.msra.mxu0 %v3469
  %3494 = vmatpush.msra.mxu0 %v3468
  %3495 = vmatpush.msra.mxu0 %v3467
  %3496 = vmatpush.msra.mxu0 %v3466
  %3497 = vmatpush.msra.mxu0 %v3465
  %3498 = vmatpush.msra.mxu0 %v3464
  %3499 = vmatpush.msra.mxu0 %v3463
  %3500 = vmatpush.msra.mxu0 %v3462
  %3501 = vmatmul.f32.gmra.mxu0 %v3479
  %v3502 = vpop.f32.mrf.mxu0
  %v3503 = vadd.f32 %v3475, %v3502
  %3504 = vdwg.mxu0
  %3505 = vst [vmem:[%s11] sm:$0xff] %v3503
  // Predicated region
  $region46: #{tutorialnet_pallas.1} parent=0 // pred_check
    _
  $region47: #{tutorialnet_pallas.1} parent=0 // pred_check_branch
    %3507 = sbr.rel (0) target = $region49
  $region48: #{tutorialnet_pallas.1} parent=0 // pred_region
    _
  $region49: #{tutorialnet_pallas.1} parent=0 // pred_fallthru
    _
  // Predicated region
  $region50: #{tutorialnet_pallas.1} parent=0 // pred_check
    _
  $region51: #{tutorialnet_pallas.1} parent=0 // pred_check_branch
    %3509 = sbr.rel (0) target = $region53
  $region52: #{tutorialnet_pallas.1} parent=0 // pred_region
    _
  $region53: #{tutorialnet_pallas.1} parent=0 // pred_fallthru
    _

</llo_original>
